<compile_context>
chip_gen: v7x
topology: tpu7x:2x2x1
jax: 0.10.0
libtpu: 0.0.40
codegen_flags: <defaults>
</compile_context>

<pallas_src>
import jax
import jax.numpy as jnp
import numpy as np
from jax.experimental import pallas as pl
from jax.experimental.pallas import tpu as pltpu


def _round_up(n, m):
    return ((n + m - 1) // m) * m


def _vmem_capacity_bytes():
    """Per-core VMEM capacity; conservative 64 MiB (v7x) fallback."""
    try:
        info = pltpu.get_tpu_info()
        cap = int(getattr(info, "vmem_capacity_bytes", 0) or 0)
        if cap > 0:
            return cap
    except Exception:
        pass
    return 64 << 20


def _budget_t_chunk(S, B_blk, D, H_pad, O_pad, cap):
    """Pick the largest time chunk whose VMEM footprint fits ~70% of capacity,
    and an explicit vmem_limit_bytes with headroom."""
    f32, bf16 = 4, 2
    w_bytes = (D * 4 * H_pad * bf16          # W_ih^T  (bf16)
               + H_pad * 4 * H_pad * bf16    # W_hh^T  (bf16)
               + 4 * H_pad * f32             # bias
               + H_pad * O_pad * f32         # W_lin^T
               + O_pad * f32)                # b_lin
    fixed = (2 * w_bytes                     # worst case: weights double-buffered
             + 2 * B_blk * H_pad * f32       # h, c scratch
             + 2 * B_blk * O_pad * f32)      # output block (double-buffered)
    per_step = B_blk * (4 * H_pad * f32      # gx scratch (f32)
                        + 2 * D * bf16)      # x chunk (bf16, double-buffered)
    budget = int(cap * 0.7)
    t = (budget - fixed) // per_step if budget > fixed else 1
    t_chunk = int(max(1, min(t, 128, S)))
    required = fixed + t_chunk * per_step + (2 << 20)
    vmem_limit = int(min(max(required, 4 << 20), cap - (1 << 20)))
    return t_chunk, vmem_limit


def _pad_per_gate(w, H, H_pad):
    """Zero-pad the leading 4H gate axis per-gate to 4*H_pad (keeps PyTorch i,f,g,o order)."""
    if H_pad == H:
        return w
    pad_width = [(0, H_pad - H)] + [(0, 0)] * (w.ndim - 1)
    return jnp.concatenate(
        [jnp.pad(w[g * H:(g + 1) * H], pad_width) for g in range(4)], axis=0)


def _make_kernel(seq_len, t_chunk, mask_tail, unroll):
    """Kernel factory closing over static config (seq length / chunking / unroll)."""

    def kernel(x_ref, wih_ref, whh_ref, b_ref, wl_ref, bl_ref,
               out_ref, gx_sc, h_sc, c_sc):
        c_idx = pl.program_id(1)                     # time-chunk index (innermost, serial)
        T, Bb, D = x_ref.shape
        Hp = h_sc.shape[1]

        @pl.when(c_idx == 0)
        def _():
            h_sc[...] = jnp.zeros_like(h_sc)
            c_sc[...] = jnp.zeros_like(c_sc)

        # (1) Hoisted input projection: one MXU matmul per chunk (bf16 in, f32 acc),
        #     stored time-major in VMEM scratch for cheap per-step reads.
        x_all = x_ref[...].reshape(T * Bb, D)                                   # bf16
        gx = jnp.dot(x_all, wih_ref[...],
                     preferred_element_type=jnp.float32) + b_ref[...]           # f32
        gx_sc[...] = gx.reshape(T, Bb, 4 * Hp)

        # (2) Recurrence: per step only h@W_hh^T (bf16 in / f32 acc) + f32 gate math.
        def step(t, carry):
            h, c = carry
            gates = gx_sc[t] + jnp.dot(h.astype(jnp.bfloat16), whh_ref[...],
                                       preferred_element_type=jnp.float32)      # (Bb, 4Hp)
            i_g = jax.nn.sigmoid(gates[:, 0 * Hp:1 * Hp])
            f_g = jax.nn.sigmoid(gates[:, 1 * Hp:2 * Hp])
            g_g = jnp.tanh(gates[:, 2 * Hp:3 * Hp])
            o_g = jax.nn.sigmoid(gates[:, 3 * Hp:4 * Hp])
            c_new = f_g * c + i_g * g_g
            h_new = o_g * jnp.tanh(c_new)
            if mask_tail:                           # static flag: only when S % T_CHUNK != 0
                valid = (c_idx * t_chunk + t) < seq_len
                h_new = jnp.where(valid, h_new, h)
                c_new = jnp.where(valid, c_new, c)
            return h_new, c_new

        h_fin, c_fin = jax.lax.fori_loop(0, T, step, (h_sc[...], c_sc[...]),
                                         unroll=unroll)
        h_sc[...] = h_fin
        c_sc[...] = c_fin

        # (3) Linear + sigmoid on h_n; lane-dense output store (O padded to 128).
        @pl.when(c_idx == pl.num_programs(1) - 1)
        def _():
            logits = jnp.dot(h_fin, wl_ref[...],
                             preferred_element_type=jnp.float32) + bl_ref[...]
            out_ref[...] = jax.nn.sigmoid(logits).astype(out_ref.dtype)

    return kernel


def lstm_net_with_sigmoid_output(x, params):
    """x: (B, S, D) float32 (batch_first, like the PyTorch module).
    Returns sigmoid(Linear(h_n)) of shape (1, B, output_dim)."""
    B, S, D = x.shape
    w_ih, w_hh, b_ih, b_hh, w_lin, b_lin = (
        params["w_ih"], params["w_hh"], params["b_ih"],
        params["b_hh"], params["w_lin"], params["b_lin"])
    H = w_hh.shape[1]
    O = w_lin.shape[0]

    H_pad = _round_up(H, 128)       # lane-aligned gate slices
    O_pad = _round_up(O, 128)       # lane-dense output store

    # Batch blocking: one block per (potential) TensorCore shard; <=256 rows per block.
    B_pad8 = _round_up(B, 8)
    if B_pad8 > 256:
        B_BLK = 256
        B_pad = _round_up(B_pad8, B_BLK)
    else:
        B_BLK = B_pad8
        B_pad = B_pad8
    n_b = B_pad // B_BLK

    # VMEM-budget-derived time chunk + explicit scoped-VMEM limit.
    cap = _vmem_capacity_bytes()
    T_CHUNK, vmem_limit = _budget_t_chunk(S, B_BLK, D, H_pad, O_pad, cap)
    n_chunks = -(-S // T_CHUNK)
    S_pad = n_chunks * T_CHUNK
    mask_tail = (S_pad != S)

    # Partial unroll at large hidden sizes to avoid vreg spills; full unroll otherwise.
    unroll = min(T_CHUNK, 32) if H_pad < 512 else min(T_CHUNK, 8)
    unroll = max(1, unroll)

    # Per-gate zero padding keeps padded hidden units exactly 0 through the recurrence
    # (i=f=o=sigmoid(0)=0.5, g=tanh(0)=0 => c,h stay 0). Padded bias entries must stay 0.
    w_ih_p = _pad_per_gate(w_ih, H, H_pad)                                  # (4Hp, D)
    w_hh_p = _pad_per_gate(w_hh, H, H_pad)                                  # (4Hp, H)
    w_hh_p = jnp.pad(w_hh_p, ((0, 0), (0, H_pad - H)))                      # (4Hp, Hp)
    b_p = _pad_per_gate(b_ih + b_hh, H, H_pad)                              # (4Hp,)

    wih_t = jnp.transpose(w_ih_p).astype(jnp.bfloat16)                      # (D, 4Hp) bf16
    whh_t = jnp.transpose(w_hh_p).astype(jnp.bfloat16)                      # (Hp, 4Hp) bf16
    b = b_p.reshape(1, 4 * H_pad).astype(jnp.float32)                       # (1, 4Hp) f32
    wl_t = jnp.transpose(jnp.pad(w_lin, ((0, O_pad - O), (0, H_pad - H))))  # (Hp, Op) f32
    bl = jnp.pad(b_lin, (0, O_pad - O)).reshape(1, O_pad)                   # (1, Op)  f32

    # Pad batch/time, go time-major, cast bf16 — fuses into a single XLA copy.
    x_p = jnp.pad(x, ((0, B_pad - B), (0, S_pad - S), (0, 0)))
    x_tm = jnp.transpose(x_p, (1, 0, 2)).astype(jnp.bfloat16)               # (S_pad, Bp, D)

    kernel = _make_kernel(S, T_CHUNK, mask_tail, unroll)

    def _attempt(single_buffer_weights):
        wkw = ({"pipeline_mode": pl.Buffered(1)}
               if single_buffer_weights else {})
        return pl.pallas_call(
            kernel,
            out_shape=jax.ShapeDtypeStruct((B_pad, O_pad), jnp.float32),
            grid_spec=pltpu.PrefetchScalarGridSpec(
                num_scalar_prefetch=0,
                grid=(n_b, n_chunks),
                in_specs=[
                    pl.BlockSpec((T_CHUNK, B_BLK, D), lambda bb, c: (c, bb, 0)),  # x chunk
                    pl.BlockSpec((D, 4 * H_pad), lambda bb, c: (0, 0), **wkw),    # W_ih^T
                    pl.BlockSpec((H_pad, 4 * H_pad), lambda bb, c: (0, 0), **wkw),  # W_hh^T
                    pl.BlockSpec((1, 4 * H_pad), lambda bb, c: (0, 0), **wkw),    # bias
                    pl.BlockSpec((H_pad, O_pad), lambda bb, c: (0, 0), **wkw),    # W_lin^T
                    pl.BlockSpec((1, O_pad), lambda bb, c: (0, 0), **wkw),        # b_lin
                ],
                out_specs=pl.BlockSpec((B_BLK, O_pad), lambda bb, c: (bb, 0)),
                scratch_shapes=[
                    pltpu.VMEM((T_CHUNK, B_BLK, 4 * H_pad), jnp.float32),   # x-proj (chunk)
                    pltpu.VMEM((B_BLK, H_pad), jnp.float32),                # h
                    pltpu.VMEM((B_BLK, H_pad), jnp.float32),                # c
                ],
            ),
            compiler_params=pltpu.CompilerParams(
                dimension_semantics=("parallel", "arbitrary"),
                vmem_limit_bytes=vmem_limit),
        )(x_tm, wih_t, whh_t, b, wl_t, bl)

    try:
        out = _attempt(True)
    except Exception:
        # Fallback if this JAX build rejects pipeline_mode=pl.Buffered(1) on weights.
        out = _attempt(False)

    # Strip padding; add the num_layers=1 leading axis (matches PyTorch h_n-based output).
    return out[:B, :O][None]


def _reference(x, params):
    """Plain-JAX f32 reference mirroring PyTorch nn.LSTM + Linear + sigmoid."""
    B, S, D = x.shape
    H = params["w_hh"].shape[1]
    w_ih, w_hh = params["w_ih"], params["w_hh"]
    b = params["b_ih"] + params["b_hh"]
    h = jnp.zeros((B, H), jnp.float32)
    c = jnp.zeros((B, H), jnp.float32)
    for t in range(S):
        gates = x[:, t, :] @ w_ih.T + h @ w_hh.T + b
        i = jax.nn.sigmoid(gates[:, 0 * H:1 * H])
        f = jax.nn.sigmoid(gates[:, 1 * H:2 * H])
        g = jnp.tanh(gates[:, 2 * H:3 * H])
        o = jax.nn.sigmoid(gates[:, 3 * H:4 * H])
        c = f * c + i * g
        h = o * jnp.tanh(c)
    out = jax.nn.sigmoid(h @ params["w_lin"].T + params["b_lin"])
    return out[None]  # (1, B, O)


def init_params(key, input_dim, hidden_dim, output_dim):
    """Deterministic synthetic params, shapes matching nn.LSTM / nn.Linear."""
    ks = jax.random.split(key, 6)
    s = 1.0 / np.sqrt(hidden_dim)
    return {
        "w_ih": jax.random.uniform(ks[0], (4 * hidden_dim, input_dim), jnp.float32, -s, s),
        "w_hh": jax.random.uniform(ks[1], (4 * hidden_dim, hidden_dim), jnp.float32, -s, s),
        "b_ih": jax.random.uniform(ks[2], (4 * hidden_dim,), jnp.float32, -s, s),
        "b_hh": jax.random.uniform(ks[3], (4 * hidden_dim,), jnp.float32, -s, s),
        "w_lin": jax.random.uniform(ks[4], (output_dim, hidden_dim), jnp.float32, -s, s),
        "b_lin": jax.random.uniform(ks[5], (output_dim,), jnp.float32, -s, s),
    }


if __name__ == "__main__":
    key = jax.random.PRNGKey(0)
    k_x, k_p = jax.random.split(key)

    B, S, D, H, O = 2, 8, 16, 32, 4
    x = jax.random.normal(k_x, (B, S, D), jnp.float32)
    params = init_params(k_p, D, H, O)

    out = lstm_net_with_sigmoid_output(x, params)
    out = jax.block_until_ready(out)

    ref = _reference(x, params)
    assert out.shape == (1, B, O), out.shape
    # bf16 is used for the MXU inputs (x, W_ih, W_hh, h-at-dot); accumulation, gate math
    # and the cell state stay f32, so deviations vs. the f32 reference are small.
    np.testing.assert_allclose(np.asarray(out), np.asarray(ref),
                               rtol=3e-2, atol=5e-3)
    print("KERNEL_OK")
</pallas_src>

<mosaic_0001>
module attributes {stable_mosaic.version = 11 : i64} {
  func.func @kernel(%arg0: i32, %arg1: i32, %arg2: memref<8x8x16xbf16, #tpu.memory_space<vmem>>, %arg3: memref<16x512xbf16, #tpu.memory_space<vmem>>, %arg4: memref<128x512xbf16, #tpu.memory_space<vmem>>, %arg5: memref<1x512xf32, #tpu.memory_space<vmem>>, %arg6: memref<128x128xf32, #tpu.memory_space<vmem>>, %arg7: memref<1x128xf32, #tpu.memory_space<vmem>>, %arg8: memref<8x128xf32, #tpu.memory_space<vmem>>, %arg9: memref<8x8x512xf32, #tpu.memory_space<vmem>>, %arg10: memref<8x128xf32, #tpu.memory_space<vmem>>, %arg11: memref<8x128xf32, #tpu.memory_space<vmem>>) attributes {dimension_semantics = [#tpu.dimension_semantics<parallel>, #tpu.dimension_semantics<arbitrary>], iteration_bounds = array<i64: 1, 1>, scalar_prefetch = 0 : i64, scratch_operands = 3 : i64, tpu.core_type = #tpu.core_type<tc>, window_params = [{transform_indices = @transform_0, window_bounds = array<i64: 8, 8, 16>}, {pipeline_mode = #tpu.pipeline_mode<synchronous>, transform_indices = @transform_1, window_bounds = array<i64: 16, 512>}, {pipeline_mode = #tpu.pipeline_mode<synchronous>, transform_indices = @transform_2, window_bounds = array<i64: 128, 512>}, {pipeline_mode = #tpu.pipeline_mode<synchronous>, transform_indices = @transform_3, window_bounds = array<i64: 1, 512>}, {pipeline_mode = #tpu.pipeline_mode<synchronous>, transform_indices = @transform_4, window_bounds = array<i64: 128, 128>}, {pipeline_mode = #tpu.pipeline_mode<synchronous>, transform_indices = @transform_5, window_bounds = array<i64: 1, 128>}, {transform_indices = @transform_6, window_bounds = array<i64: 8, 128>}]} {
    %c0_i32 = arith.constant 0 : i32
    %0 = arith.cmpi eq, %arg1, %c0_i32 : i32
    %1 = arith.extui %0 : i1 to i32
    %c0_i32_0 = arith.constant 0 : i32
    %2 = arith.cmpi ne, %1, %c0_i32_0 : i32
    scf.if %2 {
      %cst_85 = arith.constant 0.000000e+00 : f32
      %275 = vector.broadcast %cst_85 : f32 to vector<8x128xf32>
      %c0_86 = arith.constant 0 : index
      %c0_87 = arith.constant 0 : index
      %276 = vector.load %arg10[%c0_86, %c0_87] : memref<8x128xf32, #tpu.memory_space<vmem>>, vector<8x128xf32>
      tpu.vector_store %arg10[%c0_86, %c0_87], %275 {strides = array<i32>} : memref<8x128xf32, #tpu.memory_space<vmem>>, vector<8x128xf32>,
      %cst_88 = arith.constant 0.000000e+00 : f32
      %277 = vector.broadcast %cst_88 : f32 to vector<8x128xf32>
      %c0_89 = arith.constant 0 : index
      %c0_90 = arith.constant 0 : index
      %278 = vector.load %arg11[%c0_89, %c0_90] : memref<8x128xf32, #tpu.memory_space<vmem>>, vector<8x128xf32>
      tpu.vector_store %arg11[%c0_89, %c0_90], %277 {strides = array<i32>} : memref<8x128xf32, #tpu.memory_space<vmem>>, vector<8x128xf32>,
    } else {
    }
    %c0 = arith.constant 0 : index
    %c0_1 = arith.constant 0 : index
    %c0_2 = arith.constant 0 : index
    %3 = vector.load %arg2[%c0, %c0_1, %c0_2] : memref<8x8x16xbf16, #tpu.memory_space<vmem>>, vector<8x8x16xbf16>
    %4 = vector.shape_cast %3 : vector<8x8x16xbf16> to vector<64x16xbf16>
    %c0_3 = arith.constant 0 : index
    %c0_4 = arith.constant 0 : index
    %5 = vector.load %arg3[%c0_3, %c0_4] : memref<16x512xbf16, #tpu.memory_space<vmem>>, vector<16x512xbf16>
    %cst = arith.constant dense<0.000000e+00> : vector<64x512xf32>
    %6 = tpu.matmul %4, %5, %cst {dimension_numbers = #tpu.dot_dimension_numbers<[1], [0], [0], [1], [0, 0, 1, 1], [], []>} : vector<64x16xbf16>, vector<16x512xbf16>, vector<64x512xf32> -> vector<64x512xf32>
    %c0_5 = arith.constant 0 : index
    %c0_6 = arith.constant 0 : index
    %7 = vector.load %arg5[%c0_5, %c0_6] : memref<1x512xf32, #tpu.memory_space<vmem>>, vector<1x512xf32>
    %8 = vector.broadcast %7 : vector<1x512xf32> to vector<64x512xf32>
    %9 = arith.addf %6, %8 : vector<64x512xf32>
    %10 = vector.shape_cast %9 : vector<64x512xf32> to vector<8x8x512xf32>
    %c0_7 = arith.constant 0 : index
    %c0_8 = arith.constant 0 : index
    %c0_9 = arith.constant 0 : index
    %11 = vector.load %arg9[%c0_7, %c0_8, %c0_9] : memref<8x8x512xf32, #tpu.memory_space<vmem>>, vector<8x8x512xf32>
    tpu.vector_store %arg9[%c0_7, %c0_8, %c0_9], %10 {strides = array<i32>} : memref<8x8x512xf32, #tpu.memory_space<vmem>>, vector<8x8x512xf32>,
    %c0_10 = arith.constant 0 : index
    %c0_11 = arith.constant 0 : index
    %12 = vector.load %arg10[%c0_10, %c0_11] : memref<8x128xf32, #tpu.memory_space<vmem>>, vector<8x128xf32>
    %c0_12 = arith.constant 0 : index
    %c0_13 = arith.constant 0 : index
    %13 = vector.load %arg11[%c0_12, %c0_13] : memref<8x128xf32, #tpu.memory_space<vmem>>, vector<8x128xf32>
    %c0_i32_14 = arith.constant 0 : i32
    %14 = arith.index_cast %c0_i32_14 : i32 to index
    %c0_15 = arith.constant 0 : index
    %c0_16 = arith.constant 0 : index
    %15 = vector.load %arg9[%14, %c0_15, %c0_16] : memref<8x8x512xf32, #tpu.memory_space<vmem>>, vector<1x8x512xf32>
    %16 = vector.shape_cast %15 : vector<1x8x512xf32> to vector<8x512xf32>
    %17 = arith.truncf %12 : vector<8x128xf32> to vector<8x128xbf16>
    %c0_17 = arith.constant 0 : index
    %c0_18 = arith.constant 0 : index
    %18 = vector.load %arg4[%c0_17, %c0_18] : memref<128x512xbf16, #tpu.memory_space<vmem>>, vector<128x512xbf16>
    %cst_19 = arith.constant dense<0.000000e+00> : vector<8x512xf32>
    %19 = tpu.matmul %17, %18, %cst_19 {dimension_numbers = #tpu.dot_dimension_numbers<[1], [0], [0], [1], [0, 0, 1, 1], [], []>} : vector<8x128xbf16>, vector<128x512xbf16>, vector<8x512xf32> -> vector<8x512xf32>
    %20 = arith.addf %16, %19 : vector<8x512xf32>
    %21 = vector.extract_strided_slice %20 {offsets = [0, 0], sizes = [8, 128], strides = [1, 1]} : vector<8x512xf32> to vector<8x128xf32>
    %22 = arith.negf %21 : vector<8x128xf32>
    %23 = math.exp %22 : vector<8x128xf32>
    %cst_20 = arith.constant 1.000000e+00 : f32
    %24 = vector.broadcast %cst_20 : f32 to vector<8x128xf32>
    %25 = arith.addf %24, %23 : vector<8x128xf32>
    %26 = arith.divf %24, %25 : vector<8x128xf32>
    %27 = vector.extract_strided_slice %20 {offsets = [0, 128], sizes = [8, 128], strides = [1, 1]} : vector<8x512xf32> to vector<8x128xf32>
    %28 = arith.negf %27 : vector<8x128xf32>
    %29 = math.exp %28 : vector<8x128xf32>
    %cst_21 = arith.constant 1.000000e+00 : f32
    %30 = vector.broadcast %cst_21 : f32 to vector<8x128xf32>
    %31 = arith.addf %30, %29 : vector<8x128xf32>
    %32 = arith.divf %30, %31 : vector<8x128xf32>
    %33 = vector.extract_strided_slice %20 {offsets = [0, 256], sizes = [8, 128], strides = [1, 1]} : vector<8x512xf32> to vector<8x128xf32>
    %34 = math.tanh %33 : vector<8x128xf32>
    %35 = vector.extract_strided_slice %20 {offsets = [0, 384], sizes = [8, 128], strides = [1, 1]} : vector<8x512xf32> to vector<8x128xf32>
    %36 = arith.negf %35 : vector<8x128xf32>
    %37 = math.exp %36 : vector<8x128xf32>
    %cst_22 = arith.constant 1.000000e+00 : f32
    %38 = vector.broadcast %cst_22 : f32 to vector<8x128xf32>
    %39 = arith.addf %38, %37 : vector<8x128xf32>
    %40 = arith.divf %38, %39 : vector<8x128xf32>
    %41 = arith.mulf %32, %13 : vector<8x128xf32>
    %42 = arith.mulf %26, %34 : vector<8x128xf32>
    %43 = arith.addf %41, %42 : vector<8x128xf32>
    %44 = math.tanh %43 : vector<8x128xf32>
    %45 = arith.mulf %40, %44 : vector<8x128xf32>
    %c1_i32 = arith.constant 1 : i32
    %46 = arith.index_cast %c1_i32 : i32 to index
    %c0_23 = arith.constant 0 : index
    %c0_24 = arith.constant 0 : index
    %47 = vector.load %arg9[%46, %c0_23, %c0_24] : memref<8x8x512xf32, #tpu.memory_space<vmem>>, vector<1x8x512xf32>
    %48 = vector.shape_cast %47 : vector<1x8x512xf32> to vector<8x512xf32>
    %49 = arith.truncf %45 : vector<8x128xf32> to vector<8x128xbf16>
    %c0_25 = arith.constant 0 : index
    %c0_26 = arith.constant 0 : index
    %50 = vector.load %arg4[%c0_25, %c0_26] : memref<128x512xbf16, #tpu.memory_space<vmem>>, vector<128x512xbf16>
    %cst_27 = arith.constant dense<0.000000e+00> : vector<8x512xf32>
    %51 = tpu.matmul %49, %50, %cst_27 {dimension_numbers = #tpu.dot_dimension_numbers<[1], [0], [0], [1], [0, 0, 1, 1], [], []>} : vector<8x128xbf16>, vector<128x512xbf16>, vector<8x512xf32> -> vector<8x512xf32>
    %52 = arith.addf %48, %51 : vector<8x512xf32>
    %53 = vector.extract_strided_slice %52 {offsets = [0, 0], sizes = [8, 128], strides = [1, 1]} : vector<8x512xf32> to vector<8x128xf32>
    %54 = arith.negf %53 : vector<8x128xf32>
    %55 = math.exp %54 : vector<8x128xf32>
    %cst_28 = arith.constant 1.000000e+00 : f32
    %56 = vector.broadcast %cst_28 : f32 to vector<8x128xf32>
    %57 = arith.addf %56, %55 : vector<8x128xf32>
    %58 = arith.divf %56, %57 : vector<8x128xf32>
    %59 = vector.extract_strided_slice %52 {offsets = [0, 128], sizes = [8, 128], strides = [1, 1]} : vector<8x512xf32> to vector<8x128xf32>
    %60 = arith.negf %59 : vector<8x128xf32>
    %61 = math.exp %60 : vector<8x128xf32>
    %cst_29 = arith.constant 1.000000e+00 : f32
    %62 = vector.broadcast %cst_29 : f32 to vector<8x128xf32>
    %63 = arith.addf %62, %61 : vector<8x128xf32>
    %64 = arith.divf %62, %63 : vector<8x128xf32>
    %65 = vector.extract_strided_slice %52 {offsets = [0, 256], sizes = [8, 128], strides = [1, 1]} : vector<8x512xf32> to vector<8x128xf32>
    %66 = math.tanh %65 : vector<8x128xf32>
    %67 = vector.extract_strided_slice %52 {offsets = [0, 384], sizes = [8, 128], strides = [1, 1]} : vector<8x512xf32> to vector<8x128xf32>
    %68 = arith.negf %67 : vector<8x128xf32>
    %69 = math.exp %68 : vector<8x128xf32>
    %cst_30 = arith.constant 1.000000e+00 : f32
    %70 = vector.broadcast %cst_30 : f32 to vector<8x128xf32>
    %71 = arith.addf %70, %69 : vector<8x128xf32>
    %72 = arith.divf %70, %71 : vector<8x128xf32>
    %73 = arith.mulf %64, %43 : vector<8x128xf32>
    %74 = arith.mulf %58, %66 : vector<8x128xf32>
    %75 = arith.addf %73, %74 : vector<8x128xf32>
    %76 = math.tanh %75 : vector<8x128xf32>
    %77 = arith.mulf %72, %76 : vector<8x128xf32>
    %c2_i32 = arith.constant 2 : i32
    %78 = arith.index_cast %c2_i32 : i32 to index
    %c0_31 = arith.constant 0 : index
    %c0_32 = arith.constant 0 : index
    %79 = vector.load %arg9[%78, %c0_31, %c0_32] : memref<8x8x512xf32, #tpu.memory_space<vmem>>, vector<1x8x512xf32>
    %80 = vector.shape_cast %79 : vector<1x8x512xf32> to vector<8x512xf32>
    %81 = arith.truncf %77 : vector<8x128xf32> to vector<8x128xbf16>
    %c0_33 = arith.constant 0 : index
    %c0_34 = arith.constant 0 : index
    %82 = vector.load %arg4[%c0_33, %c0_34] : memref<128x512xbf16, #tpu.memory_space<vmem>>, vector<128x512xbf16>
    %cst_35 = arith.constant dense<0.000000e+00> : vector<8x512xf32>
    %83 = tpu.matmul %81, %82, %cst_35 {dimension_numbers = #tpu.dot_dimension_numbers<[1], [0], [0], [1], [0, 0, 1, 1], [], []>} : vector<8x128xbf16>, vector<128x512xbf16>, vector<8x512xf32> -> vector<8x512xf32>
    %84 = arith.addf %80, %83 : vector<8x512xf32>
    %85 = vector.extract_strided_slice %84 {offsets = [0, 0], sizes = [8, 128], strides = [1, 1]} : vector<8x512xf32> to vector<8x128xf32>
    %86 = arith.negf %85 : vector<8x128xf32>
    %87 = math.exp %86 : vector<8x128xf32>
    %cst_36 = arith.constant 1.000000e+00 : f32
    %88 = vector.broadcast %cst_36 : f32 to vector<8x128xf32>
    %89 = arith.addf %88, %87 : vector<8x128xf32>
    %90 = arith.divf %88, %89 : vector<8x128xf32>
    %91 = vector.extract_strided_slice %84 {offsets = [0, 128], sizes = [8, 128], strides = [1, 1]} : vector<8x512xf32> to vector<8x128xf32>
    %92 = arith.negf %91 : vector<8x128xf32>
    %93 = math.exp %92 : vector<8x128xf32>
    %cst_37 = arith.constant 1.000000e+00 : f32
    %94 = vector.broadcast %cst_37 : f32 to vector<8x128xf32>
    %95 = arith.addf %94, %93 : vector<8x128xf32>
    %96 = arith.divf %94, %95 : vector<8x128xf32>
    %97 = vector.extract_strided_slice %84 {offsets = [0, 256], sizes = [8, 128], strides = [1, 1]} : vector<8x512xf32> to vector<8x128xf32>
    %98 = math.tanh %97 : vector<8x128xf32>
    %99 = vector.extract_strided_slice %84 {offsets = [0, 384], sizes = [8, 128], strides = [1, 1]} : vector<8x512xf32> to vector<8x128xf32>
    %100 = arith.negf %99 : vector<8x128xf32>
    %101 = math.exp %100 : vector<8x128xf32>
    %cst_38 = arith.constant 1.000000e+00 : f32
    %102 = vector.broadcast %cst_38 : f32 to vector<8x128xf32>
    %103 = arith.addf %102, %101 : vector<8x128xf32>
    %104 = arith.divf %102, %103 : vector<8x128xf32>
    %105 = arith.mulf %96, %75 : vector<8x128xf32>
    %106 = arith.mulf %90, %98 : vector<8x128xf32>
    %107 = arith.addf %105, %106 : vector<8x128xf32>
    %108 = math.tanh %107 : vector<8x128xf32>
    %109 = arith.mulf %104, %108 : vector<8x128xf32>
    %c3_i32 = arith.constant 3 : i32
    %110 = arith.index_cast %c3_i32 : i32 to index
    %c0_39 = arith.constant 0 : index
    %c0_40 = arith.constant 0 : index
    %111 = vector.load %arg9[%110, %c0_39, %c0_40] : memref<8x8x512xf32, #tpu.memory_space<vmem>>, vector<1x8x512xf32>
    %112 = vector.shape_cast %111 : vector<1x8x512xf32> to vector<8x512xf32>
    %113 = arith.truncf %109 : vector<8x128xf32> to vector<8x128xbf16>
    %c0_41 = arith.constant 0 : index
    %c0_42 = arith.constant 0 : index
    %114 = vector.load %arg4[%c0_41, %c0_42] : memref<128x512xbf16, #tpu.memory_space<vmem>>, vector<128x512xbf16>
    %cst_43 = arith.constant dense<0.000000e+00> : vector<8x512xf32>
    %115 = tpu.matmul %113, %114, %cst_43 {dimension_numbers = #tpu.dot_dimension_numbers<[1], [0], [0], [1], [0, 0, 1, 1], [], []>} : vector<8x128xbf16>, vector<128x512xbf16>, vector<8x512xf32> -> vector<8x512xf32>
    %116 = arith.addf %112, %115 : vector<8x512xf32>
    %117 = vector.extract_strided_slice %116 {offsets = [0, 0], sizes = [8, 128], strides = [1, 1]} : vector<8x512xf32> to vector<8x128xf32>
    %118 = arith.negf %117 : vector<8x128xf32>
    %119 = math.exp %118 : vector<8x128xf32>
    %cst_44 = arith.constant 1.000000e+00 : f32
    %120 = vector.broadcast %cst_44 : f32 to vector<8x128xf32>
    %121 = arith.addf %120, %119 : vector<8x128xf32>
    %122 = arith.divf %120, %121 : vector<8x128xf32>
    %123 = vector.extract_strided_slice %116 {offsets = [0, 128], sizes = [8, 128], strides = [1, 1]} : vector<8x512xf32> to vector<8x128xf32>
    %124 = arith.negf %123 : vector<8x128xf32>
    %125 = math.exp %124 : vector<8x128xf32>
    %cst_45 = arith.constant 1.000000e+00 : f32
    %126 = vector.broadcast %cst_45 : f32 to vector<8x128xf32>
    %127 = arith.addf %126, %125 : vector<8x128xf32>
    %128 = arith.divf %126, %127 : vector<8x128xf32>
    %129 = vector.extract_strided_slice %116 {offsets = [0, 256], sizes = [8, 128], strides = [1, 1]} : vector<8x512xf32> to vector<8x128xf32>
    %130 = math.tanh %129 : vector<8x128xf32>
    %131 = vector.extract_strided_slice %116 {offsets = [0, 384], sizes = [8, 128], strides = [1, 1]} : vector<8x512xf32> to vector<8x128xf32>
    %132 = arith.negf %131 : vector<8x128xf32>
    %133 = math.exp %132 : vector<8x128xf32>
    %cst_46 = arith.constant 1.000000e+00 : f32
    %134 = vector.broadcast %cst_46 : f32 to vector<8x128xf32>
    %135 = arith.addf %134, %133 : vector<8x128xf32>
    %136 = arith.divf %134, %135 : vector<8x128xf32>
    %137 = arith.mulf %128, %107 : vector<8x128xf32>
    %138 = arith.mulf %122, %130 : vector<8x128xf32>
    %139 = arith.addf %137, %138 : vector<8x128xf32>
    %140 = math.tanh %139 : vector<8x128xf32>
    %141 = arith.mulf %136, %140 : vector<8x128xf32>
    %c4_i32 = arith.constant 4 : i32
    %142 = arith.index_cast %c4_i32 : i32 to index
    %c0_47 = arith.constant 0 : index
    %c0_48 = arith.constant 0 : index
    %143 = vector.load %arg9[%142, %c0_47, %c0_48] : memref<8x8x512xf32, #tpu.memory_space<vmem>>, vector<1x8x512xf32>
    %144 = vector.shape_cast %143 : vector<1x8x512xf32> to vector<8x512xf32>
    %145 = arith.truncf %141 : vector<8x128xf32> to vector<8x128xbf16>
    %c0_49 = arith.constant 0 : index
    %c0_50 = arith.constant 0 : index
    %146 = vector.load %arg4[%c0_49, %c0_50] : memref<128x512xbf16, #tpu.memory_space<vmem>>, vector<128x512xbf16>
    %cst_51 = arith.constant dense<0.000000e+00> : vector<8x512xf32>
    %147 = tpu.matmul %145, %146, %cst_51 {dimension_numbers = #tpu.dot_dimension_numbers<[1], [0], [0], [1], [0, 0, 1, 1], [], []>} : vector<8x128xbf16>, vector<128x512xbf16>, vector<8x512xf32> -> vector<8x512xf32>
    %148 = arith.addf %144, %147 : vector<8x512xf32>
    %149 = vector.extract_strided_slice %148 {offsets = [0, 0], sizes = [8, 128], strides = [1, 1]} : vector<8x512xf32> to vector<8x128xf32>
    %150 = arith.negf %149 : vector<8x128xf32>
    %151 = math.exp %150 : vector<8x128xf32>
    %cst_52 = arith.constant 1.000000e+00 : f32
    %152 = vector.broadcast %cst_52 : f32 to vector<8x128xf32>
    %153 = arith.addf %152, %151 : vector<8x128xf32>
    %154 = arith.divf %152, %153 : vector<8x128xf32>
    %155 = vector.extract_strided_slice %148 {offsets = [0, 128], sizes = [8, 128], strides = [1, 1]} : vector<8x512xf32> to vector<8x128xf32>
    %156 = arith.negf %155 : vector<8x128xf32>
    %157 = math.exp %156 : vector<8x128xf32>
    %cst_53 = arith.constant 1.000000e+00 : f32
    %158 = vector.broadcast %cst_53 : f32 to vector<8x128xf32>
    %159 = arith.addf %158, %157 : vector<8x128xf32>
    %160 = arith.divf %158, %159 : vector<8x128xf32>
    %161 = vector.extract_strided_slice %148 {offsets = [0, 256], sizes = [8, 128], strides = [1, 1]} : vector<8x512xf32> to vector<8x128xf32>
    %162 = math.tanh %161 : vector<8x128xf32>
    %163 = vector.extract_strided_slice %148 {offsets = [0, 384], sizes = [8, 128], strides = [1, 1]} : vector<8x512xf32> to vector<8x128xf32>
    %164 = arith.negf %163 : vector<8x128xf32>
    %165 = math.exp %164 : vector<8x128xf32>
    %cst_54 = arith.constant 1.000000e+00 : f32
    %166 = vector.broadcast %cst_54 : f32 to vector<8x128xf32>
    %167 = arith.addf %166, %165 : vector<8x128xf32>
    %168 = arith.divf %166, %167 : vector<8x128xf32>
    %169 = arith.mulf %160, %139 : vector<8x128xf32>
    %170 = arith.mulf %154, %162 : vector<8x128xf32>
    %171 = arith.addf %169, %170 : vector<8x128xf32>
    %172 = math.tanh %171 : vector<8x128xf32>
    %173 = arith.mulf %168, %172 : vector<8x128xf32>
    %c5_i32 = arith.constant 5 : i32
    %174 = arith.index_cast %c5_i32 : i32 to index
    %c0_55 = arith.constant 0 : index
    %c0_56 = arith.constant 0 : index
    %175 = vector.load %arg9[%174, %c0_55, %c0_56] : memref<8x8x512xf32, #tpu.memory_space<vmem>>, vector<1x8x512xf32>
    %176 = vector.shape_cast %175 : vector<1x8x512xf32> to vector<8x512xf32>
    %177 = arith.truncf %173 : vector<8x128xf32> to vector<8x128xbf16>
    %c0_57 = arith.constant 0 : index
    %c0_58 = arith.constant 0 : index
    %178 = vector.load %arg4[%c0_57, %c0_58] : memref<128x512xbf16, #tpu.memory_space<vmem>>, vector<128x512xbf16>
    %cst_59 = arith.constant dense<0.000000e+00> : vector<8x512xf32>
    %179 = tpu.matmul %177, %178, %cst_59 {dimension_numbers = #tpu.dot_dimension_numbers<[1], [0], [0], [1], [0, 0, 1, 1], [], []>} : vector<8x128xbf16>, vector<128x512xbf16>, vector<8x512xf32> -> vector<8x512xf32>
    %180 = arith.addf %176, %179 : vector<8x512xf32>
    %181 = vector.extract_strided_slice %180 {offsets = [0, 0], sizes = [8, 128], strides = [1, 1]} : vector<8x512xf32> to vector<8x128xf32>
    %182 = arith.negf %181 : vector<8x128xf32>
    %183 = math.exp %182 : vector<8x128xf32>
    %cst_60 = arith.constant 1.000000e+00 : f32
    %184 = vector.broadcast %cst_60 : f32 to vector<8x128xf32>
    %185 = arith.addf %184, %183 : vector<8x128xf32>
    %186 = arith.divf %184, %185 : vector<8x128xf32>
    %187 = vector.extract_strided_slice %180 {offsets = [0, 128], sizes = [8, 128], strides = [1, 1]} : vector<8x512xf32> to vector<8x128xf32>
    %188 = arith.negf %187 : vector<8x128xf32>
    %189 = math.exp %188 : vector<8x128xf32>
    %cst_61 = arith.constant 1.000000e+00 : f32
    %190 = vector.broadcast %cst_61 : f32 to vector<8x128xf32>
    %191 = arith.addf %190, %189 : vector<8x128xf32>
    %192 = arith.divf %190, %191 : vector<8x128xf32>
    %193 = vector.extract_strided_slice %180 {offsets = [0, 256], sizes = [8, 128], strides = [1, 1]} : vector<8x512xf32> to vector<8x128xf32>
    %194 = math.tanh %193 : vector<8x128xf32>
    %195 = vector.extract_strided_slice %180 {offsets = [0, 384], sizes = [8, 128], strides = [1, 1]} : vector<8x512xf32> to vector<8x128xf32>
    %196 = arith.negf %195 : vector<8x128xf32>
    %197 = math.exp %196 : vector<8x128xf32>
    %cst_62 = arith.constant 1.000000e+00 : f32
    %198 = vector.broadcast %cst_62 : f32 to vector<8x128xf32>
    %199 = arith.addf %198, %197 : vector<8x128xf32>
    %200 = arith.divf %198, %199 : vector<8x128xf32>
    %201 = arith.mulf %192, %171 : vector<8x128xf32>
    %202 = arith.mulf %186, %194 : vector<8x128xf32>
    %203 = arith.addf %201, %202 : vector<8x128xf32>
    %204 = math.tanh %203 : vector<8x128xf32>
    %205 = arith.mulf %200, %204 : vector<8x128xf32>
    %c6_i32 = arith.constant 6 : i32
    %206 = arith.index_cast %c6_i32 : i32 to index
    %c0_63 = arith.constant 0 : index
    %c0_64 = arith.constant 0 : index
    %207 = vector.load %arg9[%206, %c0_63, %c0_64] : memref<8x8x512xf32, #tpu.memory_space<vmem>>, vector<1x8x512xf32>
    %208 = vector.shape_cast %207 : vector<1x8x512xf32> to vector<8x512xf32>
    %209 = arith.truncf %205 : vector<8x128xf32> to vector<8x128xbf16>
    %c0_65 = arith.constant 0 : index
    %c0_66 = arith.constant 0 : index
    %210 = vector.load %arg4[%c0_65, %c0_66] : memref<128x512xbf16, #tpu.memory_space<vmem>>, vector<128x512xbf16>
    %cst_67 = arith.constant dense<0.000000e+00> : vector<8x512xf32>
    %211 = tpu.matmul %209, %210, %cst_67 {dimension_numbers = #tpu.dot_dimension_numbers<[1], [0], [0], [1], [0, 0, 1, 1], [], []>} : vector<8x128xbf16>, vector<128x512xbf16>, vector<8x512xf32> -> vector<8x512xf32>
    %212 = arith.addf %208, %211 : vector<8x512xf32>
    %213 = vector.extract_strided_slice %212 {offsets = [0, 0], sizes = [8, 128], strides = [1, 1]} : vector<8x512xf32> to vector<8x128xf32>
    %214 = arith.negf %213 : vector<8x128xf32>
    %215 = math.exp %214 : vector<8x128xf32>
    %cst_68 = arith.constant 1.000000e+00 : f32
    %216 = vector.broadcast %cst_68 : f32 to vector<8x128xf32>
    %217 = arith.addf %216, %215 : vector<8x128xf32>
    %218 = arith.divf %216, %217 : vector<8x128xf32>
    %219 = vector.extract_strided_slice %212 {offsets = [0, 128], sizes = [8, 128], strides = [1, 1]} : vector<8x512xf32> to vector<8x128xf32>
    %220 = arith.negf %219 : vector<8x128xf32>
    %221 = math.exp %220 : vector<8x128xf32>
    %cst_69 = arith.constant 1.000000e+00 : f32
    %222 = vector.broadcast %cst_69 : f32 to vector<8x128xf32>
    %223 = arith.addf %222, %221 : vector<8x128xf32>
    %224 = arith.divf %222, %223 : vector<8x128xf32>
    %225 = vector.extract_strided_slice %212 {offsets = [0, 256], sizes = [8, 128], strides = [1, 1]} : vector<8x512xf32> to vector<8x128xf32>
    %226 = math.tanh %225 : vector<8x128xf32>
    %227 = vector.extract_strided_slice %212 {offsets = [0, 384], sizes = [8, 128], strides = [1, 1]} : vector<8x512xf32> to vector<8x128xf32>
    %228 = arith.negf %227 : vector<8x128xf32>
    %229 = math.exp %228 : vector<8x128xf32>
    %cst_70 = arith.constant 1.000000e+00 : f32
    %230 = vector.broadcast %cst_70 : f32 to vector<8x128xf32>
    %231 = arith.addf %230, %229 : vector<8x128xf32>
    %232 = arith.divf %230, %231 : vector<8x128xf32>
    %233 = arith.mulf %224, %203 : vector<8x128xf32>
    %234 = arith.mulf %218, %226 : vector<8x128xf32>
    %235 = arith.addf %233, %234 : vector<8x128xf32>
    %236 = math.tanh %235 : vector<8x128xf32>
    %237 = arith.mulf %232, %236 : vector<8x128xf32>
    %c7_i32 = arith.constant 7 : i32
    %238 = arith.index_cast %c7_i32 : i32 to index
    %c0_71 = arith.constant 0 : index
    %c0_72 = arith.constant 0 : index
    %239 = vector.load %arg9[%238, %c0_71, %c0_72] : memref<8x8x512xf32, #tpu.memory_space<vmem>>, vector<1x8x512xf32>
    %240 = vector.shape_cast %239 : vector<1x8x512xf32> to vector<8x512xf32>
    %241 = arith.truncf %237 : vector<8x128xf32> to vector<8x128xbf16>
    %c0_73 = arith.constant 0 : index
    %c0_74 = arith.constant 0 : index
    %242 = vector.load %arg4[%c0_73, %c0_74] : memref<128x512xbf16, #tpu.memory_space<vmem>>, vector<128x512xbf16>
    %cst_75 = arith.constant dense<0.000000e+00> : vector<8x512xf32>
    %243 = tpu.matmul %241, %242, %cst_75 {dimension_numbers = #tpu.dot_dimension_numbers<[1], [0], [0], [1], [0, 0, 1, 1], [], []>} : vector<8x128xbf16>, vector<128x512xbf16>, vector<8x512xf32> -> vector<8x512xf32>
    %244 = arith.addf %240, %243 : vector<8x512xf32>
    %245 = vector.extract_strided_slice %244 {offsets = [0, 0], sizes = [8, 128], strides = [1, 1]} : vector<8x512xf32> to vector<8x128xf32>
    %246 = arith.negf %245 : vector<8x128xf32>
    %247 = math.exp %246 : vector<8x128xf32>
    %cst_76 = arith.constant 1.000000e+00 : f32
    %248 = vector.broadcast %cst_76 : f32 to vector<8x128xf32>
    %249 = arith.addf %248, %247 : vector<8x128xf32>
    %250 = arith.divf %248, %249 : vector<8x128xf32>
    %251 = vector.extract_strided_slice %244 {offsets = [0, 128], sizes = [8, 128], strides = [1, 1]} : vector<8x512xf32> to vector<8x128xf32>
    %252 = arith.negf %251 : vector<8x128xf32>
    %253 = math.exp %252 : vector<8x128xf32>
    %cst_77 = arith.constant 1.000000e+00 : f32
    %254 = vector.broadcast %cst_77 : f32 to vector<8x128xf32>
    %255 = arith.addf %254, %253 : vector<8x128xf32>
    %256 = arith.divf %254, %255 : vector<8x128xf32>
    %257 = vector.extract_strided_slice %244 {offsets = [0, 256], sizes = [8, 128], strides = [1, 1]} : vector<8x512xf32> to vector<8x128xf32>
    %258 = math.tanh %257 : vector<8x128xf32>
    %259 = vector.extract_strided_slice %244 {offsets = [0, 384], sizes = [8, 128], strides = [1, 1]} : vector<8x512xf32> to vector<8x128xf32>
    %260 = arith.negf %259 : vector<8x128xf32>
    %261 = math.exp %260 : vector<8x128xf32>
    %cst_78 = arith.constant 1.000000e+00 : f32
    %262 = vector.broadcast %cst_78 : f32 to vector<8x128xf32>
    %263 = arith.addf %262, %261 : vector<8x128xf32>
    %264 = arith.divf %262, %263 : vector<8x128xf32>
    %265 = arith.mulf %256, %235 : vector<8x128xf32>
    %266 = arith.mulf %250, %258 : vector<8x128xf32>
    %267 = arith.addf %265, %266 : vector<8x128xf32>
    %268 = math.tanh %267 : vector<8x128xf32>
    %269 = arith.mulf %264, %268 : vector<8x128xf32>
    %c8_i32 = arith.constant 8 : i32
    %c0_79 = arith.constant 0 : index
    %c0_80 = arith.constant 0 : index
    %270 = vector.load %arg10[%c0_79, %c0_80] : memref<8x128xf32, #tpu.memory_space<vmem>>, vector<8x128xf32>
    tpu.vector_store %arg10[%c0_79, %c0_80], %269 {strides = array<i32>} : memref<8x128xf32, #tpu.memory_space<vmem>>, vector<8x128xf32>,
    %c0_81 = arith.constant 0 : index
    %c0_82 = arith.constant 0 : index
    %271 = vector.load %arg11[%c0_81, %c0_82] : memref<8x128xf32, #tpu.memory_space<vmem>>, vector<8x128xf32>
    tpu.vector_store %arg11[%c0_81, %c0_82], %267 {strides = array<i32>} : memref<8x128xf32, #tpu.memory_space<vmem>>, vector<8x128xf32>,
    %c0_i32_83 = arith.constant 0 : i32
    %272 = arith.cmpi eq, %arg1, %c0_i32_83 : i32
    %273 = arith.extui %272 : i1 to i32
    %c0_i32_84 = arith.constant 0 : i32
    %274 = arith.cmpi ne, %273, %c0_i32_84 : i32
    scf.if %274 {
      %c0_85 = arith.constant 0 : index
      %c0_86 = arith.constant 0 : index
      %275 = vector.load %arg6[%c0_85, %c0_86] : memref<128x128xf32, #tpu.memory_space<vmem>>, vector<128x128xf32>
      %cst_87 = arith.constant dense<0.000000e+00> : vector<8x128xf32>
      %276 = tpu.matmul %269, %275, %cst_87 {dimension_numbers = #tpu.dot_dimension_numbers<[1], [0], [0], [1], [0, 0, 1, 1], [], []>} : vector<8x128xf32>, vector<128x128xf32>, vector<8x128xf32> -> vector<8x128xf32>
      %c0_88 = arith.constant 0 : index
      %c0_89 = arith.constant 0 : index
      %277 = vector.load %arg7[%c0_88, %c0_89] : memref<1x128xf32, #tpu.memory_space<vmem>>, vector<1x128xf32>
      %278 = vector.broadcast %277 : vector<1x128xf32> to vector<8x128xf32>
      %279 = arith.addf %276, %278 : vector<8x128xf32>
      %280 = arith.negf %279 : vector<8x128xf32>
      %281 = math.exp %280 : vector<8x128xf32>
      %cst_90 = arith.constant 1.000000e+00 : f32
      %282 = vector.broadcast %cst_90 : f32 to vector<8x128xf32>
      %283 = arith.addf %282, %281 : vector<8x128xf32>
      %284 = arith.divf %282, %283 : vector<8x128xf32>
      %c0_91 = arith.constant 0 : index
      %c0_92 = arith.constant 0 : index
      %285 = vector.load %arg8[%c0_91, %c0_92] : memref<8x128xf32, #tpu.memory_space<vmem>>, vector<8x128xf32>
      tpu.vector_store %arg8[%c0_91, %c0_92], %284 {strides = array<i32>} : memref<8x128xf32, #tpu.memory_space<vmem>>, vector<8x128xf32>,
    } else {
    }
    return
  }
  func.func @transform_0(%arg0: i32, %arg1: i32) -> (i32, i32, i32) {
    %c0_i32 = arith.constant 0 : i32
    %c0_i32_0 = arith.constant 0 : i32
    return %arg1, %arg0, %c0_i32 : i32, i32, i32
  }
  func.func @transform_1(%arg0: i32, %arg1: i32) -> (i32, i32) {
    %c0_i32 = arith.constant 0 : i32
    %c0_i32_0 = arith.constant 0 : i32
    %c0_i32_1 = arith.constant 0 : i32
    return %c0_i32, %c0_i32_0 : i32, i32
  }
  func.func @transform_2(%arg0: i32, %arg1: i32) -> (i32, i32) {
    %c0_i32 = arith.constant 0 : i32
    %c0_i32_0 = arith.constant 0 : i32
    %c0_i32_1 = arith.constant 0 : i32
    return %c0_i32, %c0_i32_0 : i32, i32
  }
  func.func @transform_3(%arg0: i32, %arg1: i32) -> (i32, i32) {
    %c0_i32 = arith.constant 0 : i32
    %c0_i32_0 = arith.constant 0 : i32
    %c0_i32_1 = arith.constant 0 : i32
    return %c0_i32, %c0_i32_0 : i32, i32
  }
  func.func @transform_4(%arg0: i32, %arg1: i32) -> (i32, i32) {
    %c0_i32 = arith.constant 0 : i32
    %c0_i32_0 = arith.constant 0 : i32
    %c0_i32_1 = arith.constant 0 : i32
    return %c0_i32, %c0_i32_0 : i32, i32
  }
  func.func @transform_5(%arg0: i32, %arg1: i32) -> (i32, i32) {
    %c0_i32 = arith.constant 0 : i32
    %c0_i32_0 = arith.constant 0 : i32
    %c0_i32_1 = arith.constant 0 : i32
    return %c0_i32, %c0_i32_0 : i32, i32
  }
  func.func @transform_6(%arg0: i32, %arg1: i32) -> (i32, i32) {
    %c0_i32 = arith.constant 0 : i32
    %c0_i32_0 = arith.constant 0 : i32
    return %arg0, %c0_i32 : i32, i32
  }
}

module attributes {stable_mosaic.version = 11 : i64} {
  func.func @kernel(%arg0: i32, %arg1: i32, %arg2: memref<8x8x16xbf16, #tpu.memory_space<vmem>>, %arg3: memref<16x512xbf16, #tpu.memory_space<vmem>>, %arg4: memref<128x512xbf16, #tpu.memory_space<vmem>>, %arg5: memref<1x512xf32, #tpu.memory_space<vmem>>, %arg6: memref<128x128xf32, #tpu.memory_space<vmem>>, %arg7: memref<1x128xf32, #tpu.memory_space<vmem>>, %arg8: memref<8x128xf32, #tpu.memory_space<vmem>>, %arg9: memref<8x8x512xf32, #tpu.memory_space<vmem>>, %arg10: memref<8x128xf32, #tpu.memory_space<vmem>>, %arg11: memref<8x128xf32, #tpu.memory_space<vmem>>) attributes {dimension_semantics = [#tpu.dimension_semantics<parallel>, #tpu.dimension_semantics<arbitrary>], iteration_bounds = array<i64: 1, 1>, scalar_prefetch = 0 : i64, scratch_operands = 3 : i64, tpu.core_type = #tpu.core_type<tc>, window_params = [{transform_indices = @transform_0, window_bounds = array<i64: 8, 8, 16>}, {pipeline_mode = #tpu.pipeline_mode<synchronous>, transform_indices = @transform_1, window_bounds = array<i64: 16, 512>}, {pipeline_mode = #tpu.pipeline_mode<synchronous>, transform_indices = @transform_2, window_bounds = array<i64: 128, 512>}, {pipeline_mode = #tpu.pipeline_mode<synchronous>, transform_indices = @transform_3, window_bounds = array<i64: 1, 512>}, {pipeline_mode = #tpu.pipeline_mode<synchronous>, transform_indices = @transform_4, window_bounds = array<i64: 128, 128>}, {pipeline_mode = #tpu.pipeline_mode<synchronous>, transform_indices = @transform_5, window_bounds = array<i64: 1, 128>}, {transform_indices = @transform_6, window_bounds = array<i64: 8, 128>}]} {
    %c0_i32 = arith.constant 0 : i32
    %0 = arith.cmpi eq, %arg1, %c0_i32 : i32
    %1 = arith.extui %0 : i1 to i32
    %c0_i32_0 = arith.constant 0 : i32
    %2 = arith.cmpi ne, %1, %c0_i32_0 : i32
    scf.if %2 {
      %cst_85 = arith.constant 0.000000e+00 : f32
      %275 = vector.broadcast %cst_85 : f32 to vector<8x128xf32>
      %c0_86 = arith.constant 0 : index
      %c0_87 = arith.constant 0 : index
      %276 = vector.load %arg10[%c0_86, %c0_87] : memref<8x128xf32, #tpu.memory_space<vmem>>, vector<8x128xf32>
      tpu.vector_store %arg10[%c0_86, %c0_87], %275 {strides = array<i32>} : memref<8x128xf32, #tpu.memory_space<vmem>>, vector<8x128xf32>,
      %cst_88 = arith.constant 0.000000e+00 : f32
      %277 = vector.broadcast %cst_88 : f32 to vector<8x128xf32>
      %c0_89 = arith.constant 0 : index
      %c0_90 = arith.constant 0 : index
      %278 = vector.load %arg11[%c0_89, %c0_90] : memref<8x128xf32, #tpu.memory_space<vmem>>, vector<8x128xf32>
      tpu.vector_store %arg11[%c0_89, %c0_90], %277 {strides = array<i32>} : memref<8x128xf32, #tpu.memory_space<vmem>>, vector<8x128xf32>,
    } else {
    }
    %c0 = arith.constant 0 : index
    %c0_1 = arith.constant 0 : index
    %c0_2 = arith.constant 0 : index
    %3 = vector.load %arg2[%c0, %c0_1, %c0_2] : memref<8x8x16xbf16, #tpu.memory_space<vmem>>, vector<8x8x16xbf16>
    %4 = vector.shape_cast %3 : vector<8x8x16xbf16> to vector<64x16xbf16>
    %c0_3 = arith.constant 0 : index
    %c0_4 = arith.constant 0 : index
    %5 = vector.load %arg3[%c0_3, %c0_4] : memref<16x512xbf16, #tpu.memory_space<vmem>>, vector<16x512xbf16>
    %cst = arith.constant dense<0.000000e+00> : vector<64x512xf32>
    %6 = tpu.matmul %4, %5, %cst {dimension_numbers = #tpu.dot_dimension_numbers<[1], [0], [0], [1], [0, 0, 1, 1], [], []>} : vector<64x16xbf16>, vector<16x512xbf16>, vector<64x512xf32> -> vector<64x512xf32>
    %c0_5 = arith.constant 0 : index
    %c0_6 = arith.constant 0 : index
    %7 = vector.load %arg5[%c0_5, %c0_6] : memref<1x512xf32, #tpu.memory_space<vmem>>, vector<1x512xf32>
    %8 = vector.broadcast %7 : vector<1x512xf32> to vector<64x512xf32>
    %9 = arith.addf %6, %8 : vector<64x512xf32>
    %10 = vector.shape_cast %9 : vector<64x512xf32> to vector<8x8x512xf32>
    %c0_7 = arith.constant 0 : index
    %c0_8 = arith.constant 0 : index
    %c0_9 = arith.constant 0 : index
    %11 = vector.load %arg9[%c0_7, %c0_8, %c0_9] : memref<8x8x512xf32, #tpu.memory_space<vmem>>, vector<8x8x512xf32>
    tpu.vector_store %arg9[%c0_7, %c0_8, %c0_9], %10 {strides = array<i32>} : memref<8x8x512xf32, #tpu.memory_space<vmem>>, vector<8x8x512xf32>,
    %c0_10 = arith.constant 0 : index
    %c0_11 = arith.constant 0 : index
    %12 = vector.load %arg10[%c0_10, %c0_11] : memref<8x128xf32, #tpu.memory_space<vmem>>, vector<8x128xf32>
    %c0_12 = arith.constant 0 : index
    %c0_13 = arith.constant 0 : index
    %13 = vector.load %arg11[%c0_12, %c0_13] : memref<8x128xf32, #tpu.memory_space<vmem>>, vector<8x128xf32>
    %c0_i32_14 = arith.constant 0 : i32
    %14 = arith.index_cast %c0_i32_14 : i32 to index
    %c0_15 = arith.constant 0 : index
    %c0_16 = arith.constant 0 : index
    %15 = vector.load %arg9[%14, %c0_15, %c0_16] : memref<8x8x512xf32, #tpu.memory_space<vmem>>, vector<1x8x512xf32>
    %16 = vector.shape_cast %15 : vector<1x8x512xf32> to vector<8x512xf32>
    %17 = arith.truncf %12 : vector<8x128xf32> to vector<8x128xbf16>
    %c0_17 = arith.constant 0 : index
    %c0_18 = arith.constant 0 : index
    %18 = vector.load %arg4[%c0_17, %c0_18] : memref<128x512xbf16, #tpu.memory_space<vmem>>, vector<128x512xbf16>
    %cst_19 = arith.constant dense<0.000000e+00> : vector<8x512xf32>
    %19 = tpu.matmul %17, %18, %cst_19 {dimension_numbers = #tpu.dot_dimension_numbers<[1], [0], [0], [1], [0, 0, 1, 1], [], []>} : vector<8x128xbf16>, vector<128x512xbf16>, vector<8x512xf32> -> vector<8x512xf32>
    %20 = arith.addf %16, %19 : vector<8x512xf32>
    %21 = vector.extract_strided_slice %20 {offsets = [0, 0], sizes = [8, 128], strides = [1, 1]} : vector<8x512xf32> to vector<8x128xf32>
    %22 = arith.negf %21 : vector<8x128xf32>
    %23 = math.exp %22 : vector<8x128xf32>
    %cst_20 = arith.constant 1.000000e+00 : f32
    %24 = vector.broadcast %cst_20 : f32 to vector<8x128xf32>
    %25 = arith.addf %24, %23 : vector<8x128xf32>
    %26 = arith.divf %24, %25 : vector<8x128xf32>
    %27 = vector.extract_strided_slice %20 {offsets = [0, 128], sizes = [8, 128], strides = [1, 1]} : vector<8x512xf32> to vector<8x128xf32>
    %28 = arith.negf %27 : vector<8x128xf32>
    %29 = math.exp %28 : vector<8x128xf32>
    %cst_21 = arith.constant 1.000000e+00 : f32
    %30 = vector.broadcast %cst_21 : f32 to vector<8x128xf32>
    %31 = arith.addf %30, %29 : vector<8x128xf32>
    %32 = arith.divf %30, %31 : vector<8x128xf32>
    %33 = vector.extract_strided_slice %20 {offsets = [0, 256], sizes = [8, 128], strides = [1, 1]} : vector<8x512xf32> to vector<8x128xf32>
    %34 = math.tanh %33 : vector<8x128xf32>
    %35 = vector.extract_strided_slice %20 {offsets = [0, 384], sizes = [8, 128], strides = [1, 1]} : vector<8x512xf32> to vector<8x128xf32>
    %36 = arith.negf %35 : vector<8x128xf32>
    %37 = math.exp %36 : vector<8x128xf32>
    %cst_22 = arith.constant 1.000000e+00 : f32
    %38 = vector.broadcast %cst_22 : f32 to vector<8x128xf32>
    %39 = arith.addf %38, %37 : vector<8x128xf32>
    %40 = arith.divf %38, %39 : vector<8x128xf32>
    %41 = arith.mulf %32, %13 : vector<8x128xf32>
    %42 = arith.mulf %26, %34 : vector<8x128xf32>
    %43 = arith.addf %41, %42 : vector<8x128xf32>
    %44 = math.tanh %43 : vector<8x128xf32>
    %45 = arith.mulf %40, %44 : vector<8x128xf32>
    %c1_i32 = arith.constant 1 : i32
    %46 = arith.index_cast %c1_i32 : i32 to index
    %c0_23 = arith.constant 0 : index
    %c0_24 = arith.constant 0 : index
    %47 = vector.load %arg9[%46, %c0_23, %c0_24] : memref<8x8x512xf32, #tpu.memory_space<vmem>>, vector<1x8x512xf32>
    %48 = vector.shape_cast %47 : vector<1x8x512xf32> to vector<8x512xf32>
    %49 = arith.truncf %45 : vector<8x128xf32> to vector<8x128xbf16>
    %c0_25 = arith.constant 0 : index
    %c0_26 = arith.constant 0 : index
    %50 = vector.load %arg4[%c0_25, %c0_26] : memref<128x512xbf16, #tpu.memory_space<vmem>>, vector<128x512xbf16>
    %cst_27 = arith.constant dense<0.000000e+00> : vector<8x512xf32>
    %51 = tpu.matmul %49, %50, %cst_27 {dimension_numbers = #tpu.dot_dimension_numbers<[1], [0], [0], [1], [0, 0, 1, 1], [], []>} : vector<8x128xbf16>, vector<128x512xbf16>, vector<8x512xf32> -> vector<8x512xf32>
    %52 = arith.addf %48, %51 : vector<8x512xf32>
    %53 = vector.extract_strided_slice %52 {offsets = [0, 0], sizes = [8, 128], strides = [1, 1]} : vector<8x512xf32> to vector<8x128xf32>
    %54 = arith.negf %53 : vector<8x128xf32>
    %55 = math.exp %54 : vector<8x128xf32>
    %cst_28 = arith.constant 1.000000e+00 : f32
    %56 = vector.broadcast %cst_28 : f32 to vector<8x128xf32>
    %57 = arith.addf %56, %55 : vector<8x128xf32>
    %58 = arith.divf %56, %57 : vector<8x128xf32>
    %59 = vector.extract_strided_slice %52 {offsets = [0, 128], sizes = [8, 128], strides = [1, 1]} : vector<8x512xf32> to vector<8x128xf32>
    %60 = arith.negf %59 : vector<8x128xf32>
    %61 = math.exp %60 : vector<8x128xf32>
    %cst_29 = arith.constant 1.000000e+00 : f32
    %62 = vector.broadcast %cst_29 : f32 to vector<8x128xf32>
    %63 = arith.addf %62, %61 : vector<8x128xf32>
    %64 = arith.divf %62, %63 : vector<8x128xf32>
    %65 = vector.extract_strided_slice %52 {offsets = [0, 256], sizes = [8, 128], strides = [1, 1]} : vector<8x512xf32> to vector<8x128xf32>
    %66 = math.tanh %65 : vector<8x128xf32>
    %67 = vector.extract_strided_slice %52 {offsets = [0, 384], sizes = [8, 128], strides = [1, 1]} : vector<8x512xf32> to vector<8x128xf32>
    %68 = arith.negf %67 : vector<8x128xf32>
    %69 = math.exp %68 : vector<8x128xf32>
    %cst_30 = arith.constant 1.000000e+00 : f32
    %70 = vector.broadcast %cst_30 : f32 to vector<8x128xf32>
    %71 = arith.addf %70, %69 : vector<8x128xf32>
    %72 = arith.divf %70, %71 : vector<8x128xf32>
    %73 = arith.mulf %64, %43 : vector<8x128xf32>
    %74 = arith.mulf %58, %66 : vector<8x128xf32>
    %75 = arith.addf %73, %74 : vector<8x128xf32>
    %76 = math.tanh %75 : vector<8x128xf32>
    %77 = arith.mulf %72, %76 : vector<8x128xf32>
    %c2_i32 = arith.constant 2 : i32
    %78 = arith.index_cast %c2_i32 : i32 to index
    %c0_31 = arith.constant 0 : index
    %c0_32 = arith.constant 0 : index
    %79 = vector.load %arg9[%78, %c0_31, %c0_32] : memref<8x8x512xf32, #tpu.memory_space<vmem>>, vector<1x8x512xf32>
    %80 = vector.shape_cast %79 : vector<1x8x512xf32> to vector<8x512xf32>
    %81 = arith.truncf %77 : vector<8x128xf32> to vector<8x128xbf16>
    %c0_33 = arith.constant 0 : index
    %c0_34 = arith.constant 0 : index
    %82 = vector.load %arg4[%c0_33, %c0_34] : memref<128x512xbf16, #tpu.memory_space<vmem>>, vector<128x512xbf16>
    %cst_35 = arith.constant dense<0.000000e+00> : vector<8x512xf32>
    %83 = tpu.matmul %81, %82, %cst_35 {dimension_numbers = #tpu.dot_dimension_numbers<[1], [0], [0], [1], [0, 0, 1, 1], [], []>} : vector<8x128xbf16>, vector<128x512xbf16>, vector<8x512xf32> -> vector<8x512xf32>
    %84 = arith.addf %80, %83 : vector<8x512xf32>
    %85 = vector.extract_strided_slice %84 {offsets = [0, 0], sizes = [8, 128], strides = [1, 1]} : vector<8x512xf32> to vector<8x128xf32>
    %86 = arith.negf %85 : vector<8x128xf32>
    %87 = math.exp %86 : vector<8x128xf32>
    %cst_36 = arith.constant 1.000000e+00 : f32
    %88 = vector.broadcast %cst_36 : f32 to vector<8x128xf32>
    %89 = arith.addf %88, %87 : vector<8x128xf32>
    %90 = arith.divf %88, %89 : vector<8x128xf32>
    %91 = vector.extract_strided_slice %84 {offsets = [0, 128], sizes = [8, 128], strides = [1, 1]} : vector<8x512xf32> to vector<8x128xf32>
    %92 = arith.negf %91 : vector<8x128xf32>
    %93 = math.exp %92 : vector<8x128xf32>
    %cst_37 = arith.constant 1.000000e+00 : f32
    %94 = vector.broadcast %cst_37 : f32 to vector<8x128xf32>
    %95 = arith.addf %94, %93 : vector<8x128xf32>
    %96 = arith.divf %94, %95 : vector<8x128xf32>
    %97 = vector.extract_strided_slice %84 {offsets = [0, 256], sizes = [8, 128], strides = [1, 1]} : vector<8x512xf32> to vector<8x128xf32>
    %98 = math.tanh %97 : vector<8x128xf32>
    %99 = vector.extract_strided_slice %84 {offsets = [0, 384], sizes = [8, 128], strides = [1, 1]} : vector<8x512xf32> to vector<8x128xf32>
    %100 = arith.negf %99 : vector<8x128xf32>
    %101 = math.exp %100 : vector<8x128xf32>
    %cst_38 = arith.constant 1.000000e+00 : f32
    %102 = vector.broadcast %cst_38 : f32 to vector<8x128xf32>
    %103 = arith.addf %102, %101 : vector<8x128xf32>
    %104 = arith.divf %102, %103 : vector<8x128xf32>
    %105 = arith.mulf %96, %75 : vector<8x128xf32>
    %106 = arith.mulf %90, %98 : vector<8x128xf32>
    %107 = arith.addf %105, %106 : vector<8x128xf32>
    %108 = math.tanh %107 : vector<8x128xf32>
    %109 = arith.mulf %104, %108 : vector<8x128xf32>
    %c3_i32 = arith.constant 3 : i32
    %110 = arith.index_cast %c3_i32 : i32 to index
    %c0_39 = arith.constant 0 : index
    %c0_40 = arith.constant 0 : index
    %111 = vector.load %arg9[%110, %c0_39, %c0_40] : memref<8x8x512xf32, #tpu.memory_space<vmem>>, vector<1x8x512xf32>
    %112 = vector.shape_cast %111 : vector<1x8x512xf32> to vector<8x512xf32>
    %113 = arith.truncf %109 : vector<8x128xf32> to vector<8x128xbf16>
    %c0_41 = arith.constant 0 : index
    %c0_42 = arith.constant 0 : index
    %114 = vector.load %arg4[%c0_41, %c0_42] : memref<128x512xbf16, #tpu.memory_space<vmem>>, vector<128x512xbf16>
    %cst_43 = arith.constant dense<0.000000e+00> : vector<8x512xf32>
    %115 = tpu.matmul %113, %114, %cst_43 {dimension_numbers = #tpu.dot_dimension_numbers<[1], [0], [0], [1], [0, 0, 1, 1], [], []>} : vector<8x128xbf16>, vector<128x512xbf16>, vector<8x512xf32> -> vector<8x512xf32>
    %116 = arith.addf %112, %115 : vector<8x512xf32>
    %117 = vector.extract_strided_slice %116 {offsets = [0, 0], sizes = [8, 128], strides = [1, 1]} : vector<8x512xf32> to vector<8x128xf32>
    %118 = arith.negf %117 : vector<8x128xf32>
    %119 = math.exp %118 : vector<8x128xf32>
    %cst_44 = arith.constant 1.000000e+00 : f32
    %120 = vector.broadcast %cst_44 : f32 to vector<8x128xf32>
    %121 = arith.addf %120, %119 : vector<8x128xf32>
    %122 = arith.divf %120, %121 : vector<8x128xf32>
    %123 = vector.extract_strided_slice %116 {offsets = [0, 128], sizes = [8, 128], strides = [1, 1]} : vector<8x512xf32> to vector<8x128xf32>
    %124 = arith.negf %123 : vector<8x128xf32>
    %125 = math.exp %124 : vector<8x128xf32>
    %cst_45 = arith.constant 1.000000e+00 : f32
    %126 = vector.broadcast %cst_45 : f32 to vector<8x128xf32>
    %127 = arith.addf %126, %125 : vector<8x128xf32>
    %128 = arith.divf %126, %127 : vector<8x128xf32>
    %129 = vector.extract_strided_slice %116 {offsets = [0, 256], sizes = [8, 128], strides = [1, 1]} : vector<8x512xf32> to vector<8x128xf32>
    %130 = math.tanh %129 : vector<8x128xf32>
    %131 = vector.extract_strided_slice %116 {offsets = [0, 384], sizes = [8, 128], strides = [1, 1]} : vector<8x512xf32> to vector<8x128xf32>
    %132 = arith.negf %131 : vector<8x128xf32>
    %133 = math.exp %132 : vector<8x128xf32>
    %cst_46 = arith.constant 1.000000e+00 : f32
    %134 = vector.broadcast %cst_46 : f32 to vector<8x128xf32>
    %135 = arith.addf %134, %133 : vector<8x128xf32>
    %136 = arith.divf %134, %135 : vector<8x128xf32>
    %137 = arith.mulf %128, %107 : vector<8x128xf32>
    %138 = arith.mulf %122, %130 : vector<8x128xf32>
    %139 = arith.addf %137, %138 : vector<8x128xf32>
    %140 = math.tanh %139 : vector<8x128xf32>
    %141 = arith.mulf %136, %140 : vector<8x128xf32>
    %c4_i32 = arith.constant 4 : i32
    %142 = arith.index_cast %c4_i32 : i32 to index
    %c0_47 = arith.constant 0 : index
    %c0_48 = arith.constant 0 : index
    %143 = vector.load %arg9[%142, %c0_47, %c0_48] : memref<8x8x512xf32, #tpu.memory_space<vmem>>, vector<1x8x512xf32>
    %144 = vector.shape_cast %143 : vector<1x8x512xf32> to vector<8x512xf32>
    %145 = arith.truncf %141 : vector<8x128xf32> to vector<8x128xbf16>
    %c0_49 = arith.constant 0 : index
    %c0_50 = arith.constant 0 : index
    %146 = vector.load %arg4[%c0_49, %c0_50] : memref<128x512xbf16, #tpu.memory_space<vmem>>, vector<128x512xbf16>
    %cst_51 = arith.constant dense<0.000000e+00> : vector<8x512xf32>
    %147 = tpu.matmul %145, %146, %cst_51 {dimension_numbers = #tpu.dot_dimension_numbers<[1], [0], [0], [1], [0, 0, 1, 1], [], []>} : vector<8x128xbf16>, vector<128x512xbf16>, vector<8x512xf32> -> vector<8x512xf32>
    %148 = arith.addf %144, %147 : vector<8x512xf32>
    %149 = vector.extract_strided_slice %148 {offsets = [0, 0], sizes = [8, 128], strides = [1, 1]} : vector<8x512xf32> to vector<8x128xf32>
    %150 = arith.negf %149 : vector<8x128xf32>
    %151 = math.exp %150 : vector<8x128xf32>
    %cst_52 = arith.constant 1.000000e+00 : f32
    %152 = vector.broadcast %cst_52 : f32 to vector<8x128xf32>
    %153 = arith.addf %152, %151 : vector<8x128xf32>
    %154 = arith.divf %152, %153 : vector<8x128xf32>
    %155 = vector.extract_strided_slice %148 {offsets = [0, 128], sizes = [8, 128], strides = [1, 1]} : vector<8x512xf32> to vector<8x128xf32>
    %156 = arith.negf %155 : vector<8x128xf32>
    %157 = math.exp %156 : vector<8x128xf32>
    %cst_53 = arith.constant 1.000000e+00 : f32
    %158 = vector.broadcast %cst_53 : f32 to vector<8x128xf32>
    %159 = arith.addf %158, %157 : vector<8x128xf32>
    %160 = arith.divf %158, %159 : vector<8x128xf32>
    %161 = vector.extract_strided_slice %148 {offsets = [0, 256], sizes = [8, 128], strides = [1, 1]} : vector<8x512xf32> to vector<8x128xf32>
    %162 = math.tanh %161 : vector<8x128xf32>
    %163 = vector.extract_strided_slice %148 {offsets = [0, 384], sizes = [8, 128], strides = [1, 1]} : vector<8x512xf32> to vector<8x128xf32>
    %164 = arith.negf %163 : vector<8x128xf32>
    %165 = math.exp %164 : vector<8x128xf32>
    %cst_54 = arith.constant 1.000000e+00 : f32
    %166 = vector.broadcast %cst_54 : f32 to vector<8x128xf32>
    %167 = arith.addf %166, %165 : vector<8x128xf32>
    %168 = arith.divf %166, %167 : vector<8x128xf32>
    %169 = arith.mulf %160, %139 : vector<8x128xf32>
    %170 = arith.mulf %154, %162 : vector<8x128xf32>
    %171 = arith.addf %169, %170 : vector<8x128xf32>
    %172 = math.tanh %171 : vector<8x128xf32>
    %173 = arith.mulf %168, %172 : vector<8x128xf32>
    %c5_i32 = arith.constant 5 : i32
    %174 = arith.index_cast %c5_i32 : i32 to index
    %c0_55 = arith.constant 0 : index
    %c0_56 = arith.constant 0 : index
    %175 = vector.load %arg9[%174, %c0_55, %c0_56] : memref<8x8x512xf32, #tpu.memory_space<vmem>>, vector<1x8x512xf32>
    %176 = vector.shape_cast %175 : vector<1x8x512xf32> to vector<8x512xf32>
    %177 = arith.truncf %173 : vector<8x128xf32> to vector<8x128xbf16>
    %c0_57 = arith.constant 0 : index
    %c0_58 = arith.constant 0 : index
    %178 = vector.load %arg4[%c0_57, %c0_58] : memref<128x512xbf16, #tpu.memory_space<vmem>>, vector<128x512xbf16>
    %cst_59 = arith.constant dense<0.000000e+00> : vector<8x512xf32>
    %179 = tpu.matmul %177, %178, %cst_59 {dimension_numbers = #tpu.dot_dimension_numbers<[1], [0], [0], [1], [0, 0, 1, 1], [], []>} : vector<8x128xbf16>, vector<128x512xbf16>, vector<8x512xf32> -> vector<8x512xf32>
    %180 = arith.addf %176, %179 : vector<8x512xf32>
    %181 = vector.extract_strided_slice %180 {offsets = [0, 0], sizes = [8, 128], strides = [1, 1]} : vector<8x512xf32> to vector<8x128xf32>
    %182 = arith.negf %181 : vector<8x128xf32>
    %183 = math.exp %182 : vector<8x128xf32>
    %cst_60 = arith.constant 1.000000e+00 : f32
    %184 = vector.broadcast %cst_60 : f32 to vector<8x128xf32>
    %185 = arith.addf %184, %183 : vector<8x128xf32>
    %186 = arith.divf %184, %185 : vector<8x128xf32>
    %187 = vector.extract_strided_slice %180 {offsets = [0, 128], sizes = [8, 128], strides = [1, 1]} : vector<8x512xf32> to vector<8x128xf32>
    %188 = arith.negf %187 : vector<8x128xf32>
    %189 = math.exp %188 : vector<8x128xf32>
    %cst_61 = arith.constant 1.000000e+00 : f32
    %190 = vector.broadcast %cst_61 : f32 to vector<8x128xf32>
    %191 = arith.addf %190, %189 : vector<8x128xf32>
    %192 = arith.divf %190, %191 : vector<8x128xf32>
    %193 = vector.extract_strided_slice %180 {offsets = [0, 256], sizes = [8, 128], strides = [1, 1]} : vector<8x512xf32> to vector<8x128xf32>
    %194 = math.tanh %193 : vector<8x128xf32>
    %195 = vector.extract_strided_slice %180 {offsets = [0, 384], sizes = [8, 128], strides = [1, 1]} : vector<8x512xf32> to vector<8x128xf32>
    %196 = arith.negf %195 : vector<8x128xf32>
    %197 = math.exp %196 : vector<8x128xf32>
    %cst_62 = arith.constant 1.000000e+00 : f32
    %198 = vector.broadcast %cst_62 : f32 to vector<8x128xf32>
    %199 = arith.addf %198, %197 : vector<8x128xf32>
    %200 = arith.divf %198, %199 : vector<8x128xf32>
    %201 = arith.mulf %192, %171 : vector<8x128xf32>
    %202 = arith.mulf %186, %194 : vector<8x128xf32>
    %203 = arith.addf %201, %202 : vector<8x128xf32>
    %204 = math.tanh %203 : vector<8x128xf32>
    %205 = arith.mulf %200, %204 : vector<8x128xf32>
    %c6_i32 = arith.constant 6 : i32
    %206 = arith.index_cast %c6_i32 : i32 to index
    %c0_63 = arith.constant 0 : index
    %c0_64 = arith.constant 0 : index
    %207 = vector.load %arg9[%206, %c0_63, %c0_64] : memref<8x8x512xf32, #tpu.memory_space<vmem>>, vector<1x8x512xf32>
    %208 = vector.shape_cast %207 : vector<1x8x512xf32> to vector<8x512xf32>
    %209 = arith.truncf %205 : vector<8x128xf32> to vector<8x128xbf16>
    %c0_65 = arith.constant 0 : index
    %c0_66 = arith.constant 0 : index
    %210 = vector.load %arg4[%c0_65, %c0_66] : memref<128x512xbf16, #tpu.memory_space<vmem>>, vector<128x512xbf16>
    %cst_67 = arith.constant dense<0.000000e+00> : vector<8x512xf32>
    %211 = tpu.matmul %209, %210, %cst_67 {dimension_numbers = #tpu.dot_dimension_numbers<[1], [0], [0], [1], [0, 0, 1, 1], [], []>} : vector<8x128xbf16>, vector<128x512xbf16>, vector<8x512xf32> -> vector<8x512xf32>
    %212 = arith.addf %208, %211 : vector<8x512xf32>
    %213 = vector.extract_strided_slice %212 {offsets = [0, 0], sizes = [8, 128], strides = [1, 1]} : vector<8x512xf32> to vector<8x128xf32>
    %214 = arith.negf %213 : vector<8x128xf32>
    %215 = math.exp %214 : vector<8x128xf32>
    %cst_68 = arith.constant 1.000000e+00 : f32
    %216 = vector.broadcast %cst_68 : f32 to vector<8x128xf32>
    %217 = arith.addf %216, %215 : vector<8x128xf32>
    %218 = arith.divf %216, %217 : vector<8x128xf32>
    %219 = vector.extract_strided_slice %212 {offsets = [0, 128], sizes = [8, 128], strides = [1, 1]} : vector<8x512xf32> to vector<8x128xf32>
    %220 = arith.negf %219 : vector<8x128xf32>
    %221 = math.exp %220 : vector<8x128xf32>
    %cst_69 = arith.constant 1.000000e+00 : f32
    %222 = vector.broadcast %cst_69 : f32 to vector<8x128xf32>
    %223 = arith.addf %222, %221 : vector<8x128xf32>
    %224 = arith.divf %222, %223 : vector<8x128xf32>
    %225 = vector.extract_strided_slice %212 {offsets = [0, 256], sizes = [8, 128], strides = [1, 1]} : vector<8x512xf32> to vector<8x128xf32>
    %226 = math.tanh %225 : vector<8x128xf32>
    %227 = vector.extract_strided_slice %212 {offsets = [0, 384], sizes = [8, 128], strides = [1, 1]} : vector<8x512xf32> to vector<8x128xf32>
    %228 = arith.negf %227 : vector<8x128xf32>
    %229 = math.exp %228 : vector<8x128xf32>
    %cst_70 = arith.constant 1.000000e+00 : f32
    %230 = vector.broadcast %cst_70 : f32 to vector<8x128xf32>
    %231 = arith.addf %230, %229 : vector<8x128xf32>
    %232 = arith.divf %230, %231 : vector<8x128xf32>
    %233 = arith.mulf %224, %203 : vector<8x128xf32>
    %234 = arith.mulf %218, %226 : vector<8x128xf32>
    %235 = arith.addf %233, %234 : vector<8x128xf32>
    %236 = math.tanh %235 : vector<8x128xf32>
    %237 = arith.mulf %232, %236 : vector<8x128xf32>
    %c7_i32 = arith.constant 7 : i32
    %238 = arith.index_cast %c7_i32 : i32 to index
    %c0_71 = arith.constant 0 : index
    %c0_72 = arith.constant 0 : index
    %239 = vector.load %arg9[%238, %c0_71, %c0_72] : memref<8x8x512xf32, #tpu.memory_space<vmem>>, vector<1x8x512xf32>
    %240 = vector.shape_cast %239 : vector<1x8x512xf32> to vector<8x512xf32>
    %241 = arith.truncf %237 : vector<8x128xf32> to vector<8x128xbf16>
    %c0_73 = arith.constant 0 : index
    %c0_74 = arith.constant 0 : index
    %242 = vector.load %arg4[%c0_73, %c0_74] : memref<128x512xbf16, #tpu.memory_space<vmem>>, vector<128x512xbf16>
    %cst_75 = arith.constant dense<0.000000e+00> : vector<8x512xf32>
    %243 = tpu.matmul %241, %242, %cst_75 {dimension_numbers = #tpu.dot_dimension_numbers<[1], [0], [0], [1], [0, 0, 1, 1], [], []>} : vector<8x128xbf16>, vector<128x512xbf16>, vector<8x512xf32> -> vector<8x512xf32>
    %244 = arith.addf %240, %243 : vector<8x512xf32>
    %245 = vector.extract_strided_slice %244 {offsets = [0, 0], sizes = [8, 128], strides = [1, 1]} : vector<8x512xf32> to vector<8x128xf32>
    %246 = arith.negf %245 : vector<8x128xf32>
    %247 = math.exp %246 : vector<8x128xf32>
    %cst_76 = arith.constant 1.000000e+00 : f32
    %248 = vector.broadcast %cst_76 : f32 to vector<8x128xf32>
    %249 = arith.addf %248, %247 : vector<8x128xf32>
    %250 = arith.divf %248, %249 : vector<8x128xf32>
    %251 = vector.extract_strided_slice %244 {offsets = [0, 128], sizes = [8, 128], strides = [1, 1]} : vector<8x512xf32> to vector<8x128xf32>
    %252 = arith.negf %251 : vector<8x128xf32>
    %253 = math.exp %252 : vector<8x128xf32>
    %cst_77 = arith.constant 1.000000e+00 : f32
    %254 = vector.broadcast %cst_77 : f32 to vector<8x128xf32>
    %255 = arith.addf %254, %253 : vector<8x128xf32>
    %256 = arith.divf %254, %255 : vector<8x128xf32>
    %257 = vector.extract_strided_slice %244 {offsets = [0, 256], sizes = [8, 128], strides = [1, 1]} : vector<8x512xf32> to vector<8x128xf32>
    %258 = math.tanh %257 : vector<8x128xf32>
    %259 = vector.extract_strided_slice %244 {offsets = [0, 384], sizes = [8, 128], strides = [1, 1]} : vector<8x512xf32> to vector<8x128xf32>
    %260 = arith.negf %259 : vector<8x128xf32>
    %261 = math.exp %260 : vector<8x128xf32>
    %cst_78 = arith.constant 1.000000e+00 : f32
    %262 = vector.broadcast %cst_78 : f32 to vector<8x128xf32>
    %263 = arith.addf %262, %261 : vector<8x128xf32>
    %264 = arith.divf %262, %263 : vector<8x128xf32>
    %265 = arith.mulf %256, %235 : vector<8x128xf32>
    %266 = arith.mulf %250, %258 : vector<8x128xf32>
    %267 = arith.addf %265, %266 : vector<8x128xf32>
    %268 = math.tanh %267 : vector<8x128xf32>
    %269 = arith.mulf %264, %268 : vector<8x128xf32>
    %c8_i32 = arith.constant 8 : i32
    %c0_79 = arith.constant 0 : index
    %c0_80 = arith.constant 0 : index
    %270 = vector.load %arg10[%c0_79, %c0_80] : memref<8x128xf32, #tpu.memory_space<vmem>>, vector<8x128xf32>
    tpu.vector_store %arg10[%c0_79, %c0_80], %269 {strides = array<i32>} : memref<8x128xf32, #tpu.memory_space<vmem>>, vector<8x128xf32>,
    %c0_81 = arith.constant 0 : index
    %c0_82 = arith.constant 0 : index
    %271 = vector.load %arg11[%c0_81, %c0_82] : memref<8x128xf32, #tpu.memory_space<vmem>>, vector<8x128xf32>
    tpu.vector_store %arg11[%c0_81, %c0_82], %267 {strides = array<i32>} : memref<8x128xf32, #tpu.memory_space<vmem>>, vector<8x128xf32>,
    %c0_i32_83 = arith.constant 0 : i32
    %272 = arith.cmpi eq, %arg1, %c0_i32_83 : i32
    %273 = arith.extui %272 : i1 to i32
    %c0_i32_84 = arith.constant 0 : i32
    %274 = arith.cmpi ne, %273, %c0_i32_84 : i32
    scf.if %274 {
      %c0_85 = arith.constant 0 : index
      %c0_86 = arith.constant 0 : index
      %275 = vector.load %arg6[%c0_85, %c0_86] : memref<128x128xf32, #tpu.memory_space<vmem>>, vector<128x128xf32>
      %cst_87 = arith.constant dense<0.000000e+00> : vector<8x128xf32>
      %276 = tpu.matmul %269, %275, %cst_87 {dimension_numbers = #tpu.dot_dimension_numbers<[1], [0], [0], [1], [0, 0, 1, 1], [], []>} : vector<8x128xf32>, vector<128x128xf32>, vector<8x128xf32> -> vector<8x128xf32>
      %c0_88 = arith.constant 0 : index
      %c0_89 = arith.constant 0 : index
      %277 = vector.load %arg7[%c0_88, %c0_89] : memref<1x128xf32, #tpu.memory_space<vmem>>, vector<1x128xf32>
      %278 = vector.broadcast %277 : vector<1x128xf32> to vector<8x128xf32>
      %279 = arith.addf %276, %278 : vector<8x128xf32>
      %280 = arith.negf %279 : vector<8x128xf32>
      %281 = math.exp %280 : vector<8x128xf32>
      %cst_90 = arith.constant 1.000000e+00 : f32
      %282 = vector.broadcast %cst_90 : f32 to vector<8x128xf32>
      %283 = arith.addf %282, %281 : vector<8x128xf32>
      %284 = arith.divf %282, %283 : vector<8x128xf32>
      %c0_91 = arith.constant 0 : index
      %c0_92 = arith.constant 0 : index
      %285 = vector.load %arg8[%c0_91, %c0_92] : memref<8x128xf32, #tpu.memory_space<vmem>>, vector<8x128xf32>
      tpu.vector_store %arg8[%c0_91, %c0_92], %284 {strides = array<i32>} : memref<8x128xf32, #tpu.memory_space<vmem>>, vector<8x128xf32>,
    } else {
    }
    return
  }
  func.func @transform_0(%arg0: i32, %arg1: i32) -> (i32, i32, i32) {
    %c0_i32 = arith.constant 0 : i32
    %c0_i32_0 = arith.constant 0 : i32
    return %arg1, %arg0, %c0_i32 : i32, i32, i32
  }
  func.func @transform_1(%arg0: i32, %arg1: i32) -> (i32, i32) {
    %c0_i32 = arith.constant 0 : i32
    %c0_i32_0 = arith.constant 0 : i32
    %c0_i32_1 = arith.constant 0 : i32
    return %c0_i32, %c0_i32_0 : i32, i32
  }
  func.func @transform_2(%arg0: i32, %arg1: i32) -> (i32, i32) {
    %c0_i32 = arith.constant 0 : i32
    %c0_i32_0 = arith.constant 0 : i32
    %c0_i32_1 = arith.constant 0 : i32
    return %c0_i32, %c0_i32_0 : i32, i32
  }
  func.func @transform_3(%arg0: i32, %arg1: i32) -> (i32, i32) {
    %c0_i32 = arith.constant 0 : i32
    %c0_i32_0 = arith.constant 0 : i32
    %c0_i32_1 = arith.constant 0 : i32
    return %c0_i32, %c0_i32_0 : i32, i32
  }
  func.func @transform_4(%arg0: i32, %arg1: i32) -> (i32, i32) {
    %c0_i32 = arith.constant 0 : i32
    %c0_i32_0 = arith.constant 0 : i32
    %c0_i32_1 = arith.constant 0 : i32
    return %c0_i32, %c0_i32_0 : i32, i32
  }
  func.func @transform_5(%arg0: i32, %arg1: i32) -> (i32, i32) {
    %c0_i32 = arith.constant 0 : i32
    %c0_i32_0 = arith.constant 0 : i32
    %c0_i32_1 = arith.constant 0 : i32
    return %c0_i32, %c0_i32_0 : i32, i32
  }
  func.func @transform_6(%arg0: i32, %arg1: i32) -> (i32, i32) {
    %c0_i32 = arith.constant 0 : i32
    %c0_i32_0 = arith.constant 0 : i32
    return %arg0, %c0_i32 : i32, i32
  }
}

</mosaic_0001>

<llo_original>
// kernel: tpu_custom_call.1
$region0: #{tpu_custom_call.1}
  #allocation0 [shape = 'u32[]', space=smem, size = 0x4, offset = 0x4, fixed_abs, tag = 'smem constant byte address 0x4 - core index']
  #allocation1 [shape = 'u32[144,128]{1,0:T(1,128)}', space=vmem, size = 0x12000, scoped, tag = 'internal scratch']
  #allocation2 [shape = 'f32[8,8,512]{2,1,0:T(8,128)}', space=vmem, size = 0x20000, scoped, tag = 'scratch operand']
  #allocation3 [shape = 'f32[8,128]{1,0:T(8,128)}', space=vmem, size = 0x1000, scoped, tag = 'scratch operand']
  #allocation4 [shape = 'f32[8,128]{1,0:T(8,128)}', space=vmem, size = 0x1000, scoped, tag = 'scratch operand']
  %s0 = inlined_call_operand.hbm [shape: bf16[8,8,16], index: 0, kind: input, shape index: {}]
  %s1 = inlined_call_operand.hbm [shape: bf16[16,512], index: 1, kind: input, shape index: {}]
  %s2 = inlined_call_operand.hbm [shape: bf16[128,512], index: 2, kind: input, shape index: {}]
  %s3 = inlined_call_operand.vmem [shape: f32[1,512], index: 3, kind: input, shape index: {}]
  %s4 = inlined_call_operand.hbm [shape: f32[128,128], index: 4, kind: input, shape index: {}]
  %s5 = inlined_call_operand.vmem [shape: f32[1,128], index: 5, kind: input, shape index: {}]
  %s6 = inlined_call_operand.hbm [shape: f32[8,128], index: 6, kind: output, shape index: {}]
  %s7 = sld [smem:[#allocation0]]
  $region58: #{tpu_custom_call.1} parent=0
    _
  %s9 = ssub.s32 1, %s7
  %s10 = scalar_select 0, %s9, %s7
  $region1: #{tpu_custom_call.1} parent=0
    #allocation5 [shape = 'u8[16384]{0}', space=vmem, size = 0x4000, scoped, tag = 'input window, operand 0, single buffered']
    #allocation6 [shape = 's32[1]{0}', space=sflag, size = 0x4, scoped, tag = 'scoped memory for tpu_custom_call.1']
    #allocation7 [shape = 's32[1]{0}', space=sflag, size = 0x4, scoped, tag = 'scoped memory for tpu_custom_call.1']
    #allocation8 [shape = 'u8[16384]{0}', space=vmem, size = 0x4000, scoped, tag = 'input window, operand 1, single buffered']
    #allocation9 [shape = 's32[1]{0}', space=sflag, size = 0x4, scoped, tag = 'scoped memory for tpu_custom_call.1']
    #allocation10 [shape = 'u8[131072]{0}', space=vmem, size = 0x20000, scoped, tag = 'input window, operand 2, single buffered']
    #allocation11 [shape = 'u8[65536]{0}', space=vmem, size = 0x10000, scoped, tag = 'input window, operand 4, single buffered']
    #allocation12 [shape = 's32[1]{0}', space=sflag, size = 0x4, scoped, tag = 'scoped memory for tpu_custom_call.1']
    #allocation13 [shape = 'u8[4096]{0}', space=vmem, size = 0x1000, scoped, tag = 'output window, operand 0, single buffered']
    %11 = vsyncpa [#allocation6], 0
    %12 = vsyncpa [#allocation9], 0
    %13 = vsyncpa [#allocation12], 0
    %14 = vsyncpa [#allocation7], 0
    // Predicated region
    $region2: #{tpu_custom_call.1} parent=1 // pred_check
      _
    $region3: #{tpu_custom_call.1} parent=1 // pred_check_branch
      %16 = sbr.rel (0) target = $region5
    $region4: #{tpu_custom_call.1} parent=1 // pred_region
      %s18 = ssub.s32 512, 512
      %19 = vsyncadd [#allocation6], %s18
      %s20 = sshll.u32 [#allocation5], 4
      %s21 = int_to_ptr.vmem [resolvable:$true] %s20
      %26 = dma.hbm_to_vmem [thread:$0]  %s0, 512, %s21, [#allocation6], 64, 64, 4
    $region5: #{tpu_custom_call.1} parent=1 // pred_fallthru
      _
    // Predicated region
    $region6: #{tpu_custom_call.1} parent=1 // pred_check
      _
    $region7: #{tpu_custom_call.1} parent=1 // pred_check_branch
      %28 = sbr.rel (0) target = $region9
    $region8: #{tpu_custom_call.1} parent=1 // pred_region
      %s30 = ssub.s32 512, 512
      %31 = vsyncadd [#allocation9], %s30
      %s32 = sshll.u32 [#allocation8], 4
      %s33 = int_to_ptr.vmem [resolvable:$true] %s32
      %38 = dma.hbm_to_vmem [thread:$0]  %s1, 512, %s33, [#allocation9], 256, 256, 16
    $region9: #{tpu_custom_call.1} parent=1 // pred_fallthru
      _
    // Predicated region
    $region10: #{tpu_custom_call.1} parent=1 // pred_check
      _
    $region11: #{tpu_custom_call.1} parent=1 // pred_check_branch
      %40 = sbr.rel (0) target = $region13
    $region12: #{tpu_custom_call.1} parent=1 // pred_region
      %s42 = ssub.s32 4096, 4096
      %43 = vsyncadd [#allocation9], %s42
      %s44 = sshll.u32 [#allocation10], 4
      %s45 = int_to_ptr.vmem [resolvable:$true] %s44
      %50 = dma.hbm_to_vmem [thread:$0]  %s2, 4096, %s45, [#allocation9], 256, 256, 16
    $region13: #{tpu_custom_call.1} parent=1 // pred_fallthru
      _
    // Predicated region
    $region14: #{tpu_custom_call.1} parent=1 // pred_check
      _
    $region15: #{tpu_custom_call.1} parent=1 // pred_check_branch
      %52 = sbr.rel (0) target = $region17
    $region16: #{tpu_custom_call.1} parent=1 // pred_region
      _
    $region17: #{tpu_custom_call.1} parent=1 // pred_fallthru
      _
    // Predicated region
    $region18: #{tpu_custom_call.1} parent=1 // pred_check
      _
    $region19: #{tpu_custom_call.1} parent=1 // pred_check_branch
      %54 = sbr.rel (0) target = $region21
    $region20: #{tpu_custom_call.1} parent=1 // pred_region
      %s56 = ssub.s32 2048, 2048
      %57 = vsyncadd [#allocation12], %s56
      %s58 = sshll.u32 [#allocation11], 4
      %s59 = int_to_ptr.vmem [resolvable:$true] %s58
      %64 = dma.hbm_to_vmem [thread:$0]  %s4, 2048, %s59, [#allocation12], 128, 128, 8
    $region21: #{tpu_custom_call.1} parent=1 // pred_fallthru
      _
    // Predicated region
    $region22: #{tpu_custom_call.1} parent=1 // pred_check
      _
    $region23: #{tpu_custom_call.1} parent=1 // pred_check_branch
      %66 = sbr.rel (0) target = $region25
    $region24: #{tpu_custom_call.1} parent=1 // pred_region
      _
    $region25: #{tpu_custom_call.1} parent=1 // pred_fallthru
      _
    // Predicated region
    $region26: #{tpu_custom_call.1} parent=1 // pred_check
      _
    $region27: #{tpu_custom_call.1} parent=1 // pred_check_branch
      %68 = sbr.rel (0) target = $region29
    $region28: #{tpu_custom_call.1} parent=1 // pred_region
      %69 = dma.done [#allocation6], 512
    $region29: #{tpu_custom_call.1} parent=1 // pred_fallthru
      _
    // Predicated region
    $region30: #{tpu_custom_call.1} parent=1 // pred_check
      _
    $region31: #{tpu_custom_call.1} parent=1 // pred_check_branch
      %71 = sbr.rel (0) target = $region33
    $region32: #{tpu_custom_call.1} parent=1 // pred_region
      %72 = dma.done [#allocation9], 512
    $region33: #{tpu_custom_call.1} parent=1 // pred_fallthru
      _
    // Predicated region
    $region34: #{tpu_custom_call.1} parent=1 // pred_check
      _
    $region35: #{tpu_custom_call.1} parent=1 // pred_check_branch
      %74 = sbr.rel (0) target = $region37
    $region36: #{tpu_custom_call.1} parent=1 // pred_region
      %75 = dma.done [#allocation9], 4096
    $region37: #{tpu_custom_call.1} parent=1 // pred_fallthru
      _
    // Predicated region
    $region38: #{tpu_custom_call.1} parent=1 // pred_check
      _
    $region39: #{tpu_custom_call.1} parent=1 // pred_check_branch
      %77 = sbr.rel (0) target = $region41
    $region40: #{tpu_custom_call.1} parent=1 // pred_region
      %78 = dma.done [#allocation12], 2048
    $region41: #{tpu_custom_call.1} parent=1 // pred_fallthru
      _
    %p80 = scmp.eq.s32.totalorder 0, 0
    // Predicated region
    $region42: #{tpu_custom_call.1} parent=1 // pred_check
      %p81 = pneg %p80
    $region43: #{tpu_custom_call.1} parent=1 // pred_check_branch
      %83 = sbr.rel (%p81) target = $region45
    $region44: #{tpu_custom_call.1} parent=1 // pred_region
      %84 = vst [vmem:[#allocation3] sm:$0xff] 0.0
      %85 = vst [vmem:[#allocation4] sm:$0xff] 0.0
    $region45: #{tpu_custom_call.1} parent=1 // pred_fallthru
      _
    %v86 = vld [vmem:[#allocation5] sm:$0xf]
    %v87 = vld [vmem:[#allocation5 + $0x4] sm:$0xf]
    %v88 = vld [vmem:[#allocation5 + $0x8] sm:$0xf]
    %v89 = vld [vmem:[#allocation5 + $0xc] sm:$0xf]
    %v90 = vld [vmem:[#allocation5 + $0x10] sm:$0xf]
    %v91 = vld [vmem:[#allocation5 + $0x14] sm:$0xf]
    %v92 = vld [vmem:[#allocation5 + $0x18] sm:$0xf]
    %v93 = vld [vmem:[#allocation5 + $0x1c] sm:$0xf]
    %v94 = vld [vmem:[#allocation8] sm:$0xff]
    %v95 = vld [vmem:[#allocation8 + $0x8] sm:$0xff]
    %v96 = vld [vmem:[#allocation8 + $0x10] sm:$0xff]
    %v97 = vld [vmem:[#allocation8 + $0x18] sm:$0xff]
    %v98 = vld [vmem:[%s3] sm:$0xf]
    %v100 = vlaneseq
    %v101 = vshrl.u32 %v100, 7
    %v102 = vsub.s32 0, %v101
    %v103 = vrot.slane %v98, %v102
    %v104 = vlaneseq
    %v105 = vshrl.u32 %v104, 7
    %v106 = vsub.s32 1, %v105
    %v107 = vrot.slane %v98, %v106
    %v108 = vlaneseq
    %v109 = vshrl.u32 %v108, 7
    %v110 = vsub.s32 2, %v109
    %v111 = vrot.slane %v98, %v110
    %v112 = vlaneseq
    %v113 = vshrl.u32 %v112, 7
    %v114 = vsub.s32 3, %v113
    %v115 = vrot.slane %v98, %v114
    %v128 = vunpack.c.l.b16 %v86
    %v129 = vunpack.c.l.b16 %v87
    %v130 = vunpack.c.l.b16 %v88
    %v131 = vunpack.c.l.b16 %v89
    %v132 = vunpack.c.l.b16 %v90
    %v133 = vunpack.c.l.b16 %v91
    %v134 = vunpack.c.l.b16 %v92
    %v135 = vunpack.c.l.b16 %v93
    %v136 = vpack.c.b16 %v129, %v128
    %v137 = vpack.c.b16 %v131, %v130
    %v138 = vpack.c.b16 %v133, %v132
    %v139 = vpack.c.b16 %v135, %v134
    %v144 = vunpack.c.l.b16 %v94
    %v145 = vunpack.c.h.b16 %v94
    %v146 = vunpack.c.l.b16 %v95
    %v147 = vunpack.c.h.b16 %v95
    %v148 = vunpack.c.l.b16 %v96
    %v149 = vunpack.c.h.b16 %v96
    %v150 = vunpack.c.l.b16 %v97
    %v151 = vunpack.c.h.b16 %v97
    %v152 = vpack.c.b16 %v148, %v144
    %v153 = vpack.c.b16 %v149, %v145
    %v154 = vpack.c.b16 %v150, %v146
    %v155 = vpack.c.b16 %v151, %v147
    %vm160 = vcmask 130048
    %v162 = vsel %vm160, %v136, 0
    %v165 = vsel %vm160, %v137, 0
    %v168 = vsel %vm160, %v138, 0
    %v171 = vsel %vm160, %v139, 0
    %173 = vmatprep.subr.bf16.mxu0 %v153
    %174 = vmatpush1.bf16.msra.mxu0 %v152
    %175 = vmatprep.subr.bf16.mxu0 0
    %176 = vmatpush1.bf16.msra.mxu0 0
    %177 = vmatprep.subr.bf16.mxu0 0
    %178 = vmatpush1.bf16.msra.mxu0 0
    %179 = vmatprep.subr.bf16.mxu0 0
    %180 = vmatpush1.bf16.msra.mxu0 0
    %181 = vmatprep.subr.bf16.mxu0 0
    %182 = vmatpush1.bf16.msra.mxu0 0
    %183 = vmatprep.subr.bf16.mxu0 0
    %184 = vmatpush1.bf16.msra.mxu0 0
    %185 = vmatprep.subr.bf16.mxu0 0
    %186 = vmatpush1.bf16.msra.mxu0 0
    %187 = vmatprep.subr.bf16.mxu0 0
    %188 = vmatpush1.bf16.msra.mxu0 0
    %189 = vmatprep.subr.bf16.mxu0 0
    %190 = vmatpush1.bf16.msra.mxu0 0
    %191 = vmatprep.subr.bf16.mxu0 0
    %192 = vmatpush1.bf16.msra.mxu0 0
    %193 = vmatprep.subr.bf16.mxu0 0
    %194 = vmatpush1.bf16.msra.mxu0 0
    %195 = vmatprep.subr.bf16.mxu0 0
    %196 = vmatpush1.bf16.msra.mxu0 0
    %197 = vmatprep.subr.bf16.mxu0 0
    %198 = vmatpush1.bf16.msra.mxu0 0
    %199 = vmatprep.subr.bf16.mxu0 0
    %200 = vmatpush1.bf16.msra.mxu0 0
    %201 = vmatprep.subr.bf16.mxu0 0
    %202 = vmatpush1.bf16.msra.mxu0 0
    %203 = vmatprep.subr.bf16.mxu0 0
    %204 = vmatpush1.bf16.msra.mxu0 0
    %205 = vmatprep.mubr.bf16.mxu0 0
    %206 = vmatmul.mubr.bf16.gmra.mrb[0].mxu0 %v162
    %v207 = vpop.f32.mrb[0].mxu0
    %v208 = vadd.f32 %v103, %v207
    %v209 = vpop.f32.mrb[0].mxu0
    %v210 = vadd.f32 %v107, %v209
    %v211 = vpop.f32.mrb[0].mxu0
    %v212 = vadd.f32 %v103, %v211
    %v213 = vpop.f32.mrb[0].mxu0
    %v214 = vadd.f32 %v107, %v213
    %215 = vmatprep.mubr.bf16.mxu0 0
    %216 = vmatmul.mubr.bf16.gmra.mrb[0].mxu0 %v165
    %v217 = vpop.f32.mrb[0].mxu0
    %v218 = vadd.f32 %v103, %v217
    %v219 = vpop.f32.mrb[0].mxu0
    %v220 = vadd.f32 %v107, %v219
    %v221 = vpop.f32.mrb[0].mxu0
    %v222 = vadd.f32 %v103, %v221
    %v223 = vpop.f32.mrb[0].mxu0
    %v224 = vadd.f32 %v107, %v223
    %225 = vmatprep.mubr.bf16.mxu0 0
    %226 = vmatmul.mubr.bf16.gmra.mrb[0].mxu0 %v168
    %v227 = vpop.f32.mrb[0].mxu0
    %v228 = vadd.f32 %v103, %v227
    %v229 = vpop.f32.mrb[0].mxu0
    %v230 = vadd.f32 %v107, %v229
    %v231 = vpop.f32.mrb[0].mxu0
    %v232 = vadd.f32 %v103, %v231
    %v233 = vpop.f32.mrb[0].mxu0
    %v234 = vadd.f32 %v107, %v233
    %235 = vmatprep.mubr.bf16.mxu0 0
    %236 = vmatmul.mubr.bf16.gmra.mrb[0].mxu0 %v171
    %v237 = vpop.f32.mrb[0].mxu0
    %v238 = vadd.f32 %v103, %v237
    %v239 = vpop.f32.mrb[0].mxu0
    %v240 = vadd.f32 %v107, %v239
    %v241 = vpop.f32.mrb[0].mxu0
    %v242 = vadd.f32 %v103, %v241
    %v243 = vpop.f32.mrb[0].mxu0
    %v244 = vadd.f32 %v107, %v243
    %245 = vdwg.mxu0
    %246 = vmatprep.subr.bf16.mxu0 %v155
    %247 = vmatpush1.bf16.msra.mxu0 %v154
    %248 = vmatprep.subr.bf16.mxu0 0
    %249 = vmatpush1.bf16.msra.mxu0 0
    %250 = vmatprep.subr.bf16.mxu0 0
    %251 = vmatpush1.bf16.msra.mxu0 0
    %252 = vmatprep.subr.bf16.mxu0 0
    %253 = vmatpush1.bf16.msra.mxu0 0
    %254 = vmatprep.subr.bf16.mxu0 0
    %255 = vmatpush1.bf16.msra.mxu0 0
    %256 = vmatprep.subr.bf16.mxu0 0
    %257 = vmatpush1.bf16.msra.mxu0 0
    %258 = vmatprep.subr.bf16.mxu0 0
    %259 = vmatpush1.bf16.msra.mxu0 0
    %260 = vmatprep.subr.bf16.mxu0 0
    %261 = vmatpush1.bf16.msra.mxu0 0
    %262 = vmatprep.subr.bf16.mxu0 0
    %263 = vmatpush1.bf16.msra.mxu0 0
    %264 = vmatprep.subr.bf16.mxu0 0
    %265 = vmatpush1.bf16.msra.mxu0 0
    %266 = vmatprep.subr.bf16.mxu0 0
    %267 = vmatpush1.bf16.msra.mxu0 0
    %268 = vmatprep.subr.bf16.mxu0 0
    %269 = vmatpush1.bf16.msra.mxu0 0
    %270 = vmatprep.subr.bf16.mxu0 0
    %271 = vmatpush1.bf16.msra.mxu0 0
    %272 = vmatprep.subr.bf16.mxu0 0
    %273 = vmatpush1.bf16.msra.mxu0 0
    %274 = vmatprep.subr.bf16.mxu0 0
    %275 = vmatpush1.bf16.msra.mxu0 0
    %276 = vmatprep.subr.bf16.mxu0 0
    %277 = vmatpush1.bf16.msra.mxu0 0
    %278 = vmatprep.mubr.bf16.mxu0 0
    %279 = vmatmul.mubr.bf16.gmra.mrb[0].mxu0 %v162
    %v280 = vpop.f32.mrb[0].mxu0
    %v281 = vadd.f32 %v111, %v280
    %v282 = vpop.f32.mrb[0].mxu0
    %v283 = vadd.f32 %v115, %v282
    %v284 = vpop.f32.mrb[0].mxu0
    %v285 = vadd.f32 %v111, %v284
    %v286 = vpop.f32.mrb[0].mxu0
    %v287 = vadd.f32 %v115, %v286
    %288 = vmatprep.mubr.bf16.mxu0 0
    %289 = vmatmul.mubr.bf16.gmra.mrb[0].mxu0 %v165
    %v290 = vpop.f32.mrb[0].mxu0
    %v291 = vadd.f32 %v111, %v290
    %v292 = vpop.f32.mrb[0].mxu0
    %v293 = vadd.f32 %v115, %v292
    %v294 = vpop.f32.mrb[0].mxu0
    %v295 = vadd.f32 %v111, %v294
    %v296 = vpop.f32.mrb[0].mxu0
    %v297 = vadd.f32 %v115, %v296
    %298 = vmatprep.mubr.bf16.mxu0 0
    %299 = vmatmul.mubr.bf16.gmra.mrb[0].mxu0 %v168
    %v300 = vpop.f32.mrb[0].mxu0
    %v301 = vadd.f32 %v111, %v300
    %v302 = vpop.f32.mrb[0].mxu0
    %v303 = vadd.f32 %v115, %v302
    %v304 = vpop.f32.mrb[0].mxu0
    %v305 = vadd.f32 %v111, %v304
    %v306 = vpop.f32.mrb[0].mxu0
    %v307 = vadd.f32 %v115, %v306
    %308 = vmatprep.mubr.bf16.mxu0 0
    %309 = vmatmul.mubr.bf16.gmra.mrb[0].mxu0 %v171
    %v310 = vpop.f32.mrb[0].mxu0
    %v311 = vadd.f32 %v111, %v310
    %v312 = vpop.f32.mrb[0].mxu0
    %v313 = vadd.f32 %v115, %v312
    %v314 = vpop.f32.mrb[0].mxu0
    %v315 = vadd.f32 %v111, %v314
    %v316 = vpop.f32.mrb[0].mxu0
    %v317 = vadd.f32 %v115, %v316
    %318 = vdwg.mxu0
    %319 = vst [vmem:[#allocation2] sm:$0xff] %v208
    %320 = vst [vmem:[#allocation2 + $0x8] sm:$0xff] %v210
    %321 = vst [vmem:[#allocation2 + $0x10] sm:$0xff] %v281
    %322 = vst [vmem:[#allocation2 + $0x18] sm:$0xff] %v283
    %323 = vst [vmem:[#allocation2 + $0x20] sm:$0xff] %v212
    %324 = vst [vmem:[#allocation2 + $0x28] sm:$0xff] %v214
    %325 = vst [vmem:[#allocation2 + $0x30] sm:$0xff] %v285
    %326 = vst [vmem:[#allocation2 + $0x38] sm:$0xff] %v287
    %327 = vst [vmem:[#allocation2 + $0x40] sm:$0xff] %v218
    %328 = vst [vmem:[#allocation2 + $0x48] sm:$0xff] %v220
    %329 = vst [vmem:[#allocation2 + $0x50] sm:$0xff] %v291
    %330 = vst [vmem:[#allocation2 + $0x58] sm:$0xff] %v293
    %331 = vst [vmem:[#allocation2 + $0x60] sm:$0xff] %v222
    %332 = vst [vmem:[#allocation2 + $0x68] sm:$0xff] %v224
    %333 = vst [vmem:[#allocation2 + $0x70] sm:$0xff] %v295
    %334 = vst [vmem:[#allocation2 + $0x78] sm:$0xff] %v297
    %335 = vst [vmem:[#allocation2 + $0x80] sm:$0xff] %v228
    %336 = vst [vmem:[#allocation2 + $0x88] sm:$0xff] %v230
    %337 = vst [vmem:[#allocation2 + $0x90] sm:$0xff] %v301
    %338 = vst [vmem:[#allocation2 + $0x98] sm:$0xff] %v303
    %339 = vst [vmem:[#allocation2 + $0xa0] sm:$0xff] %v232
    %340 = vst [vmem:[#allocation2 + $0xa8] sm:$0xff] %v234
    %341 = vst [vmem:[#allocation2 + $0xb0] sm:$0xff] %v305
    %342 = vst [vmem:[#allocation2 + $0xb8] sm:$0xff] %v307
    %343 = vst [vmem:[#allocation2 + $0xc0] sm:$0xff] %v238
    %344 = vst [vmem:[#allocation2 + $0xc8] sm:$0xff] %v240
    %345 = vst [vmem:[#allocation2 + $0xd0] sm:$0xff] %v311
    %346 = vst [vmem:[#allocation2 + $0xd8] sm:$0xff] %v313
    %347 = vst [vmem:[#allocation2 + $0xe0] sm:$0xff] %v242
    %348 = vst [vmem:[#allocation2 + $0xe8] sm:$0xff] %v244
    %349 = vst [vmem:[#allocation2 + $0xf0] sm:$0xff] %v315
    %350 = vst [vmem:[#allocation2 + $0xf8] sm:$0xff] %v317
    %v351 = vld [vmem:[#allocation3] sm:$0xff]
    %v352 = vld [vmem:[#allocation4] sm:$0xff]
    %v353 = vld [vmem:[#allocation2] sm:$0xff]
    %v354 = vld [vmem:[#allocation2 + $0x8] sm:$0xff]
    %v355 = vld [vmem:[#allocation2 + $0x10] sm:$0xff]
    %v356 = vld [vmem:[#allocation2 + $0x18] sm:$0xff]
    %v357 = vpack.c.bf16 %v351, %v351
    %v358 = vld [vmem:[#allocation10] sm:$0xff]
    %v359 = vld [vmem:[#allocation10 + $0x8] sm:$0xff]
    %v360 = vld [vmem:[#allocation10 + $0x10] sm:$0xff]
    %v361 = vld [vmem:[#allocation10 + $0x18] sm:$0xff]
    %v362 = vld [vmem:[#allocation10 + $0x20] sm:$0xff]
    %v363 = vld [vmem:[#allocation10 + $0x28] sm:$0xff]
    %v364 = vld [vmem:[#allocation10 + $0x30] sm:$0xff]
    %v365 = vld [vmem:[#allocation10 + $0x38] sm:$0xff]
    %v366 = vld [vmem:[#allocation10 + $0x40] sm:$0xff]
    %v367 = vld [vmem:[#allocation10 + $0x48] sm:$0xff]
    %v368 = vld [vmem:[#allocation10 + $0x50] sm:$0xff]
    %v369 = vld [vmem:[#allocation10 + $0x58] sm:$0xff]
    %v370 = vld [vmem:[#allocation10 + $0x60] sm:$0xff]
    %v371 = vld [vmem:[#allocation10 + $0x68] sm:$0xff]
    %v372 = vld [vmem:[#allocation10 + $0x70] sm:$0xff]
    %v373 = vld [vmem:[#allocation10 + $0x78] sm:$0xff]
    %v374 = vld [vmem:[#allocation10 + $0x80] sm:$0xff]
    %v375 = vld [vmem:[#allocation10 + $0x88] sm:$0xff]
    %v376 = vld [vmem:[#allocation10 + $0x90] sm:$0xff]
    %v377 = vld [vmem:[#allocation10 + $0x98] sm:$0xff]
    %v378 = vld [vmem:[#allocation10 + $0xa0] sm:$0xff]
    %v379 = vld [vmem:[#allocation10 + $0xa8] sm:$0xff]
    %v380 = vld [vmem:[#allocation10 + $0xb0] sm:$0xff]
    %v381 = vld [vmem:[#allocation10 + $0xb8] sm:$0xff]
    %v382 = vld [vmem:[#allocation10 + $0xc0] sm:$0xff]
    %v383 = vld [vmem:[#allocation10 + $0xc8] sm:$0xff]
    %v384 = vld [vmem:[#allocation10 + $0xd0] sm:$0xff]
    %v385 = vld [vmem:[#allocation10 + $0xd8] sm:$0xff]
    %v386 = vld [vmem:[#allocation10 + $0xe0] sm:$0xff]
    %v387 = vld [vmem:[#allocation10 + $0xe8] sm:$0xff]
    %v388 = vld [vmem:[#allocation10 + $0xf0] sm:$0xff]
    %v389 = vld [vmem:[#allocation10 + $0xf8] sm:$0xff]
    %v422 = vunpack.c.l.b16 %v358
    %v423 = vunpack.c.h.b16 %v358
    %v424 = vunpack.c.l.b16 %v359
    %v425 = vunpack.c.h.b16 %v359
    %v426 = vunpack.c.l.b16 %v360
    %v427 = vunpack.c.h.b16 %v360
    %v428 = vunpack.c.l.b16 %v361
    %v429 = vunpack.c.h.b16 %v361
    %v430 = vunpack.c.l.b16 %v362
    %v431 = vunpack.c.h.b16 %v362
    %v432 = vunpack.c.l.b16 %v363
    %v433 = vunpack.c.h.b16 %v363
    %v434 = vunpack.c.l.b16 %v364
    %v435 = vunpack.c.h.b16 %v364
    %v436 = vunpack.c.l.b16 %v365
    %v437 = vunpack.c.h.b16 %v365
    %v438 = vunpack.c.l.b16 %v366
    %v439 = vunpack.c.h.b16 %v366
    %v440 = vunpack.c.l.b16 %v367
    %v441 = vunpack.c.h.b16 %v367
    %v442 = vunpack.c.l.b16 %v368
    %v443 = vunpack.c.h.b16 %v368
    %v444 = vunpack.c.l.b16 %v369
    %v445 = vunpack.c.h.b16 %v369
    %v446 = vunpack.c.l.b16 %v370
    %v447 = vunpack.c.h.b16 %v370
    %v448 = vunpack.c.l.b16 %v371
    %v449 = vunpack.c.h.b16 %v371
    %v450 = vunpack.c.l.b16 %v372
    %v451 = vunpack.c.h.b16 %v372
    %v452 = vunpack.c.l.b16 %v373
    %v453 = vunpack.c.h.b16 %v373
    %v454 = vunpack.c.l.b16 %v374
    %v455 = vunpack.c.h.b16 %v374
    %v456 = vunpack.c.l.b16 %v375
    %v457 = vunpack.c.h.b16 %v375
    %v458 = vunpack.c.l.b16 %v376
    %v459 = vunpack.c.h.b16 %v376
    %v460 = vunpack.c.l.b16 %v377
    %v461 = vunpack.c.h.b16 %v377
    %v462 = vunpack.c.l.b16 %v378
    %v463 = vunpack.c.h.b16 %v378
    %v464 = vunpack.c.l.b16 %v379
    %v465 = vunpack.c.h.b16 %v379
    %v466 = vunpack.c.l.b16 %v380
    %v467 = vunpack.c.h.b16 %v380
    %v468 = vunpack.c.l.b16 %v381
    %v469 = vunpack.c.h.b16 %v381
    %v470 = vunpack.c.l.b16 %v382
    %v471 = vunpack.c.h.b16 %v382
    %v472 = vunpack.c.l.b16 %v383
    %v473 = vunpack.c.h.b16 %v383
    %v474 = vunpack.c.l.b16 %v384
    %v475 = vunpack.c.h.b16 %v384
    %v476 = vunpack.c.l.b16 %v385
    %v477 = vunpack.c.h.b16 %v385
    %v478 = vunpack.c.l.b16 %v386
    %v479 = vunpack.c.h.b16 %v386
    %v480 = vunpack.c.l.b16 %v387
    %v481 = vunpack.c.h.b16 %v387
    %v482 = vunpack.c.l.b16 %v388
    %v483 = vunpack.c.h.b16 %v388
    %v484 = vunpack.c.l.b16 %v389
    %v485 = vunpack.c.h.b16 %v389
    %v486 = vpack.c.b16 %v426, %v422
    %v487 = vpack.c.b16 %v427, %v423
    %v488 = vpack.c.b16 %v428, %v424
    %v489 = vpack.c.b16 %v429, %v425
    %v490 = vpack.c.b16 %v434, %v430
    %v491 = vpack.c.b16 %v435, %v431
    %v492 = vpack.c.b16 %v436, %v432
    %v493 = vpack.c.b16 %v437, %v433
    %v494 = vpack.c.b16 %v442, %v438
    %v495 = vpack.c.b16 %v443, %v439
    %v496 = vpack.c.b16 %v444, %v440
    %v497 = vpack.c.b16 %v445, %v441
    %v498 = vpack.c.b16 %v450, %v446
    %v499 = vpack.c.b16 %v451, %v447
    %v500 = vpack.c.b16 %v452, %v448
    %v501 = vpack.c.b16 %v453, %v449
    %v502 = vpack.c.b16 %v458, %v454
    %v503 = vpack.c.b16 %v459, %v455
    %v504 = vpack.c.b16 %v460, %v456
    %v505 = vpack.c.b16 %v461, %v457
    %v506 = vpack.c.b16 %v466, %v462
    %v507 = vpack.c.b16 %v467, %v463
    %v508 = vpack.c.b16 %v468, %v464
    %v509 = vpack.c.b16 %v469, %v465
    %v510 = vpack.c.b16 %v474, %v470
    %v511 = vpack.c.b16 %v475, %v471
    %v512 = vpack.c.b16 %v476, %v472
    %v513 = vpack.c.b16 %v477, %v473
    %v514 = vpack.c.b16 %v482, %v478
    %v515 = vpack.c.b16 %v483, %v479
    %v516 = vpack.c.b16 %v484, %v480
    %v517 = vpack.c.b16 %v485, %v481
    %550 = vmatprep.subr.bf16.mxu0 %v487
    %551 = vmatpush1.bf16.msra.mxu0 %v486
    %552 = vmatprep.subr.bf16.mxu0 %v491
    %553 = vmatpush1.bf16.msra.mxu0 %v490
    %554 = vmatprep.subr.bf16.mxu0 %v495
    %555 = vmatpush1.bf16.msra.mxu0 %v494
    %556 = vmatprep.subr.bf16.mxu0 %v499
    %557 = vmatpush1.bf16.msra.mxu0 %v498
    %558 = vmatprep.subr.bf16.mxu0 %v503
    %559 = vmatpush1.bf16.msra.mxu0 %v502
    %560 = vmatprep.subr.bf16.mxu0 %v507
    %561 = vmatpush1.bf16.msra.mxu0 %v506
    %562 = vmatprep.subr.bf16.mxu0 %v511
    %563 = vmatpush1.bf16.msra.mxu0 %v510
    %564 = vmatprep.subr.bf16.mxu0 %v515
    %565 = vmatpush1.bf16.msra.mxu0 %v514
    %566 = vmatprep.subr.bf16.mxu0 0
    %567 = vmatpush1.bf16.msra.mxu0 0
    %568 = vmatprep.subr.bf16.mxu0 0
    %569 = vmatpush1.bf16.msra.mxu0 0
    %570 = vmatprep.subr.bf16.mxu0 0
    %571 = vmatpush1.bf16.msra.mxu0 0
    %572 = vmatprep.subr.bf16.mxu0 0
    %573 = vmatpush1.bf16.msra.mxu0 0
    %574 = vmatprep.subr.bf16.mxu0 0
    %575 = vmatpush1.bf16.msra.mxu0 0
    %576 = vmatprep.subr.bf16.mxu0 0
    %577 = vmatpush1.bf16.msra.mxu0 0
    %578 = vmatprep.subr.bf16.mxu0 0
    %579 = vmatpush1.bf16.msra.mxu0 0
    %580 = vmatprep.subr.bf16.mxu0 0
    %581 = vmatpush1.bf16.msra.mxu0 0
    %582 = vmatprep.mubr.bf16.mxu0 0
    %583 = vmatmul.mubr.bf16.gmra.mrb[0].mxu0 %v357
    %v584 = vpop.f32.mrb[0].mxu0
    %v585 = vadd.f32 0.0, %v584
    %v586 = vpop.f32.mrb[0].mxu0
    %v587 = vadd.f32 0.0, %v586
    %v588 = vpop.f32.mrb[0].mxu0
    %v589 = vpop.f32.mrb[0].mxu0
    %590 = vdwg.mxu0
    %591 = vmatprep.subr.bf16.mxu0 %v489
    %592 = vmatpush1.bf16.msra.mxu0 %v488
    %593 = vmatprep.subr.bf16.mxu0 %v493
    %594 = vmatpush1.bf16.msra.mxu0 %v492
    %595 = vmatprep.subr.bf16.mxu0 %v497
    %596 = vmatpush1.bf16.msra.mxu0 %v496
    %597 = vmatprep.subr.bf16.mxu0 %v501
    %598 = vmatpush1.bf16.msra.mxu0 %v500
    %599 = vmatprep.subr.bf16.mxu0 %v505
    %600 = vmatpush1.bf16.msra.mxu0 %v504
    %601 = vmatprep.subr.bf16.mxu0 %v509
    %602 = vmatpush1.bf16.msra.mxu0 %v508
    %603 = vmatprep.subr.bf16.mxu0 %v513
    %604 = vmatpush1.bf16.msra.mxu0 %v512
    %605 = vmatprep.subr.bf16.mxu0 %v517
    %606 = vmatpush1.bf16.msra.mxu0 %v516
    %607 = vmatprep.subr.bf16.mxu0 0
    %608 = vmatpush1.bf16.msra.mxu0 0
    %609 = vmatprep.subr.bf16.mxu0 0
    %610 = vmatpush1.bf16.msra.mxu0 0
    %611 = vmatprep.subr.bf16.mxu0 0
    %612 = vmatpush1.bf16.msra.mxu0 0
    %613 = vmatprep.subr.bf16.mxu0 0
    %614 = vmatpush1.bf16.msra.mxu0 0
    %615 = vmatprep.subr.bf16.mxu0 0
    %616 = vmatpush1.bf16.msra.mxu0 0
    %617 = vmatprep.subr.bf16.mxu0 0
    %618 = vmatpush1.bf16.msra.mxu0 0
    %619 = vmatprep.subr.bf16.mxu0 0
    %620 = vmatpush1.bf16.msra.mxu0 0
    %621 = vmatprep.subr.bf16.mxu0 0
    %622 = vmatpush1.bf16.msra.mxu0 0
    %623 = vmatprep.mubr.bf16.mxu0 0
    %624 = vmatmul.mubr.bf16.gmra.mrb[0].mxu0 %v357
    %v625 = vpop.f32.mrb[0].mxu0
    %v626 = vadd.f32 0.0, %v625
    %v627 = vpop.f32.mrb[0].mxu0
    %v628 = vadd.f32 0.0, %v627
    %v629 = vpop.f32.mrb[0].mxu0
    %v630 = vpop.f32.mrb[0].mxu0
    %631 = vdwg.mxu0
    %v632 = vadd.f32 %v353, %v585
    %v633 = vadd.f32 %v354, %v587
    %v634 = vadd.f32 %v355, %v626
    %v635 = vadd.f32 %v356, %v628
    %v636 = vxor.u32 %v632, 2147483648
    %v637 = vmul.f32 %v636, 1.442695
    %v638 = vpow.pop %v637
    %v639 = vadd.f32 %v638, 1.0
    %v640 = vrcp.pop %v639
    %v641 = vmul.f32 1.0, %v640
    %v642 = vxor.u32 %v633, 2147483648
    %v643 = vmul.f32 %v642, 1.442695
    %v644 = vpow.pop %v643
    %v645 = vadd.f32 %v644, 1.0
    %v646 = vrcp.pop %v645
    %v647 = vmul.f32 1.0, %v646
    %v648 = vtanh.pop %v634
    %v649 = vxor.u32 %v635, 2147483648
    %v650 = vmul.f32 %v649, 1.442695
    %v651 = vpow.pop %v650
    %v652 = vadd.f32 %v651, 1.0
    %v653 = vrcp.pop %v652
    %v654 = vmul.f32 1.0, %v653
    %v655 = vmul.f32 %v647, %v352
    %v656 = vmul.f32 %v641, %v648
    %v657 = vadd.f32 %v655, %v656
    %v658 = vtanh.pop %v657
    %v659 = vmul.f32 %v654, %v658
    %s660 = scalar_lea.vmem [#allocation2], 32
    %v661 = vld [vmem:[%s660] sm:$0xff]
    %v662 = vld [vmem:[%s660 + $0x8] sm:$0xff]
    %v663 = vld [vmem:[%s660 + $0x10] sm:$0xff]
    %v664 = vld [vmem:[%s660 + $0x18] sm:$0xff]
    %v665 = vpack.c.bf16 %v659, %v659
    %666 = vmatprep.subr.bf16.mxu0 %v487
    %667 = vmatpush1.bf16.msra.mxu0 %v486
    %668 = vmatprep.subr.bf16.mxu0 %v491
    %669 = vmatpush1.bf16.msra.mxu0 %v490
    %670 = vmatprep.subr.bf16.mxu0 %v495
    %671 = vmatpush1.bf16.msra.mxu0 %v494
    %672 = vmatprep.subr.bf16.mxu0 %v499
    %673 = vmatpush1.bf16.msra.mxu0 %v498
    %674 = vmatprep.subr.bf16.mxu0 %v503
    %675 = vmatpush1.bf16.msra.mxu0 %v502
    %676 = vmatprep.subr.bf16.mxu0 %v507
    %677 = vmatpush1.bf16.msra.mxu0 %v506
    %678 = vmatprep.subr.bf16.mxu0 %v511
    %679 = vmatpush1.bf16.msra.mxu0 %v510
    %680 = vmatprep.subr.bf16.mxu0 %v515
    %681 = vmatpush1.bf16.msra.mxu0 %v514
    %682 = vmatprep.subr.bf16.mxu0 0
    %683 = vmatpush1.bf16.msra.mxu0 0
    %684 = vmatprep.subr.bf16.mxu0 0
    %685 = vmatpush1.bf16.msra.mxu0 0
    %686 = vmatprep.subr.bf16.mxu0 0
    %687 = vmatpush1.bf16.msra.mxu0 0
    %688 = vmatprep.subr.bf16.mxu0 0
    %689 = vmatpush1.bf16.msra.mxu0 0
    %690 = vmatprep.subr.bf16.mxu0 0
    %691 = vmatpush1.bf16.msra.mxu0 0
    %692 = vmatprep.subr.bf16.mxu0 0
    %693 = vmatpush1.bf16.msra.mxu0 0
    %694 = vmatprep.subr.bf16.mxu0 0
    %695 = vmatpush1.bf16.msra.mxu0 0
    %696 = vmatprep.subr.bf16.mxu0 0
    %697 = vmatpush1.bf16.msra.mxu0 0
    %698 = vmatprep.mubr.bf16.mxu0 0
    %699 = vmatmul.mubr.bf16.gmra.mrb[0].mxu0 %v665
    %v700 = vpop.f32.mrb[0].mxu0
    %v701 = vadd.f32 0.0, %v700
    %v702 = vpop.f32.mrb[0].mxu0
    %v703 = vadd.f32 0.0, %v702
    %v704 = vpop.f32.mrb[0].mxu0
    %v705 = vpop.f32.mrb[0].mxu0
    %706 = vdwg.mxu0
    %707 = vmatprep.subr.bf16.mxu0 %v489
    %708 = vmatpush1.bf16.msra.mxu0 %v488
    %709 = vmatprep.subr.bf16.mxu0 %v493
    %710 = vmatpush1.bf16.msra.mxu0 %v492
    %711 = vmatprep.subr.bf16.mxu0 %v497
    %712 = vmatpush1.bf16.msra.mxu0 %v496
    %713 = vmatprep.subr.bf16.mxu0 %v501
    %714 = vmatpush1.bf16.msra.mxu0 %v500
    %715 = vmatprep.subr.bf16.mxu0 %v505
    %716 = vmatpush1.bf16.msra.mxu0 %v504
    %717 = vmatprep.subr.bf16.mxu0 %v509
    %718 = vmatpush1.bf16.msra.mxu0 %v508
    %719 = vmatprep.subr.bf16.mxu0 %v513
    %720 = vmatpush1.bf16.msra.mxu0 %v512
    %721 = vmatprep.subr.bf16.mxu0 %v517
    %722 = vmatpush1.bf16.msra.mxu0 %v516
    %723 = vmatprep.subr.bf16.mxu0 0
    %724 = vmatpush1.bf16.msra.mxu0 0
    %725 = vmatprep.subr.bf16.mxu0 0
    %726 = vmatpush1.bf16.msra.mxu0 0
    %727 = vmatprep.subr.bf16.mxu0 0
    %728 = vmatpush1.bf16.msra.mxu0 0
    %729 = vmatprep.subr.bf16.mxu0 0
    %730 = vmatpush1.bf16.msra.mxu0 0
    %731 = vmatprep.subr.bf16.mxu0 0
    %732 = vmatpush1.bf16.msra.mxu0 0
    %733 = vmatprep.subr.bf16.mxu0 0
    %734 = vmatpush1.bf16.msra.mxu0 0
    %735 = vmatprep.subr.bf16.mxu0 0
    %736 = vmatpush1.bf16.msra.mxu0 0
    %737 = vmatprep.subr.bf16.mxu0 0
    %738 = vmatpush1.bf16.msra.mxu0 0
    %739 = vmatprep.mubr.bf16.mxu0 0
    %740 = vmatmul.mubr.bf16.gmra.mrb[0].mxu0 %v665
    %v741 = vpop.f32.mrb[0].mxu0
    %v742 = vadd.f32 0.0, %v741
    %v743 = vpop.f32.mrb[0].mxu0
    %v744 = vadd.f32 0.0, %v743
    %v745 = vpop.f32.mrb[0].mxu0
    %v746 = vpop.f32.mrb[0].mxu0
    %747 = vdwg.mxu0
    %v748 = vadd.f32 %v661, %v701
    %v749 = vadd.f32 %v662, %v703
    %v750 = vadd.f32 %v663, %v742
    %v751 = vadd.f32 %v664, %v744
    %v752 = vxor.u32 %v748, 2147483648
    %v753 = vmul.f32 %v752, 1.442695
    %v754 = vpow.pop %v753
    %v755 = vadd.f32 %v754, 1.0
    %v756 = vrcp.pop %v755
    %v757 = vmul.f32 1.0, %v756
    %v758 = vxor.u32 %v749, 2147483648
    %v759 = vmul.f32 %v758, 1.442695
    %v760 = vpow.pop %v759
    %v761 = vadd.f32 %v760, 1.0
    %v762 = vrcp.pop %v761
    %v763 = vmul.f32 1.0, %v762
    %v764 = vtanh.pop %v750
    %v765 = vxor.u32 %v751, 2147483648
    %v766 = vmul.f32 %v765, 1.442695
    %v767 = vpow.pop %v766
    %v768 = vadd.f32 %v767, 1.0
    %v769 = vrcp.pop %v768
    %v770 = vmul.f32 1.0, %v769
    %v771 = vmul.f32 %v763, %v657
    %v772 = vmul.f32 %v757, %v764
    %v773 = vadd.f32 %v771, %v772
    %v774 = vtanh.pop %v773
    %v775 = vmul.f32 %v770, %v774
    %s776 = scalar_lea.vmem [#allocation2], 64
    %v777 = vld [vmem:[%s776] sm:$0xff]
    %v778 = vld [vmem:[%s776 + $0x8] sm:$0xff]
    %v779 = vld [vmem:[%s776 + $0x10] sm:$0xff]
    %v780 = vld [vmem:[%s776 + $0x18] sm:$0xff]
    %v781 = vpack.c.bf16 %v775, %v775
    %782 = vmatprep.subr.bf16.mxu0 %v487
    %783 = vmatpush1.bf16.msra.mxu0 %v486
    %784 = vmatprep.subr.bf16.mxu0 %v491
    %785 = vmatpush1.bf16.msra.mxu0 %v490
    %786 = vmatprep.subr.bf16.mxu0 %v495
    %787 = vmatpush1.bf16.msra.mxu0 %v494
    %788 = vmatprep.subr.bf16.mxu0 %v499
    %789 = vmatpush1.bf16.msra.mxu0 %v498
    %790 = vmatprep.subr.bf16.mxu0 %v503
    %791 = vmatpush1.bf16.msra.mxu0 %v502
    %792 = vmatprep.subr.bf16.mxu0 %v507
    %793 = vmatpush1.bf16.msra.mxu0 %v506
    %794 = vmatprep.subr.bf16.mxu0 %v511
    %795 = vmatpush1.bf16.msra.mxu0 %v510
    %796 = vmatprep.subr.bf16.mxu0 %v515
    %797 = vmatpush1.bf16.msra.mxu0 %v514
    %798 = vmatprep.subr.bf16.mxu0 0
    %799 = vmatpush1.bf16.msra.mxu0 0
    %800 = vmatprep.subr.bf16.mxu0 0
    %801 = vmatpush1.bf16.msra.mxu0 0
    %802 = vmatprep.subr.bf16.mxu0 0
    %803 = vmatpush1.bf16.msra.mxu0 0
    %804 = vmatprep.subr.bf16.mxu0 0
    %805 = vmatpush1.bf16.msra.mxu0 0
    %806 = vmatprep.subr.bf16.mxu0 0
    %807 = vmatpush1.bf16.msra.mxu0 0
    %808 = vmatprep.subr.bf16.mxu0 0
    %809 = vmatpush1.bf16.msra.mxu0 0
    %810 = vmatprep.subr.bf16.mxu0 0
    %811 = vmatpush1.bf16.msra.mxu0 0
    %812 = vmatprep.subr.bf16.mxu0 0
    %813 = vmatpush1.bf16.msra.mxu0 0
    %814 = vmatprep.mubr.bf16.mxu0 0
    %815 = vmatmul.mubr.bf16.gmra.mrb[0].mxu0 %v781
    %v816 = vpop.f32.mrb[0].mxu0
    %v817 = vadd.f32 0.0, %v816
    %v818 = vpop.f32.mrb[0].mxu0
    %v819 = vadd.f32 0.0, %v818
    %v820 = vpop.f32.mrb[0].mxu0
    %v821 = vpop.f32.mrb[0].mxu0
    %822 = vdwg.mxu0
    %823 = vmatprep.subr.bf16.mxu0 %v489
    %824 = vmatpush1.bf16.msra.mxu0 %v488
    %825 = vmatprep.subr.bf16.mxu0 %v493
    %826 = vmatpush1.bf16.msra.mxu0 %v492
    %827 = vmatprep.subr.bf16.mxu0 %v497
    %828 = vmatpush1.bf16.msra.mxu0 %v496
    %829 = vmatprep.subr.bf16.mxu0 %v501
    %830 = vmatpush1.bf16.msra.mxu0 %v500
    %831 = vmatprep.subr.bf16.mxu0 %v505
    %832 = vmatpush1.bf16.msra.mxu0 %v504
    %833 = vmatprep.subr.bf16.mxu0 %v509
    %834 = vmatpush1.bf16.msra.mxu0 %v508
    %835 = vmatprep.subr.bf16.mxu0 %v513
    %836 = vmatpush1.bf16.msra.mxu0 %v512
    %837 = vmatprep.subr.bf16.mxu0 %v517
    %838 = vmatpush1.bf16.msra.mxu0 %v516
    %839 = vmatprep.subr.bf16.mxu0 0
    %840 = vmatpush1.bf16.msra.mxu0 0
    %841 = vmatprep.subr.bf16.mxu0 0
    %842 = vmatpush1.bf16.msra.mxu0 0
    %843 = vmatprep.subr.bf16.mxu0 0
    %844 = vmatpush1.bf16.msra.mxu0 0
    %845 = vmatprep.subr.bf16.mxu0 0
    %846 = vmatpush1.bf16.msra.mxu0 0
    %847 = vmatprep.subr.bf16.mxu0 0
    %848 = vmatpush1.bf16.msra.mxu0 0
    %849 = vmatprep.subr.bf16.mxu0 0
    %850 = vmatpush1.bf16.msra.mxu0 0
    %851 = vmatprep.subr.bf16.mxu0 0
    %852 = vmatpush1.bf16.msra.mxu0 0
    %853 = vmatprep.subr.bf16.mxu0 0
    %854 = vmatpush1.bf16.msra.mxu0 0
    %855 = vmatprep.mubr.bf16.mxu0 0
    %856 = vmatmul.mubr.bf16.gmra.mrb[0].mxu0 %v781
    %v857 = vpop.f32.mrb[0].mxu0
    %v858 = vadd.f32 0.0, %v857
    %v859 = vpop.f32.mrb[0].mxu0
    %v860 = vadd.f32 0.0, %v859
    %v861 = vpop.f32.mrb[0].mxu0
    %v862 = vpop.f32.mrb[0].mxu0
    %863 = vdwg.mxu0
    %v864 = vadd.f32 %v777, %v817
    %v865 = vadd.f32 %v778, %v819
    %v866 = vadd.f32 %v779, %v858
    %v867 = vadd.f32 %v780, %v860
    %v868 = vxor.u32 %v864, 2147483648
    %v869 = vmul.f32 %v868, 1.442695
    %v870 = vpow.pop %v869
    %v871 = vadd.f32 %v870, 1.0
    %v872 = vrcp.pop %v871
    %v873 = vmul.f32 1.0, %v872
    %v874 = vxor.u32 %v865, 2147483648
    %v875 = vmul.f32 %v874, 1.442695
    %v876 = vpow.pop %v875
    %v877 = vadd.f32 %v876, 1.0
    %v878 = vrcp.pop %v877
    %v879 = vmul.f32 1.0, %v878
    %v880 = vtanh.pop %v866
    %v881 = vxor.u32 %v867, 2147483648
    %v882 = vmul.f32 %v881, 1.442695
    %v883 = vpow.pop %v882
    %v884 = vadd.f32 %v883, 1.0
    %v885 = vrcp.pop %v884
    %v886 = vmul.f32 1.0, %v885
    %v887 = vmul.f32 %v879, %v773
    %v888 = vmul.f32 %v873, %v880
    %v889 = vadd.f32 %v887, %v888
    %v890 = vtanh.pop %v889
    %v891 = vmul.f32 %v886, %v890
    %s892 = scalar_lea.vmem [#allocation2], 96
    %v893 = vld [vmem:[%s892] sm:$0xff]
    %v894 = vld [vmem:[%s892 + $0x8] sm:$0xff]
    %v895 = vld [vmem:[%s892 + $0x10] sm:$0xff]
    %v896 = vld [vmem:[%s892 + $0x18] sm:$0xff]
    %v897 = vpack.c.bf16 %v891, %v891
    %898 = vmatprep.subr.bf16.mxu0 %v487
    %899 = vmatpush1.bf16.msra.mxu0 %v486
    %900 = vmatprep.subr.bf16.mxu0 %v491
    %901 = vmatpush1.bf16.msra.mxu0 %v490
    %902 = vmatprep.subr.bf16.mxu0 %v495
    %903 = vmatpush1.bf16.msra.mxu0 %v494
    %904 = vmatprep.subr.bf16.mxu0 %v499
    %905 = vmatpush1.bf16.msra.mxu0 %v498
    %906 = vmatprep.subr.bf16.mxu0 %v503
    %907 = vmatpush1.bf16.msra.mxu0 %v502
    %908 = vmatprep.subr.bf16.mxu0 %v507
    %909 = vmatpush1.bf16.msra.mxu0 %v506
    %910 = vmatprep.subr.bf16.mxu0 %v511
    %911 = vmatpush1.bf16.msra.mxu0 %v510
    %912 = vmatprep.subr.bf16.mxu0 %v515
    %913 = vmatpush1.bf16.msra.mxu0 %v514
    %914 = vmatprep.subr.bf16.mxu0 0
    %915 = vmatpush1.bf16.msra.mxu0 0
    %916 = vmatprep.subr.bf16.mxu0 0
    %917 = vmatpush1.bf16.msra.mxu0 0
    %918 = vmatprep.subr.bf16.mxu0 0
    %919 = vmatpush1.bf16.msra.mxu0 0
    %920 = vmatprep.subr.bf16.mxu0 0
    %921 = vmatpush1.bf16.msra.mxu0 0
    %922 = vmatprep.subr.bf16.mxu0 0
    %923 = vmatpush1.bf16.msra.mxu0 0
    %924 = vmatprep.subr.bf16.mxu0 0
    %925 = vmatpush1.bf16.msra.mxu0 0
    %926 = vmatprep.subr.bf16.mxu0 0
    %927 = vmatpush1.bf16.msra.mxu0 0
    %928 = vmatprep.subr.bf16.mxu0 0
    %929 = vmatpush1.bf16.msra.mxu0 0
    %930 = vmatprep.mubr.bf16.mxu0 0
    %931 = vmatmul.mubr.bf16.gmra.mrb[0].mxu0 %v897
    %v932 = vpop.f32.mrb[0].mxu0
    %v933 = vadd.f32 0.0, %v932
    %v934 = vpop.f32.mrb[0].mxu0
    %v935 = vadd.f32 0.0, %v934
    %v936 = vpop.f32.mrb[0].mxu0
    %v937 = vpop.f32.mrb[0].mxu0
    %938 = vdwg.mxu0
    %939 = vmatprep.subr.bf16.mxu0 %v489
    %940 = vmatpush1.bf16.msra.mxu0 %v488
    %941 = vmatprep.subr.bf16.mxu0 %v493
    %942 = vmatpush1.bf16.msra.mxu0 %v492
    %943 = vmatprep.subr.bf16.mxu0 %v497
    %944 = vmatpush1.bf16.msra.mxu0 %v496
    %945 = vmatprep.subr.bf16.mxu0 %v501
    %946 = vmatpush1.bf16.msra.mxu0 %v500
    %947 = vmatprep.subr.bf16.mxu0 %v505
    %948 = vmatpush1.bf16.msra.mxu0 %v504
    %949 = vmatprep.subr.bf16.mxu0 %v509
    %950 = vmatpush1.bf16.msra.mxu0 %v508
    %951 = vmatprep.subr.bf16.mxu0 %v513
    %952 = vmatpush1.bf16.msra.mxu0 %v512
    %953 = vmatprep.subr.bf16.mxu0 %v517
    %954 = vmatpush1.bf16.msra.mxu0 %v516
    %955 = vmatprep.subr.bf16.mxu0 0
    %956 = vmatpush1.bf16.msra.mxu0 0
    %957 = vmatprep.subr.bf16.mxu0 0
    %958 = vmatpush1.bf16.msra.mxu0 0
    %959 = vmatprep.subr.bf16.mxu0 0
    %960 = vmatpush1.bf16.msra.mxu0 0
    %961 = vmatprep.subr.bf16.mxu0 0
    %962 = vmatpush1.bf16.msra.mxu0 0
    %963 = vmatprep.subr.bf16.mxu0 0
    %964 = vmatpush1.bf16.msra.mxu0 0
    %965 = vmatprep.subr.bf16.mxu0 0
    %966 = vmatpush1.bf16.msra.mxu0 0
    %967 = vmatprep.subr.bf16.mxu0 0
    %968 = vmatpush1.bf16.msra.mxu0 0
    %969 = vmatprep.subr.bf16.mxu0 0
    %970 = vmatpush1.bf16.msra.mxu0 0
    %971 = vmatprep.mubr.bf16.mxu0 0
    %972 = vmatmul.mubr.bf16.gmra.mrb[0].mxu0 %v897
    %v973 = vpop.f32.mrb[0].mxu0
    %v974 = vadd.f32 0.0, %v973
    %v975 = vpop.f32.mrb[0].mxu0
    %v976 = vadd.f32 0.0, %v975
    %v977 = vpop.f32.mrb[0].mxu0
    %v978 = vpop.f32.mrb[0].mxu0
    %979 = vdwg.mxu0
    %v980 = vadd.f32 %v893, %v933
    %v981 = vadd.f32 %v894, %v935
    %v982 = vadd.f32 %v895, %v974
    %v983 = vadd.f32 %v896, %v976
    %v984 = vxor.u32 %v980, 2147483648
    %v985 = vmul.f32 %v984, 1.442695
    %v986 = vpow.pop %v985
    %v987 = vadd.f32 %v986, 1.0
    %v988 = vrcp.pop %v987
    %v989 = vmul.f32 1.0, %v988
    %v990 = vxor.u32 %v981, 2147483648
    %v991 = vmul.f32 %v990, 1.442695
    %v992 = vpow.pop %v991
    %v993 = vadd.f32 %v992, 1.0
    %v994 = vrcp.pop %v993
    %v995 = vmul.f32 1.0, %v994
    %v996 = vtanh.pop %v982
    %v997 = vxor.u32 %v983, 2147483648
    %v998 = vmul.f32 %v997, 1.442695
    %v999 = vpow.pop %v998
    %v1000 = vadd.f32 %v999, 1.0
    %v1001 = vrcp.pop %v1000
    %v1002 = vmul.f32 1.0, %v1001
    %v1003 = vmul.f32 %v995, %v889
    %v1004 = vmul.f32 %v989, %v996
    %v1005 = vadd.f32 %v1003, %v1004
    %v1006 = vtanh.pop %v1005
    %v1007 = vmul.f32 %v1002, %v1006
    %s1008 = scalar_lea.vmem [#allocation2], 128
    %v1009 = vld [vmem:[%s1008] sm:$0xff]
    %v1010 = vld [vmem:[%s1008 + $0x8] sm:$0xff]
    %v1011 = vld [vmem:[%s1008 + $0x10] sm:$0xff]
    %v1012 = vld [vmem:[%s1008 + $0x18] sm:$0xff]
    %v1013 = vpack.c.bf16 %v1007, %v1007
    %1014 = vmatprep.subr.bf16.mxu0 %v487
    %1015 = vmatpush1.bf16.msra.mxu0 %v486
    %1016 = vmatprep.subr.bf16.mxu0 %v491
    %1017 = vmatpush1.bf16.msra.mxu0 %v490
    %1018 = vmatprep.subr.bf16.mxu0 %v495
    %1019 = vmatpush1.bf16.msra.mxu0 %v494
    %1020 = vmatprep.subr.bf16.mxu0 %v499
    %1021 = vmatpush1.bf16.msra.mxu0 %v498
    %1022 = vmatprep.subr.bf16.mxu0 %v503
    %1023 = vmatpush1.bf16.msra.mxu0 %v502
    %1024 = vmatprep.subr.bf16.mxu0 %v507
    %1025 = vmatpush1.bf16.msra.mxu0 %v506
    %1026 = vmatprep.subr.bf16.mxu0 %v511
    %1027 = vmatpush1.bf16.msra.mxu0 %v510
    %1028 = vmatprep.subr.bf16.mxu0 %v515
    %1029 = vmatpush1.bf16.msra.mxu0 %v514
    %1030 = vmatprep.subr.bf16.mxu0 0
    %1031 = vmatpush1.bf16.msra.mxu0 0
    %1032 = vmatprep.subr.bf16.mxu0 0
    %1033 = vmatpush1.bf16.msra.mxu0 0
    %1034 = vmatprep.subr.bf16.mxu0 0
    %1035 = vmatpush1.bf16.msra.mxu0 0
    %1036 = vmatprep.subr.bf16.mxu0 0
    %1037 = vmatpush1.bf16.msra.mxu0 0
    %1038 = vmatprep.subr.bf16.mxu0 0
    %1039 = vmatpush1.bf16.msra.mxu0 0
    %1040 = vmatprep.subr.bf16.mxu0 0
    %1041 = vmatpush1.bf16.msra.mxu0 0
    %1042 = vmatprep.subr.bf16.mxu0 0
    %1043 = vmatpush1.bf16.msra.mxu0 0
    %1044 = vmatprep.subr.bf16.mxu0 0
    %1045 = vmatpush1.bf16.msra.mxu0 0
    %1046 = vmatprep.mubr.bf16.mxu0 0
    %1047 = vmatmul.mubr.bf16.gmra.mrb[0].mxu0 %v1013
    %v1048 = vpop.f32.mrb[0].mxu0
    %v1049 = vadd.f32 0.0, %v1048
    %v1050 = vpop.f32.mrb[0].mxu0
    %v1051 = vadd.f32 0.0, %v1050
    %v1052 = vpop.f32.mrb[0].mxu0
    %v1053 = vpop.f32.mrb[0].mxu0
    %1054 = vdwg.mxu0
    %1055 = vmatprep.subr.bf16.mxu0 %v489
    %1056 = vmatpush1.bf16.msra.mxu0 %v488
    %1057 = vmatprep.subr.bf16.mxu0 %v493
    %1058 = vmatpush1.bf16.msra.mxu0 %v492
    %1059 = vmatprep.subr.bf16.mxu0 %v497
    %1060 = vmatpush1.bf16.msra.mxu0 %v496
    %1061 = vmatprep.subr.bf16.mxu0 %v501
    %1062 = vmatpush1.bf16.msra.mxu0 %v500
    %1063 = vmatprep.subr.bf16.mxu0 %v505
    %1064 = vmatpush1.bf16.msra.mxu0 %v504
    %1065 = vmatprep.subr.bf16.mxu0 %v509
    %1066 = vmatpush1.bf16.msra.mxu0 %v508
    %1067 = vmatprep.subr.bf16.mxu0 %v513
    %1068 = vmatpush1.bf16.msra.mxu0 %v512
    %1069 = vmatprep.subr.bf16.mxu0 %v517
    %1070 = vmatpush1.bf16.msra.mxu0 %v516
    %1071 = vmatprep.subr.bf16.mxu0 0
    %1072 = vmatpush1.bf16.msra.mxu0 0
    %1073 = vmatprep.subr.bf16.mxu0 0
    %1074 = vmatpush1.bf16.msra.mxu0 0
    %1075 = vmatprep.subr.bf16.mxu0 0
    %1076 = vmatpush1.bf16.msra.mxu0 0
    %1077 = vmatprep.subr.bf16.mxu0 0
    %1078 = vmatpush1.bf16.msra.mxu0 0
    %1079 = vmatprep.subr.bf16.mxu0 0
    %1080 = vmatpush1.bf16.msra.mxu0 0
    %1081 = vmatprep.subr.bf16.mxu0 0
    %1082 = vmatpush1.bf16.msra.mxu0 0
    %1083 = vmatprep.subr.bf16.mxu0 0
    %1084 = vmatpush1.bf16.msra.mxu0 0
    %1085 = vmatprep.subr.bf16.mxu0 0
    %1086 = vmatpush1.bf16.msra.mxu0 0
    %1087 = vmatprep.mubr.bf16.mxu0 0
    %1088 = vmatmul.mubr.bf16.gmra.mrb[0].mxu0 %v1013
    %v1089 = vpop.f32.mrb[0].mxu0
    %v1090 = vadd.f32 0.0, %v1089
    %v1091 = vpop.f32.mrb[0].mxu0
    %v1092 = vadd.f32 0.0, %v1091
    %v1093 = vpop.f32.mrb[0].mxu0
    %v1094 = vpop.f32.mrb[0].mxu0
    %1095 = vdwg.mxu0
    %v1096 = vadd.f32 %v1009, %v1049
    %v1097 = vadd.f32 %v1010, %v1051
    %v1098 = vadd.f32 %v1011, %v1090
    %v1099 = vadd.f32 %v1012, %v1092
    %v1100 = vxor.u32 %v1096, 2147483648
    %v1101 = vmul.f32 %v1100, 1.442695
    %v1102 = vpow.pop %v1101
    %v1103 = vadd.f32 %v1102, 1.0
    %v1104 = vrcp.pop %v1103
    %v1105 = vmul.f32 1.0, %v1104
    %v1106 = vxor.u32 %v1097, 2147483648
    %v1107 = vmul.f32 %v1106, 1.442695
    %v1108 = vpow.pop %v1107
    %v1109 = vadd.f32 %v1108, 1.0
    %v1110 = vrcp.pop %v1109
    %v1111 = vmul.f32 1.0, %v1110
    %v1112 = vtanh.pop %v1098
    %v1113 = vxor.u32 %v1099, 2147483648
    %v1114 = vmul.f32 %v1113, 1.442695
    %v1115 = vpow.pop %v1114
    %v1116 = vadd.f32 %v1115, 1.0
    %v1117 = vrcp.pop %v1116
    %v1118 = vmul.f32 1.0, %v1117
    %v1119 = vmul.f32 %v1111, %v1005
    %v1120 = vmul.f32 %v1105, %v1112
    %v1121 = vadd.f32 %v1119, %v1120
    %v1122 = vtanh.pop %v1121
    %v1123 = vmul.f32 %v1118, %v1122
    %s1124 = scalar_lea.vmem [#allocation2], 160
    %v1125 = vld [vmem:[%s1124] sm:$0xff]
    %v1126 = vld [vmem:[%s1124 + $0x8] sm:$0xff]
    %v1127 = vld [vmem:[%s1124 + $0x10] sm:$0xff]
    %v1128 = vld [vmem:[%s1124 + $0x18] sm:$0xff]
    %v1129 = vpack.c.bf16 %v1123, %v1123
    %1130 = vmatprep.subr.bf16.mxu0 %v487
    %1131 = vmatpush1.bf16.msra.mxu0 %v486
    %1132 = vmatprep.subr.bf16.mxu0 %v491
    %1133 = vmatpush1.bf16.msra.mxu0 %v490
    %1134 = vmatprep.subr.bf16.mxu0 %v495
    %1135 = vmatpush1.bf16.msra.mxu0 %v494
    %1136 = vmatprep.subr.bf16.mxu0 %v499
    %1137 = vmatpush1.bf16.msra.mxu0 %v498
    %1138 = vmatprep.subr.bf16.mxu0 %v503
    %1139 = vmatpush1.bf16.msra.mxu0 %v502
    %1140 = vmatprep.subr.bf16.mxu0 %v507
    %1141 = vmatpush1.bf16.msra.mxu0 %v506
    %1142 = vmatprep.subr.bf16.mxu0 %v511
    %1143 = vmatpush1.bf16.msra.mxu0 %v510
    %1144 = vmatprep.subr.bf16.mxu0 %v515
    %1145 = vmatpush1.bf16.msra.mxu0 %v514
    %1146 = vmatprep.subr.bf16.mxu0 0
    %1147 = vmatpush1.bf16.msra.mxu0 0
    %1148 = vmatprep.subr.bf16.mxu0 0
    %1149 = vmatpush1.bf16.msra.mxu0 0
    %1150 = vmatprep.subr.bf16.mxu0 0
    %1151 = vmatpush1.bf16.msra.mxu0 0
    %1152 = vmatprep.subr.bf16.mxu0 0
    %1153 = vmatpush1.bf16.msra.mxu0 0
    %1154 = vmatprep.subr.bf16.mxu0 0
    %1155 = vmatpush1.bf16.msra.mxu0 0
    %1156 = vmatprep.subr.bf16.mxu0 0
    %1157 = vmatpush1.bf16.msra.mxu0 0
    %1158 = vmatprep.subr.bf16.mxu0 0
    %1159 = vmatpush1.bf16.msra.mxu0 0
    %1160 = vmatprep.subr.bf16.mxu0 0
    %1161 = vmatpush1.bf16.msra.mxu0 0
    %1162 = vmatprep.mubr.bf16.mxu0 0
    %1163 = vmatmul.mubr.bf16.gmra.mrb[0].mxu0 %v1129
    %v1164 = vpop.f32.mrb[0].mxu0
    %v1165 = vadd.f32 0.0, %v1164
    %v1166 = vpop.f32.mrb[0].mxu0
    %v1167 = vadd.f32 0.0, %v1166
    %v1168 = vpop.f32.mrb[0].mxu0
    %v1169 = vpop.f32.mrb[0].mxu0
    %1170 = vdwg.mxu0
    %1171 = vmatprep.subr.bf16.mxu0 %v489
    %1172 = vmatpush1.bf16.msra.mxu0 %v488
    %1173 = vmatprep.subr.bf16.mxu0 %v493
    %1174 = vmatpush1.bf16.msra.mxu0 %v492
    %1175 = vmatprep.subr.bf16.mxu0 %v497
    %1176 = vmatpush1.bf16.msra.mxu0 %v496
    %1177 = vmatprep.subr.bf16.mxu0 %v501
    %1178 = vmatpush1.bf16.msra.mxu0 %v500
    %1179 = vmatprep.subr.bf16.mxu0 %v505
    %1180 = vmatpush1.bf16.msra.mxu0 %v504
    %1181 = vmatprep.subr.bf16.mxu0 %v509
    %1182 = vmatpush1.bf16.msra.mxu0 %v508
    %1183 = vmatprep.subr.bf16.mxu0 %v513
    %1184 = vmatpush1.bf16.msra.mxu0 %v512
    %1185 = vmatprep.subr.bf16.mxu0 %v517
    %1186 = vmatpush1.bf16.msra.mxu0 %v516
    %1187 = vmatprep.subr.bf16.mxu0 0
    %1188 = vmatpush1.bf16.msra.mxu0 0
    %1189 = vmatprep.subr.bf16.mxu0 0
    %1190 = vmatpush1.bf16.msra.mxu0 0
    %1191 = vmatprep.subr.bf16.mxu0 0
    %1192 = vmatpush1.bf16.msra.mxu0 0
    %1193 = vmatprep.subr.bf16.mxu0 0
    %1194 = vmatpush1.bf16.msra.mxu0 0
    %1195 = vmatprep.subr.bf16.mxu0 0
    %1196 = vmatpush1.bf16.msra.mxu0 0
    %1197 = vmatprep.subr.bf16.mxu0 0
    %1198 = vmatpush1.bf16.msra.mxu0 0
    %1199 = vmatprep.subr.bf16.mxu0 0
    %1200 = vmatpush1.bf16.msra.mxu0 0
    %1201 = vmatprep.subr.bf16.mxu0 0
    %1202 = vmatpush1.bf16.msra.mxu0 0
    %1203 = vmatprep.mubr.bf16.mxu0 0
    %1204 = vmatmul.mubr.bf16.gmra.mrb[0].mxu0 %v1129
    %v1205 = vpop.f32.mrb[0].mxu0
    %v1206 = vadd.f32 0.0, %v1205
    %v1207 = vpop.f32.mrb[0].mxu0
    %v1208 = vadd.f32 0.0, %v1207
    %v1209 = vpop.f32.mrb[0].mxu0
    %v1210 = vpop.f32.mrb[0].mxu0
    %1211 = vdwg.mxu0
    %v1212 = vadd.f32 %v1125, %v1165
    %v1213 = vadd.f32 %v1126, %v1167
    %v1214 = vadd.f32 %v1127, %v1206
    %v1215 = vadd.f32 %v1128, %v1208
    %v1216 = vxor.u32 %v1212, 2147483648
    %v1217 = vmul.f32 %v1216, 1.442695
    %v1218 = vpow.pop %v1217
    %v1219 = vadd.f32 %v1218, 1.0
    %v1220 = vrcp.pop %v1219
    %v1221 = vmul.f32 1.0, %v1220
    %v1222 = vxor.u32 %v1213, 2147483648
    %v1223 = vmul.f32 %v1222, 1.442695
    %v1224 = vpow.pop %v1223
    %v1225 = vadd.f32 %v1224, 1.0
    %v1226 = vrcp.pop %v1225
    %v1227 = vmul.f32 1.0, %v1226
    %v1228 = vtanh.pop %v1214
    %v1229 = vxor.u32 %v1215, 2147483648
    %v1230 = vmul.f32 %v1229, 1.442695
    %v1231 = vpow.pop %v1230
    %v1232 = vadd.f32 %v1231, 1.0
    %v1233 = vrcp.pop %v1232
    %v1234 = vmul.f32 1.0, %v1233
    %v1235 = vmul.f32 %v1227, %v1121
    %v1236 = vmul.f32 %v1221, %v1228
    %v1237 = vadd.f32 %v1235, %v1236
    %v1238 = vtanh.pop %v1237
    %v1239 = vmul.f32 %v1234, %v1238
    %s1240 = scalar_lea.vmem [#allocation2], 192
    %v1241 = vld [vmem:[%s1240] sm:$0xff]
    %v1242 = vld [vmem:[%s1240 + $0x8] sm:$0xff]
    %v1243 = vld [vmem:[%s1240 + $0x10] sm:$0xff]
    %v1244 = vld [vmem:[%s1240 + $0x18] sm:$0xff]
    %v1245 = vpack.c.bf16 %v1239, %v1239
    %1246 = vmatprep.subr.bf16.mxu0 %v487
    %1247 = vmatpush1.bf16.msra.mxu0 %v486
    %1248 = vmatprep.subr.bf16.mxu0 %v491
    %1249 = vmatpush1.bf16.msra.mxu0 %v490
    %1250 = vmatprep.subr.bf16.mxu0 %v495
    %1251 = vmatpush1.bf16.msra.mxu0 %v494
    %1252 = vmatprep.subr.bf16.mxu0 %v499
    %1253 = vmatpush1.bf16.msra.mxu0 %v498
    %1254 = vmatprep.subr.bf16.mxu0 %v503
    %1255 = vmatpush1.bf16.msra.mxu0 %v502
    %1256 = vmatprep.subr.bf16.mxu0 %v507
    %1257 = vmatpush1.bf16.msra.mxu0 %v506
    %1258 = vmatprep.subr.bf16.mxu0 %v511
    %1259 = vmatpush1.bf16.msra.mxu0 %v510
    %1260 = vmatprep.subr.bf16.mxu0 %v515
    %1261 = vmatpush1.bf16.msra.mxu0 %v514
    %1262 = vmatprep.subr.bf16.mxu0 0
    %1263 = vmatpush1.bf16.msra.mxu0 0
    %1264 = vmatprep.subr.bf16.mxu0 0
    %1265 = vmatpush1.bf16.msra.mxu0 0
    %1266 = vmatprep.subr.bf16.mxu0 0
    %1267 = vmatpush1.bf16.msra.mxu0 0
    %1268 = vmatprep.subr.bf16.mxu0 0
    %1269 = vmatpush1.bf16.msra.mxu0 0
    %1270 = vmatprep.subr.bf16.mxu0 0
    %1271 = vmatpush1.bf16.msra.mxu0 0
    %1272 = vmatprep.subr.bf16.mxu0 0
    %1273 = vmatpush1.bf16.msra.mxu0 0
    %1274 = vmatprep.subr.bf16.mxu0 0
    %1275 = vmatpush1.bf16.msra.mxu0 0
    %1276 = vmatprep.subr.bf16.mxu0 0
    %1277 = vmatpush1.bf16.msra.mxu0 0
    %1278 = vmatprep.mubr.bf16.mxu0 0
    %1279 = vmatmul.mubr.bf16.gmra.mrb[0].mxu0 %v1245
    %v1280 = vpop.f32.mrb[0].mxu0
    %v1281 = vadd.f32 0.0, %v1280
    %v1282 = vpop.f32.mrb[0].mxu0
    %v1283 = vadd.f32 0.0, %v1282
    %v1284 = vpop.f32.mrb[0].mxu0
    %v1285 = vpop.f32.mrb[0].mxu0
    %1286 = vdwg.mxu0
    %1287 = vmatprep.subr.bf16.mxu0 %v489
    %1288 = vmatpush1.bf16.msra.mxu0 %v488
    %1289 = vmatprep.subr.bf16.mxu0 %v493
    %1290 = vmatpush1.bf16.msra.mxu0 %v492
    %1291 = vmatprep.subr.bf16.mxu0 %v497
    %1292 = vmatpush1.bf16.msra.mxu0 %v496
    %1293 = vmatprep.subr.bf16.mxu0 %v501
    %1294 = vmatpush1.bf16.msra.mxu0 %v500
    %1295 = vmatprep.subr.bf16.mxu0 %v505
    %1296 = vmatpush1.bf16.msra.mxu0 %v504
    %1297 = vmatprep.subr.bf16.mxu0 %v509
    %1298 = vmatpush1.bf16.msra.mxu0 %v508
    %1299 = vmatprep.subr.bf16.mxu0 %v513
    %1300 = vmatpush1.bf16.msra.mxu0 %v512
    %1301 = vmatprep.subr.bf16.mxu0 %v517
    %1302 = vmatpush1.bf16.msra.mxu0 %v516
    %1303 = vmatprep.subr.bf16.mxu0 0
    %1304 = vmatpush1.bf16.msra.mxu0 0
    %1305 = vmatprep.subr.bf16.mxu0 0
    %1306 = vmatpush1.bf16.msra.mxu0 0
    %1307 = vmatprep.subr.bf16.mxu0 0
    %1308 = vmatpush1.bf16.msra.mxu0 0
    %1309 = vmatprep.subr.bf16.mxu0 0
    %1310 = vmatpush1.bf16.msra.mxu0 0
    %1311 = vmatprep.subr.bf16.mxu0 0
    %1312 = vmatpush1.bf16.msra.mxu0 0
    %1313 = vmatprep.subr.bf16.mxu0 0
    %1314 = vmatpush1.bf16.msra.mxu0 0
    %1315 = vmatprep.subr.bf16.mxu0 0
    %1316 = vmatpush1.bf16.msra.mxu0 0
    %1317 = vmatprep.subr.bf16.mxu0 0
    %1318 = vmatpush1.bf16.msra.mxu0 0
    %1319 = vmatprep.mubr.bf16.mxu0 0
    %1320 = vmatmul.mubr.bf16.gmra.mrb[0].mxu0 %v1245
    %v1321 = vpop.f32.mrb[0].mxu0
    %v1322 = vadd.f32 0.0, %v1321
    %v1323 = vpop.f32.mrb[0].mxu0
    %v1324 = vadd.f32 0.0, %v1323
    %v1325 = vpop.f32.mrb[0].mxu0
    %v1326 = vpop.f32.mrb[0].mxu0
    %1327 = vdwg.mxu0
    %v1328 = vadd.f32 %v1241, %v1281
    %v1329 = vadd.f32 %v1242, %v1283
    %v1330 = vadd.f32 %v1243, %v1322
    %v1331 = vadd.f32 %v1244, %v1324
    %v1332 = vxor.u32 %v1328, 2147483648
    %v1333 = vmul.f32 %v1332, 1.442695
    %v1334 = vpow.pop %v1333
    %v1335 = vadd.f32 %v1334, 1.0
    %v1336 = vrcp.pop %v1335
    %v1337 = vmul.f32 1.0, %v1336
    %v1338 = vxor.u32 %v1329, 2147483648
    %v1339 = vmul.f32 %v1338, 1.442695
    %v1340 = vpow.pop %v1339
    %v1341 = vadd.f32 %v1340, 1.0
    %v1342 = vrcp.pop %v1341
    %v1343 = vmul.f32 1.0, %v1342
    %v1344 = vtanh.pop %v1330
    %v1345 = vxor.u32 %v1331, 2147483648
    %v1346 = vmul.f32 %v1345, 1.442695
    %v1347 = vpow.pop %v1346
    %v1348 = vadd.f32 %v1347, 1.0
    %v1349 = vrcp.pop %v1348
    %v1350 = vmul.f32 1.0, %v1349
    %v1351 = vmul.f32 %v1343, %v1237
    %v1352 = vmul.f32 %v1337, %v1344
    %v1353 = vadd.f32 %v1351, %v1352
    %v1354 = vtanh.pop %v1353
    %v1355 = vmul.f32 %v1350, %v1354
    %s1356 = scalar_lea.vmem [#allocation2], 224
    %v1357 = vld [vmem:[%s1356] sm:$0xff]
    %v1358 = vld [vmem:[%s1356 + $0x8] sm:$0xff]
    %v1359 = vld [vmem:[%s1356 + $0x10] sm:$0xff]
    %v1360 = vld [vmem:[%s1356 + $0x18] sm:$0xff]
    %v1361 = vpack.c.bf16 %v1355, %v1355
    %1362 = vmatprep.subr.bf16.mxu0 %v487
    %1363 = vmatpush1.bf16.msra.mxu0 %v486
    %1364 = vmatprep.subr.bf16.mxu0 %v491
    %1365 = vmatpush1.bf16.msra.mxu0 %v490
    %1366 = vmatprep.subr.bf16.mxu0 %v495
    %1367 = vmatpush1.bf16.msra.mxu0 %v494
    %1368 = vmatprep.subr.bf16.mxu0 %v499
    %1369 = vmatpush1.bf16.msra.mxu0 %v498
    %1370 = vmatprep.subr.bf16.mxu0 %v503
    %1371 = vmatpush1.bf16.msra.mxu0 %v502
    %1372 = vmatprep.subr.bf16.mxu0 %v507
    %1373 = vmatpush1.bf16.msra.mxu0 %v506
    %1374 = vmatprep.subr.bf16.mxu0 %v511
    %1375 = vmatpush1.bf16.msra.mxu0 %v510
    %1376 = vmatprep.subr.bf16.mxu0 %v515
    %1377 = vmatpush1.bf16.msra.mxu0 %v514
    %1378 = vmatprep.subr.bf16.mxu0 0
    %1379 = vmatpush1.bf16.msra.mxu0 0
    %1380 = vmatprep.subr.bf16.mxu0 0
    %1381 = vmatpush1.bf16.msra.mxu0 0
    %1382 = vmatprep.subr.bf16.mxu0 0
    %1383 = vmatpush1.bf16.msra.mxu0 0
    %1384 = vmatprep.subr.bf16.mxu0 0
    %1385 = vmatpush1.bf16.msra.mxu0 0
    %1386 = vmatprep.subr.bf16.mxu0 0
    %1387 = vmatpush1.bf16.msra.mxu0 0
    %1388 = vmatprep.subr.bf16.mxu0 0
    %1389 = vmatpush1.bf16.msra.mxu0 0
    %1390 = vmatprep.subr.bf16.mxu0 0
    %1391 = vmatpush1.bf16.msra.mxu0 0
    %1392 = vmatprep.subr.bf16.mxu0 0
    %1393 = vmatpush1.bf16.msra.mxu0 0
    %1394 = vmatprep.mubr.bf16.mxu0 0
    %1395 = vmatmul.mubr.bf16.gmra.mrb[0].mxu0 %v1361
    %v1396 = vpop.f32.mrb[0].mxu0
    %v1397 = vadd.f32 0.0, %v1396
    %v1398 = vpop.f32.mrb[0].mxu0
    %v1399 = vadd.f32 0.0, %v1398
    %v1400 = vpop.f32.mrb[0].mxu0
    %v1401 = vpop.f32.mrb[0].mxu0
    %1402 = vdwg.mxu0
    %1403 = vmatprep.subr.bf16.mxu0 %v489
    %1404 = vmatpush1.bf16.msra.mxu0 %v488
    %1405 = vmatprep.subr.bf16.mxu0 %v493
    %1406 = vmatpush1.bf16.msra.mxu0 %v492
    %1407 = vmatprep.subr.bf16.mxu0 %v497
    %1408 = vmatpush1.bf16.msra.mxu0 %v496
    %1409 = vmatprep.subr.bf16.mxu0 %v501
    %1410 = vmatpush1.bf16.msra.mxu0 %v500
    %1411 = vmatprep.subr.bf16.mxu0 %v505
    %1412 = vmatpush1.bf16.msra.mxu0 %v504
    %1413 = vmatprep.subr.bf16.mxu0 %v509
    %1414 = vmatpush1.bf16.msra.mxu0 %v508
    %1415 = vmatprep.subr.bf16.mxu0 %v513
    %1416 = vmatpush1.bf16.msra.mxu0 %v512
    %1417 = vmatprep.subr.bf16.mxu0 %v517
    %1418 = vmatpush1.bf16.msra.mxu0 %v516
    %1419 = vmatprep.subr.bf16.mxu0 0
    %1420 = vmatpush1.bf16.msra.mxu0 0
    %1421 = vmatprep.subr.bf16.mxu0 0
    %1422 = vmatpush1.bf16.msra.mxu0 0
    %1423 = vmatprep.subr.bf16.mxu0 0
    %1424 = vmatpush1.bf16.msra.mxu0 0
    %1425 = vmatprep.subr.bf16.mxu0 0
    %1426 = vmatpush1.bf16.msra.mxu0 0
    %1427 = vmatprep.subr.bf16.mxu0 0
    %1428 = vmatpush1.bf16.msra.mxu0 0
    %1429 = vmatprep.subr.bf16.mxu0 0
    %1430 = vmatpush1.bf16.msra.mxu0 0
    %1431 = vmatprep.subr.bf16.mxu0 0
    %1432 = vmatpush1.bf16.msra.mxu0 0
    %1433 = vmatprep.subr.bf16.mxu0 0
    %1434 = vmatpush1.bf16.msra.mxu0 0
    %1435 = vmatprep.mubr.bf16.mxu0 0
    %1436 = vmatmul.mubr.bf16.gmra.mrb[0].mxu0 %v1361
    %v1437 = vpop.f32.mrb[0].mxu0
    %v1438 = vadd.f32 0.0, %v1437
    %v1439 = vpop.f32.mrb[0].mxu0
    %v1440 = vadd.f32 0.0, %v1439
    %v1441 = vpop.f32.mrb[0].mxu0
    %v1442 = vpop.f32.mrb[0].mxu0
    %1443 = vdwg.mxu0
    %v1444 = vadd.f32 %v1357, %v1397
    %v1445 = vadd.f32 %v1358, %v1399
    %v1446 = vadd.f32 %v1359, %v1438
    %v1447 = vadd.f32 %v1360, %v1440
    %v1448 = vxor.u32 %v1444, 2147483648
    %v1449 = vmul.f32 %v1448, 1.442695
    %v1450 = vpow.pop %v1449
    %v1451 = vadd.f32 %v1450, 1.0
    %v1452 = vrcp.pop %v1451
    %v1453 = vmul.f32 1.0, %v1452
    %v1454 = vxor.u32 %v1445, 2147483648
    %v1455 = vmul.f32 %v1454, 1.442695
    %v1456 = vpow.pop %v1455
    %v1457 = vadd.f32 %v1456, 1.0
    %v1458 = vrcp.pop %v1457
    %v1459 = vmul.f32 1.0, %v1458
    %v1460 = vtanh.pop %v1446
    %v1461 = vxor.u32 %v1447, 2147483648
    %v1462 = vmul.f32 %v1461, 1.442695
    %v1463 = vpow.pop %v1462
    %v1464 = vadd.f32 %v1463, 1.0
    %v1465 = vrcp.pop %v1464
    %v1466 = vmul.f32 1.0, %v1465
    %v1467 = vmul.f32 %v1459, %v1353
    %v1468 = vmul.f32 %v1453, %v1460
    %v1469 = vadd.f32 %v1467, %v1468
    %v1470 = vtanh.pop %v1469
    %v1471 = vmul.f32 %v1466, %v1470
    %1472 = vst [vmem:[#allocation3] sm:$0xff] %v1471
    %1473 = vst [vmem:[#allocation4] sm:$0xff] %v1469
    // Predicated region
    $region46: #{tpu_custom_call.1} parent=1 // pred_check
      %p1474 = pneg %p80
    $region47: #{tpu_custom_call.1} parent=1 // pred_check_branch
      %1476 = sbr.rel (%p1474) target = $region49
    $region48: #{tpu_custom_call.1} parent=1 // pred_region
      %v1477 = vld [vmem:[#allocation11] sm:$0xff]
      %v1478 = vld [vmem:[#allocation11 + $0x8] sm:$0xff]
      %v1479 = vld [vmem:[#allocation11 + $0x10] sm:$0xff]
      %v1480 = vld [vmem:[#allocation11 + $0x18] sm:$0xff]
      %v1481 = vld [vmem:[#allocation11 + $0x20] sm:$0xff]
      %v1482 = vld [vmem:[#allocation11 + $0x28] sm:$0xff]
      %v1483 = vld [vmem:[#allocation11 + $0x30] sm:$0xff]
      %v1484 = vld [vmem:[#allocation11 + $0x38] sm:$0xff]
      %v1485 = vld [vmem:[#allocation11 + $0x40] sm:$0xff]
      %v1486 = vld [vmem:[#allocation11 + $0x48] sm:$0xff]
      %v1487 = vld [vmem:[#allocation11 + $0x50] sm:$0xff]
      %v1488 = vld [vmem:[#allocation11 + $0x58] sm:$0xff]
      %v1489 = vld [vmem:[#allocation11 + $0x60] sm:$0xff]
      %v1490 = vld [vmem:[#allocation11 + $0x68] sm:$0xff]
      %v1491 = vld [vmem:[#allocation11 + $0x70] sm:$0xff]
      %v1492 = vld [vmem:[#allocation11 + $0x78] sm:$0xff]
      %v1493 = vld [vmem:[%s5] sm:$0x1]
      %v1495 = vlaneseq
      %v1496 = vshrl.u32 %v1495, 7
      %v1497 = vsub.s32 0, %v1496
      %v1498 = vrot.slane %v1493, %v1497
      %1500 = vmatprep.subr.mxu0 0.0
      %1501 = vmatpush1.msra.mxu0 %v1477
      %1502 = vmatprep.subr.mxu0 0.0
      %1503 = vmatpush1.msra.mxu0 %v1478
      %1504 = vmatprep.subr.mxu0 0.0
      %1505 = vmatpush1.msra.mxu0 %v1479
      %1506 = vmatprep.subr.mxu0 0.0
      %1507 = vmatpush1.msra.mxu0 %v1480
      %1508 = vmatprep.subr.mxu0 0.0
      %1509 = vmatpush1.msra.mxu0 %v1481
      %1510 = vmatprep.subr.mxu0 0.0
      %1511 = vmatpush1.msra.mxu0 %v1482
      %1512 = vmatprep.subr.mxu0 0.0
      %1513 = vmatpush1.msra.mxu0 %v1483
      %1514 = vmatprep.subr.mxu0 0.0
      %1515 = vmatpush1.msra.mxu0 %v1484
      %1516 = vmatprep.subr.mxu0 0.0
      %1517 = vmatpush1.msra.mxu0 %v1485
      %1518 = vmatprep.subr.mxu0 0.0
      %1519 = vmatpush1.msra.mxu0 %v1486
      %1520 = vmatprep.subr.mxu0 0.0
      %1521 = vmatpush1.msra.mxu0 %v1487
      %1522 = vmatprep.subr.mxu0 0.0
      %1523 = vmatpush1.msra.mxu0 %v1488
      %1524 = vmatprep.subr.mxu0 0.0
      %1525 = vmatpush1.msra.mxu0 %v1489
      %1526 = vmatprep.subr.mxu0 0.0
      %1527 = vmatpush1.msra.mxu0 %v1490
      %1528 = vmatprep.subr.mxu0 0.0
      %1529 = vmatpush1.msra.mxu0 %v1491
      %1530 = vmatprep.subr.mxu0 0.0
      %1531 = vmatpush1.msra.mxu0 %v1492
      %1532 = vmatprep.subr.mxu0 0.0
      %1533 = vmatpush1.msra.mxu0 0.0
      %1534 = vmatprep.subr.mxu0 0.0
      %1535 = vmatpush1.msra.mxu0 0.0
      %1536 = vmatprep.subr.mxu0 0.0
      %1537 = vmatpush1.msra.mxu0 0.0
      %1538 = vmatprep.subr.mxu0 0.0
      %1539 = vmatpush1.msra.mxu0 0.0
      %1540 = vmatprep.subr.mxu0 0.0
      %1541 = vmatpush1.msra.mxu0 0.0
      %1542 = vmatprep.subr.mxu0 0.0
      %1543 = vmatpush1.msra.mxu0 0.0
      %1544 = vmatprep.subr.mxu0 0.0
      %1545 = vmatpush1.msra.mxu0 0.0
      %1546 = vmatprep.subr.mxu0 0.0
      %1547 = vmatpush1.msra.mxu0 0.0
      %1548 = vmatprep.subr.mxu0 0.0
      %1549 = vmatpush1.msra.mxu0 0.0
      %1550 = vmatprep.subr.mxu0 0.0
      %1551 = vmatpush1.msra.mxu0 0.0
      %1552 = vmatprep.subr.mxu0 0.0
      %1553 = vmatpush1.msra.mxu0 0.0
      %1554 = vmatprep.subr.mxu0 0.0
      %1555 = vmatpush1.msra.mxu0 0.0
      %1556 = vmatprep.subr.mxu0 0.0
      %1557 = vmatpush1.msra.mxu0 0.0
      %1558 = vmatprep.subr.mxu0 0.0
      %1559 = vmatpush1.msra.mxu0 0.0
      %1560 = vmatprep.subr.mxu0 0.0
      %1561 = vmatpush1.msra.mxu0 0.0
      %1562 = vmatprep.subr.mxu0 0.0
      %1563 = vmatpush1.msra.mxu0 0.0
      %1564 = vmatprep.mubr.f32.mxu0 0.0
      %1565 = vmatmul.mubr.f32.gmra.mrb[0].mxu0 %v1471
      %v1566 = vpop.f32.mrb[0].mxu0
      %v1567 = vadd.f32 %v1498, %v1566
      %v1568 = vpop.f32.mrb[0].mxu0
      %1569 = vdwg.mxu0
      %v1570 = vxor.u32 %v1567, 2147483648
      %v1571 = vmul.f32 %v1570, 1.442695
      %v1572 = vpow.pop %v1571
      %v1573 = vadd.f32 %v1572, 1.0
      %v1574 = vrcp.pop %v1573
      %v1575 = vmul.f32 1.0, %v1574
      %1576 = vst [vmem:[#allocation13] sm:$0xff] %v1575
    $region49: #{tpu_custom_call.1} parent=1 // pred_fallthru
      _
    // Predicated region
    $region50: #{tpu_custom_call.1} parent=1 // pred_check
      _
    $region51: #{tpu_custom_call.1} parent=1 // pred_check_branch
      %1578 = sbr.rel (0) target = $region53
    $region52: #{tpu_custom_call.1} parent=1 // pred_region
      %s1580 = ssub.s32 128, 128
      %1581 = vsyncadd [#allocation7], %s1580
      %s1583 = sshll.u32 [#allocation13], 4
      %s1584 = int_to_ptr.vmem [resolvable:$true] %s1583
      %1586 = dma.vmem_to_hbm [thread:$0]  %s1584, 128, %s6, [#allocation7]
    $region53: #{tpu_custom_call.1} parent=1 // pred_fallthru
      _
    // Predicated region
    $region54: #{tpu_custom_call.1} parent=1 // pred_check
      _
    $region55: #{tpu_custom_call.1} parent=1 // pred_check_branch
      %1588 = sbr.rel (0) target = $region57
    $region56: #{tpu_custom_call.1} parent=1 // pred_region
      %1589 = dma.done [#allocation7], 128
    $region57: #{tpu_custom_call.1} parent=1 // pred_fallthru
      _
    %1590 = vsyncpa [#allocation6], 1
    %1591 = vsyncpa [#allocation9], 1
    %1592 = vsyncpa [#allocation12], 1
    %1593 = vsyncpa [#allocation7], 1

// kernel: tpu_custom_call.1
$region0: #{tpu_custom_call.1}
  #allocation0 [shape = 'u32[]', space=smem, size = 0x4, offset = 0x4, fixed_abs, tag = 'smem constant byte address 0x4 - core index']
  #allocation1 [shape = 'u32[144,128]{1,0:T(1,128)}', space=vmem, size = 0x12000, scoped, tag = 'internal scratch']
  #allocation2 [shape = 'f32[8,8,512]{2,1,0:T(8,128)}', space=vmem, size = 0x20000, scoped, tag = 'scratch operand']
  #allocation3 [shape = 'f32[8,128]{1,0:T(8,128)}', space=vmem, size = 0x1000, scoped, tag = 'scratch operand']
  #allocation4 [shape = 'f32[8,128]{1,0:T(8,128)}', space=vmem, size = 0x1000, scoped, tag = 'scratch operand']
  %s0 = inlined_call_operand.hbm [shape: bf16[8,8,16], index: 0, kind: input, shape index: {}]
  %s1 = inlined_call_operand.hbm [shape: bf16[16,512], index: 1, kind: input, shape index: {}]
  %s2 = inlined_call_operand.hbm [shape: bf16[128,512], index: 2, kind: input, shape index: {}]
  %s3 = inlined_call_operand.vmem [shape: f32[1,512], index: 3, kind: input, shape index: {}]
  %s4 = inlined_call_operand.hbm [shape: f32[128,128], index: 4, kind: input, shape index: {}]
  %s5 = inlined_call_operand.vmem [shape: f32[1,128], index: 5, kind: input, shape index: {}]
  %s6 = inlined_call_operand.hbm [shape: f32[8,128], index: 6, kind: output, shape index: {}]
  %s7 = sld [smem:[#allocation0]]
  $region58: #{tpu_custom_call.1} parent=0
    _
  %s9 = ssub.s32 1, %s7
  %s10 = scalar_select 0, %s9, %s7
  $region1: #{tpu_custom_call.1} parent=0
    #allocation5 [shape = 'u8[16384]{0}', space=vmem, size = 0x4000, scoped, tag = 'input window, operand 0, single buffered']
    #allocation6 [shape = 's32[1]{0}', space=sflag, size = 0x4, scoped, tag = 'scoped memory for tpu_custom_call.1']
    #allocation7 [shape = 's32[1]{0}', space=sflag, size = 0x4, scoped, tag = 'scoped memory for tpu_custom_call.1']
    #allocation8 [shape = 'u8[16384]{0}', space=vmem, size = 0x4000, scoped, tag = 'input window, operand 1, single buffered']
    #allocation9 [shape = 's32[1]{0}', space=sflag, size = 0x4, scoped, tag = 'scoped memory for tpu_custom_call.1']
    #allocation10 [shape = 'u8[131072]{0}', space=vmem, size = 0x20000, scoped, tag = 'input window, operand 2, single buffered']
    #allocation11 [shape = 'u8[65536]{0}', space=vmem, size = 0x10000, scoped, tag = 'input window, operand 4, single buffered']
    #allocation12 [shape = 's32[1]{0}', space=sflag, size = 0x4, scoped, tag = 'scoped memory for tpu_custom_call.1']
    #allocation13 [shape = 'u8[4096]{0}', space=vmem, size = 0x1000, scoped, tag = 'output window, operand 0, single buffered']
    %11 = vsyncpa [#allocation6], 0
    %12 = vsyncpa [#allocation9], 0
    %13 = vsyncpa [#allocation12], 0
    %14 = vsyncpa [#allocation7], 0
    // Predicated region
    $region2: #{tpu_custom_call.1} parent=1 // pred_check
      _
    $region3: #{tpu_custom_call.1} parent=1 // pred_check_branch
      %16 = sbr.rel (0) target = $region5
    $region4: #{tpu_custom_call.1} parent=1 // pred_region
      %s18 = ssub.s32 512, 512
      %19 = vsyncadd [#allocation6], %s18
      %s20 = sshll.u32 [#allocation5], 4
      %s21 = int_to_ptr.vmem [resolvable:$true] %s20
      %26 = dma.hbm_to_vmem [thread:$0]  %s0, 512, %s21, [#allocation6], 64, 64, 4
    $region5: #{tpu_custom_call.1} parent=1 // pred_fallthru
      _
    // Predicated region
    $region6: #{tpu_custom_call.1} parent=1 // pred_check
      _
    $region7: #{tpu_custom_call.1} parent=1 // pred_check_branch
      %28 = sbr.rel (0) target = $region9
    $region8: #{tpu_custom_call.1} parent=1 // pred_region
      %s30 = ssub.s32 512, 512
      %31 = vsyncadd [#allocation9], %s30
      %s32 = sshll.u32 [#allocation8], 4
      %s33 = int_to_ptr.vmem [resolvable:$true] %s32
      %38 = dma.hbm_to_vmem [thread:$0]  %s1, 512, %s33, [#allocation9], 256, 256, 16
    $region9: #{tpu_custom_call.1} parent=1 // pred_fallthru
      _
    // Predicated region
    $region10: #{tpu_custom_call.1} parent=1 // pred_check
      _
    $region11: #{tpu_custom_call.1} parent=1 // pred_check_branch
      %40 = sbr.rel (0) target = $region13
    $region12: #{tpu_custom_call.1} parent=1 // pred_region
      %s42 = ssub.s32 4096, 4096
      %43 = vsyncadd [#allocation9], %s42
      %s44 = sshll.u32 [#allocation10], 4
      %s45 = int_to_ptr.vmem [resolvable:$true] %s44
      %50 = dma.hbm_to_vmem [thread:$0]  %s2, 4096, %s45, [#allocation9], 256, 256, 16
    $region13: #{tpu_custom_call.1} parent=1 // pred_fallthru
      _
    // Predicated region
    $region14: #{tpu_custom_call.1} parent=1 // pred_check
      _
    $region15: #{tpu_custom_call.1} parent=1 // pred_check_branch
      %52 = sbr.rel (0) target = $region17
    $region16: #{tpu_custom_call.1} parent=1 // pred_region
      _
    $region17: #{tpu_custom_call.1} parent=1 // pred_fallthru
      _
    // Predicated region
    $region18: #{tpu_custom_call.1} parent=1 // pred_check
      _
    $region19: #{tpu_custom_call.1} parent=1 // pred_check_branch
      %54 = sbr.rel (0) target = $region21
    $region20: #{tpu_custom_call.1} parent=1 // pred_region
      %s56 = ssub.s32 2048, 2048
      %57 = vsyncadd [#allocation12], %s56
      %s58 = sshll.u32 [#allocation11], 4
      %s59 = int_to_ptr.vmem [resolvable:$true] %s58
      %64 = dma.hbm_to_vmem [thread:$0]  %s4, 2048, %s59, [#allocation12], 128, 128, 8
    $region21: #{tpu_custom_call.1} parent=1 // pred_fallthru
      _
    // Predicated region
    $region22: #{tpu_custom_call.1} parent=1 // pred_check
      _
    $region23: #{tpu_custom_call.1} parent=1 // pred_check_branch
      %66 = sbr.rel (0) target = $region25
    $region24: #{tpu_custom_call.1} parent=1 // pred_region
      _
    $region25: #{tpu_custom_call.1} parent=1 // pred_fallthru
      _
    // Predicated region
    $region26: #{tpu_custom_call.1} parent=1 // pred_check
      _
    $region27: #{tpu_custom_call.1} parent=1 // pred_check_branch
      %68 = sbr.rel (0) target = $region29
    $region28: #{tpu_custom_call.1} parent=1 // pred_region
      %69 = dma.done [#allocation6], 512
    $region29: #{tpu_custom_call.1} parent=1 // pred_fallthru
      _
    // Predicated region
    $region30: #{tpu_custom_call.1} parent=1 // pred_check
      _
    $region31: #{tpu_custom_call.1} parent=1 // pred_check_branch
      %71 = sbr.rel (0) target = $region33
    $region32: #{tpu_custom_call.1} parent=1 // pred_region
      %72 = dma.done [#allocation9], 512
    $region33: #{tpu_custom_call.1} parent=1 // pred_fallthru
      _
    // Predicated region
    $region34: #{tpu_custom_call.1} parent=1 // pred_check
      _
    $region35: #{tpu_custom_call.1} parent=1 // pred_check_branch
      %74 = sbr.rel (0) target = $region37
    $region36: #{tpu_custom_call.1} parent=1 // pred_region
      %75 = dma.done [#allocation9], 4096
    $region37: #{tpu_custom_call.1} parent=1 // pred_fallthru
      _
    // Predicated region
    $region38: #{tpu_custom_call.1} parent=1 // pred_check
      _
    $region39: #{tpu_custom_call.1} parent=1 // pred_check_branch
      %77 = sbr.rel (0) target = $region41
    $region40: #{tpu_custom_call.1} parent=1 // pred_region
      %78 = dma.done [#allocation12], 2048
    $region41: #{tpu_custom_call.1} parent=1 // pred_fallthru
      _
    %p80 = scmp.eq.s32.totalorder 0, 0
    // Predicated region
    $region42: #{tpu_custom_call.1} parent=1 // pred_check
      %p81 = pneg %p80
    $region43: #{tpu_custom_call.1} parent=1 // pred_check_branch
      %83 = sbr.rel (%p81) target = $region45
    $region44: #{tpu_custom_call.1} parent=1 // pred_region
      %84 = vst [vmem:[#allocation3] sm:$0xff] 0.0
      %85 = vst [vmem:[#allocation4] sm:$0xff] 0.0
    $region45: #{tpu_custom_call.1} parent=1 // pred_fallthru
      _
    %v86 = vld [vmem:[#allocation5] sm:$0xf]
    %v87 = vld [vmem:[#allocation5 + $0x4] sm:$0xf]
    %v88 = vld [vmem:[#allocation5 + $0x8] sm:$0xf]
    %v89 = vld [vmem:[#allocation5 + $0xc] sm:$0xf]
    %v90 = vld [vmem:[#allocation5 + $0x10] sm:$0xf]
    %v91 = vld [vmem:[#allocation5 + $0x14] sm:$0xf]
    %v92 = vld [vmem:[#allocation5 + $0x18] sm:$0xf]
    %v93 = vld [vmem:[#allocation5 + $0x1c] sm:$0xf]
    %v94 = vld [vmem:[#allocation8] sm:$0xff]
    %v95 = vld [vmem:[#allocation8 + $0x8] sm:$0xff]
    %v96 = vld [vmem:[#allocation8 + $0x10] sm:$0xff]
    %v97 = vld [vmem:[#allocation8 + $0x18] sm:$0xff]
    %v98 = vld [vmem:[%s3] sm:$0xf]
    %v100 = vlaneseq
    %v101 = vshrl.u32 %v100, 7
    %v102 = vsub.s32 0, %v101
    %v103 = vrot.slane %v98, %v102
    %v104 = vlaneseq
    %v105 = vshrl.u32 %v104, 7
    %v106 = vsub.s32 1, %v105
    %v107 = vrot.slane %v98, %v106
    %v108 = vlaneseq
    %v109 = vshrl.u32 %v108, 7
    %v110 = vsub.s32 2, %v109
    %v111 = vrot.slane %v98, %v110
    %v112 = vlaneseq
    %v113 = vshrl.u32 %v112, 7
    %v114 = vsub.s32 3, %v113
    %v115 = vrot.slane %v98, %v114
    %v128 = vunpack.c.l.b16 %v86
    %v129 = vunpack.c.l.b16 %v87
    %v130 = vunpack.c.l.b16 %v88
    %v131 = vunpack.c.l.b16 %v89
    %v132 = vunpack.c.l.b16 %v90
    %v133 = vunpack.c.l.b16 %v91
    %v134 = vunpack.c.l.b16 %v92
    %v135 = vunpack.c.l.b16 %v93
    %v136 = vpack.c.b16 %v129, %v128
    %v137 = vpack.c.b16 %v131, %v130
    %v138 = vpack.c.b16 %v133, %v132
    %v139 = vpack.c.b16 %v135, %v134
    %v144 = vunpack.c.l.b16 %v94
    %v145 = vunpack.c.h.b16 %v94
    %v146 = vunpack.c.l.b16 %v95
    %v147 = vunpack.c.h.b16 %v95
    %v148 = vunpack.c.l.b16 %v96
    %v149 = vunpack.c.h.b16 %v96
    %v150 = vunpack.c.l.b16 %v97
    %v151 = vunpack.c.h.b16 %v97
    %v152 = vpack.c.b16 %v148, %v144
    %v153 = vpack.c.b16 %v149, %v145
    %v154 = vpack.c.b16 %v150, %v146
    %v155 = vpack.c.b16 %v151, %v147
    %vm160 = vcmask 130048
    %v162 = vsel %vm160, %v136, 0
    %v165 = vsel %vm160, %v137, 0
    %v168 = vsel %vm160, %v138, 0
    %v171 = vsel %vm160, %v139, 0
    %173 = vmatprep.subr.bf16.mxu0 %v153
    %174 = vmatpush1.bf16.msra.mxu0 %v152
    %175 = vmatprep.subr.bf16.mxu0 0
    %176 = vmatpush1.bf16.msra.mxu0 0
    %177 = vmatprep.subr.bf16.mxu0 0
    %178 = vmatpush1.bf16.msra.mxu0 0
    %179 = vmatprep.subr.bf16.mxu0 0
    %180 = vmatpush1.bf16.msra.mxu0 0
    %181 = vmatprep.subr.bf16.mxu0 0
    %182 = vmatpush1.bf16.msra.mxu0 0
    %183 = vmatprep.subr.bf16.mxu0 0
    %184 = vmatpush1.bf16.msra.mxu0 0
    %185 = vmatprep.subr.bf16.mxu0 0
    %186 = vmatpush1.bf16.msra.mxu0 0
    %187 = vmatprep.subr.bf16.mxu0 0
    %188 = vmatpush1.bf16.msra.mxu0 0
    %189 = vmatprep.subr.bf16.mxu0 0
    %190 = vmatpush1.bf16.msra.mxu0 0
    %191 = vmatprep.subr.bf16.mxu0 0
    %192 = vmatpush1.bf16.msra.mxu0 0
    %193 = vmatprep.subr.bf16.mxu0 0
    %194 = vmatpush1.bf16.msra.mxu0 0
    %195 = vmatprep.subr.bf16.mxu0 0
    %196 = vmatpush1.bf16.msra.mxu0 0
    %197 = vmatprep.subr.bf16.mxu0 0
    %198 = vmatpush1.bf16.msra.mxu0 0
    %199 = vmatprep.subr.bf16.mxu0 0
    %200 = vmatpush1.bf16.msra.mxu0 0
    %201 = vmatprep.subr.bf16.mxu0 0
    %202 = vmatpush1.bf16.msra.mxu0 0
    %203 = vmatprep.subr.bf16.mxu0 0
    %204 = vmatpush1.bf16.msra.mxu0 0
    %205 = vmatprep.mubr.bf16.mxu0 0
    %206 = vmatmul.mubr.bf16.gmra.mrb[0].mxu0 %v162
    %v207 = vpop.f32.mrb[0].mxu0
    %v208 = vadd.f32 %v103, %v207
    %v209 = vpop.f32.mrb[0].mxu0
    %v210 = vadd.f32 %v107, %v209
    %v211 = vpop.f32.mrb[0].mxu0
    %v212 = vadd.f32 %v103, %v211
    %v213 = vpop.f32.mrb[0].mxu0
    %v214 = vadd.f32 %v107, %v213
    %215 = vmatprep.mubr.bf16.mxu0 0
    %216 = vmatmul.mubr.bf16.gmra.mrb[0].mxu0 %v165
    %v217 = vpop.f32.mrb[0].mxu0
    %v218 = vadd.f32 %v103, %v217
    %v219 = vpop.f32.mrb[0].mxu0
    %v220 = vadd.f32 %v107, %v219
    %v221 = vpop.f32.mrb[0].mxu0
    %v222 = vadd.f32 %v103, %v221
    %v223 = vpop.f32.mrb[0].mxu0
    %v224 = vadd.f32 %v107, %v223
    %225 = vmatprep.mubr.bf16.mxu0 0
    %226 = vmatmul.mubr.bf16.gmra.mrb[0].mxu0 %v168
    %v227 = vpop.f32.mrb[0].mxu0
    %v228 = vadd.f32 %v103, %v227
    %v229 = vpop.f32.mrb[0].mxu0
    %v230 = vadd.f32 %v107, %v229
    %v231 = vpop.f32.mrb[0].mxu0
    %v232 = vadd.f32 %v103, %v231
    %v233 = vpop.f32.mrb[0].mxu0
    %v234 = vadd.f32 %v107, %v233
    %235 = vmatprep.mubr.bf16.mxu0 0
    %236 = vmatmul.mubr.bf16.gmra.mrb[0].mxu0 %v171
    %v237 = vpop.f32.mrb[0].mxu0
    %v238 = vadd.f32 %v103, %v237
    %v239 = vpop.f32.mrb[0].mxu0
    %v240 = vadd.f32 %v107, %v239
    %v241 = vpop.f32.mrb[0].mxu0
    %v242 = vadd.f32 %v103, %v241
    %v243 = vpop.f32.mrb[0].mxu0
    %v244 = vadd.f32 %v107, %v243
    %245 = vdwg.mxu0
    %246 = vmatprep.subr.bf16.mxu0 %v155
    %247 = vmatpush1.bf16.msra.mxu0 %v154
    %248 = vmatprep.subr.bf16.mxu0 0
    %249 = vmatpush1.bf16.msra.mxu0 0
    %250 = vmatprep.subr.bf16.mxu0 0
    %251 = vmatpush1.bf16.msra.mxu0 0
    %252 = vmatprep.subr.bf16.mxu0 0
    %253 = vmatpush1.bf16.msra.mxu0 0
    %254 = vmatprep.subr.bf16.mxu0 0
    %255 = vmatpush1.bf16.msra.mxu0 0
    %256 = vmatprep.subr.bf16.mxu0 0
    %257 = vmatpush1.bf16.msra.mxu0 0
    %258 = vmatprep.subr.bf16.mxu0 0
    %259 = vmatpush1.bf16.msra.mxu0 0
    %260 = vmatprep.subr.bf16.mxu0 0
    %261 = vmatpush1.bf16.msra.mxu0 0
    %262 = vmatprep.subr.bf16.mxu0 0
    %263 = vmatpush1.bf16.msra.mxu0 0
    %264 = vmatprep.subr.bf16.mxu0 0
    %265 = vmatpush1.bf16.msra.mxu0 0
    %266 = vmatprep.subr.bf16.mxu0 0
    %267 = vmatpush1.bf16.msra.mxu0 0
    %268 = vmatprep.subr.bf16.mxu0 0
    %269 = vmatpush1.bf16.msra.mxu0 0
    %270 = vmatprep.subr.bf16.mxu0 0
    %271 = vmatpush1.bf16.msra.mxu0 0
    %272 = vmatprep.subr.bf16.mxu0 0
    %273 = vmatpush1.bf16.msra.mxu0 0
    %274 = vmatprep.subr.bf16.mxu0 0
    %275 = vmatpush1.bf16.msra.mxu0 0
    %276 = vmatprep.subr.bf16.mxu0 0
    %277 = vmatpush1.bf16.msra.mxu0 0
    %278 = vmatprep.mubr.bf16.mxu0 0
    %279 = vmatmul.mubr.bf16.gmra.mrb[0].mxu0 %v162
    %v280 = vpop.f32.mrb[0].mxu0
    %v281 = vadd.f32 %v111, %v280
    %v282 = vpop.f32.mrb[0].mxu0
    %v283 = vadd.f32 %v115, %v282
    %v284 = vpop.f32.mrb[0].mxu0
    %v285 = vadd.f32 %v111, %v284
    %v286 = vpop.f32.mrb[0].mxu0
    %v287 = vadd.f32 %v115, %v286
    %288 = vmatprep.mubr.bf16.mxu0 0
    %289 = vmatmul.mubr.bf16.gmra.mrb[0].mxu0 %v165
    %v290 = vpop.f32.mrb[0].mxu0
    %v291 = vadd.f32 %v111, %v290
    %v292 = vpop.f32.mrb[0].mxu0
    %v293 = vadd.f32 %v115, %v292
    %v294 = vpop.f32.mrb[0].mxu0
    %v295 = vadd.f32 %v111, %v294
    %v296 = vpop.f32.mrb[0].mxu0
    %v297 = vadd.f32 %v115, %v296
    %298 = vmatprep.mubr.bf16.mxu0 0
    %299 = vmatmul.mubr.bf16.gmra.mrb[0].mxu0 %v168
    %v300 = vpop.f32.mrb[0].mxu0
    %v301 = vadd.f32 %v111, %v300
    %v302 = vpop.f32.mrb[0].mxu0
    %v303 = vadd.f32 %v115, %v302
    %v304 = vpop.f32.mrb[0].mxu0
    %v305 = vadd.f32 %v111, %v304
    %v306 = vpop.f32.mrb[0].mxu0
    %v307 = vadd.f32 %v115, %v306
    %308 = vmatprep.mubr.bf16.mxu0 0
    %309 = vmatmul.mubr.bf16.gmra.mrb[0].mxu0 %v171
    %v310 = vpop.f32.mrb[0].mxu0
    %v311 = vadd.f32 %v111, %v310
    %v312 = vpop.f32.mrb[0].mxu0
    %v313 = vadd.f32 %v115, %v312
    %v314 = vpop.f32.mrb[0].mxu0
    %v315 = vadd.f32 %v111, %v314
    %v316 = vpop.f32.mrb[0].mxu0
    %v317 = vadd.f32 %v115, %v316
    %318 = vdwg.mxu0
    %319 = vst [vmem:[#allocation2] sm:$0xff] %v208
    %320 = vst [vmem:[#allocation2 + $0x8] sm:$0xff] %v210
    %321 = vst [vmem:[#allocation2 + $0x10] sm:$0xff] %v281
    %322 = vst [vmem:[#allocation2 + $0x18] sm:$0xff] %v283
    %323 = vst [vmem:[#allocation2 + $0x20] sm:$0xff] %v212
    %324 = vst [vmem:[#allocation2 + $0x28] sm:$0xff] %v214
    %325 = vst [vmem:[#allocation2 + $0x30] sm:$0xff] %v285
    %326 = vst [vmem:[#allocation2 + $0x38] sm:$0xff] %v287
    %327 = vst [vmem:[#allocation2 + $0x40] sm:$0xff] %v218
    %328 = vst [vmem:[#allocation2 + $0x48] sm:$0xff] %v220
    %329 = vst [vmem:[#allocation2 + $0x50] sm:$0xff] %v291
    %330 = vst [vmem:[#allocation2 + $0x58] sm:$0xff] %v293
    %331 = vst [vmem:[#allocation2 + $0x60] sm:$0xff] %v222
    %332 = vst [vmem:[#allocation2 + $0x68] sm:$0xff] %v224
    %333 = vst [vmem:[#allocation2 + $0x70] sm:$0xff] %v295
    %334 = vst [vmem:[#allocation2 + $0x78] sm:$0xff] %v297
    %335 = vst [vmem:[#allocation2 + $0x80] sm:$0xff] %v228
    %336 = vst [vmem:[#allocation2 + $0x88] sm:$0xff] %v230
    %337 = vst [vmem:[#allocation2 + $0x90] sm:$0xff] %v301
    %338 = vst [vmem:[#allocation2 + $0x98] sm:$0xff] %v303
    %339 = vst [vmem:[#allocation2 + $0xa0] sm:$0xff] %v232
    %340 = vst [vmem:[#allocation2 + $0xa8] sm:$0xff] %v234
    %341 = vst [vmem:[#allocation2 + $0xb0] sm:$0xff] %v305
    %342 = vst [vmem:[#allocation2 + $0xb8] sm:$0xff] %v307
    %343 = vst [vmem:[#allocation2 + $0xc0] sm:$0xff] %v238
    %344 = vst [vmem:[#allocation2 + $0xc8] sm:$0xff] %v240
    %345 = vst [vmem:[#allocation2 + $0xd0] sm:$0xff] %v311
    %346 = vst [vmem:[#allocation2 + $0xd8] sm:$0xff] %v313
    %347 = vst [vmem:[#allocation2 + $0xe0] sm:$0xff] %v242
    %348 = vst [vmem:[#allocation2 + $0xe8] sm:$0xff] %v244
    %349 = vst [vmem:[#allocation2 + $0xf0] sm:$0xff] %v315
    %350 = vst [vmem:[#allocation2 + $0xf8] sm:$0xff] %v317
    %v351 = vld [vmem:[#allocation3] sm:$0xff]
    %v352 = vld [vmem:[#allocation4] sm:$0xff]
    %v353 = vld [vmem:[#allocation2] sm:$0xff]
    %v354 = vld [vmem:[#allocation2 + $0x8] sm:$0xff]
    %v355 = vld [vmem:[#allocation2 + $0x10] sm:$0xff]
    %v356 = vld [vmem:[#allocation2 + $0x18] sm:$0xff]
    %v357 = vpack.c.bf16 %v351, %v351
    %v358 = vld [vmem:[#allocation10] sm:$0xff]
    %v359 = vld [vmem:[#allocation10 + $0x8] sm:$0xff]
    %v360 = vld [vmem:[#allocation10 + $0x10] sm:$0xff]
    %v361 = vld [vmem:[#allocation10 + $0x18] sm:$0xff]
    %v362 = vld [vmem:[#allocation10 + $0x20] sm:$0xff]
    %v363 = vld [vmem:[#allocation10 + $0x28] sm:$0xff]
    %v364 = vld [vmem:[#allocation10 + $0x30] sm:$0xff]
    %v365 = vld [vmem:[#allocation10 + $0x38] sm:$0xff]
    %v366 = vld [vmem:[#allocation10 + $0x40] sm:$0xff]
    %v367 = vld [vmem:[#allocation10 + $0x48] sm:$0xff]
    %v368 = vld [vmem:[#allocation10 + $0x50] sm:$0xff]
    %v369 = vld [vmem:[#allocation10 + $0x58] sm:$0xff]
    %v370 = vld [vmem:[#allocation10 + $0x60] sm:$0xff]
    %v371 = vld [vmem:[#allocation10 + $0x68] sm:$0xff]
    %v372 = vld [vmem:[#allocation10 + $0x70] sm:$0xff]
    %v373 = vld [vmem:[#allocation10 + $0x78] sm:$0xff]
    %v374 = vld [vmem:[#allocation10 + $0x80] sm:$0xff]
    %v375 = vld [vmem:[#allocation10 + $0x88] sm:$0xff]
    %v376 = vld [vmem:[#allocation10 + $0x90] sm:$0xff]
    %v377 = vld [vmem:[#allocation10 + $0x98] sm:$0xff]
    %v378 = vld [vmem:[#allocation10 + $0xa0] sm:$0xff]
    %v379 = vld [vmem:[#allocation10 + $0xa8] sm:$0xff]
    %v380 = vld [vmem:[#allocation10 + $0xb0] sm:$0xff]
    %v381 = vld [vmem:[#allocation10 + $0xb8] sm:$0xff]
    %v382 = vld [vmem:[#allocation10 + $0xc0] sm:$0xff]
    %v383 = vld [vmem:[#allocation10 + $0xc8] sm:$0xff]
    %v384 = vld [vmem:[#allocation10 + $0xd0] sm:$0xff]
    %v385 = vld [vmem:[#allocation10 + $0xd8] sm:$0xff]
    %v386 = vld [vmem:[#allocation10 + $0xe0] sm:$0xff]
    %v387 = vld [vmem:[#allocation10 + $0xe8] sm:$0xff]
    %v388 = vld [vmem:[#allocation10 + $0xf0] sm:$0xff]
    %v389 = vld [vmem:[#allocation10 + $0xf8] sm:$0xff]
    %v422 = vunpack.c.l.b16 %v358
    %v423 = vunpack.c.h.b16 %v358
    %v424 = vunpack.c.l.b16 %v359
    %v425 = vunpack.c.h.b16 %v359
    %v426 = vunpack.c.l.b16 %v360
    %v427 = vunpack.c.h.b16 %v360
    %v428 = vunpack.c.l.b16 %v361
    %v429 = vunpack.c.h.b16 %v361
    %v430 = vunpack.c.l.b16 %v362
    %v431 = vunpack.c.h.b16 %v362
    %v432 = vunpack.c.l.b16 %v363
    %v433 = vunpack.c.h.b16 %v363
    %v434 = vunpack.c.l.b16 %v364
    %v435 = vunpack.c.h.b16 %v364
    %v436 = vunpack.c.l.b16 %v365
    %v437 = vunpack.c.h.b16 %v365
    %v438 = vunpack.c.l.b16 %v366
    %v439 = vunpack.c.h.b16 %v366
    %v440 = vunpack.c.l.b16 %v367
    %v441 = vunpack.c.h.b16 %v367
    %v442 = vunpack.c.l.b16 %v368
    %v443 = vunpack.c.h.b16 %v368
    %v444 = vunpack.c.l.b16 %v369
    %v445 = vunpack.c.h.b16 %v369
    %v446 = vunpack.c.l.b16 %v370
    %v447 = vunpack.c.h.b16 %v370
    %v448 = vunpack.c.l.b16 %v371
    %v449 = vunpack.c.h.b16 %v371
    %v450 = vunpack.c.l.b16 %v372
    %v451 = vunpack.c.h.b16 %v372
    %v452 = vunpack.c.l.b16 %v373
    %v453 = vunpack.c.h.b16 %v373
    %v454 = vunpack.c.l.b16 %v374
    %v455 = vunpack.c.h.b16 %v374
    %v456 = vunpack.c.l.b16 %v375
    %v457 = vunpack.c.h.b16 %v375
    %v458 = vunpack.c.l.b16 %v376
    %v459 = vunpack.c.h.b16 %v376
    %v460 = vunpack.c.l.b16 %v377
    %v461 = vunpack.c.h.b16 %v377
    %v462 = vunpack.c.l.b16 %v378
    %v463 = vunpack.c.h.b16 %v378
    %v464 = vunpack.c.l.b16 %v379
    %v465 = vunpack.c.h.b16 %v379
    %v466 = vunpack.c.l.b16 %v380
    %v467 = vunpack.c.h.b16 %v380
    %v468 = vunpack.c.l.b16 %v381
    %v469 = vunpack.c.h.b16 %v381
    %v470 = vunpack.c.l.b16 %v382
    %v471 = vunpack.c.h.b16 %v382
    %v472 = vunpack.c.l.b16 %v383
    %v473 = vunpack.c.h.b16 %v383
    %v474 = vunpack.c.l.b16 %v384
    %v475 = vunpack.c.h.b16 %v384
    %v476 = vunpack.c.l.b16 %v385
    %v477 = vunpack.c.h.b16 %v385
    %v478 = vunpack.c.l.b16 %v386
    %v479 = vunpack.c.h.b16 %v386
    %v480 = vunpack.c.l.b16 %v387
    %v481 = vunpack.c.h.b16 %v387
    %v482 = vunpack.c.l.b16 %v388
    %v483 = vunpack.c.h.b16 %v388
    %v484 = vunpack.c.l.b16 %v389
    %v485 = vunpack.c.h.b16 %v389
    %v486 = vpack.c.b16 %v426, %v422
    %v487 = vpack.c.b16 %v427, %v423
    %v488 = vpack.c.b16 %v428, %v424
    %v489 = vpack.c.b16 %v429, %v425
    %v490 = vpack.c.b16 %v434, %v430
    %v491 = vpack.c.b16 %v435, %v431
    %v492 = vpack.c.b16 %v436, %v432
    %v493 = vpack.c.b16 %v437, %v433
    %v494 = vpack.c.b16 %v442, %v438
    %v495 = vpack.c.b16 %v443, %v439
    %v496 = vpack.c.b16 %v444, %v440
    %v497 = vpack.c.b16 %v445, %v441
    %v498 = vpack.c.b16 %v450, %v446
    %v499 = vpack.c.b16 %v451, %v447
    %v500 = vpack.c.b16 %v452, %v448
    %v501 = vpack.c.b16 %v453, %v449
    %v502 = vpack.c.b16 %v458, %v454
    %v503 = vpack.c.b16 %v459, %v455
    %v504 = vpack.c.b16 %v460, %v456
    %v505 = vpack.c.b16 %v461, %v457
    %v506 = vpack.c.b16 %v466, %v462
    %v507 = vpack.c.b16 %v467, %v463
    %v508 = vpack.c.b16 %v468, %v464
    %v509 = vpack.c.b16 %v469, %v465
    %v510 = vpack.c.b16 %v474, %v470
    %v511 = vpack.c.b16 %v475, %v471
    %v512 = vpack.c.b16 %v476, %v472
    %v513 = vpack.c.b16 %v477, %v473
    %v514 = vpack.c.b16 %v482, %v478
    %v515 = vpack.c.b16 %v483, %v479
    %v516 = vpack.c.b16 %v484, %v480
    %v517 = vpack.c.b16 %v485, %v481
    %550 = vmatprep.subr.bf16.mxu0 %v487
    %551 = vmatpush1.bf16.msra.mxu0 %v486
    %552 = vmatprep.subr.bf16.mxu0 %v491
    %553 = vmatpush1.bf16.msra.mxu0 %v490
    %554 = vmatprep.subr.bf16.mxu0 %v495
    %555 = vmatpush1.bf16.msra.mxu0 %v494
    %556 = vmatprep.subr.bf16.mxu0 %v499
    %557 = vmatpush1.bf16.msra.mxu0 %v498
    %558 = vmatprep.subr.bf16.mxu0 %v503
    %559 = vmatpush1.bf16.msra.mxu0 %v502
    %560 = vmatprep.subr.bf16.mxu0 %v507
    %561 = vmatpush1.bf16.msra.mxu0 %v506
    %562 = vmatprep.subr.bf16.mxu0 %v511
    %563 = vmatpush1.bf16.msra.mxu0 %v510
    %564 = vmatprep.subr.bf16.mxu0 %v515
    %565 = vmatpush1.bf16.msra.mxu0 %v514
    %566 = vmatprep.subr.bf16.mxu0 0
    %567 = vmatpush1.bf16.msra.mxu0 0
    %568 = vmatprep.subr.bf16.mxu0 0
    %569 = vmatpush1.bf16.msra.mxu0 0
    %570 = vmatprep.subr.bf16.mxu0 0
    %571 = vmatpush1.bf16.msra.mxu0 0
    %572 = vmatprep.subr.bf16.mxu0 0
    %573 = vmatpush1.bf16.msra.mxu0 0
    %574 = vmatprep.subr.bf16.mxu0 0
    %575 = vmatpush1.bf16.msra.mxu0 0
    %576 = vmatprep.subr.bf16.mxu0 0
    %577 = vmatpush1.bf16.msra.mxu0 0
    %578 = vmatprep.subr.bf16.mxu0 0
    %579 = vmatpush1.bf16.msra.mxu0 0
    %580 = vmatprep.subr.bf16.mxu0 0
    %581 = vmatpush1.bf16.msra.mxu0 0
    %582 = vmatprep.mubr.bf16.mxu0 0
    %583 = vmatmul.mubr.bf16.gmra.mrb[0].mxu0 %v357
    %v584 = vpop.f32.mrb[0].mxu0
    %v585 = vadd.f32 0.0, %v584
    %v586 = vpop.f32.mrb[0].mxu0
    %v587 = vadd.f32 0.0, %v586
    %v588 = vpop.f32.mrb[0].mxu0
    %v589 = vpop.f32.mrb[0].mxu0
    %590 = vdwg.mxu0
    %591 = vmatprep.subr.bf16.mxu0 %v489
    %592 = vmatpush1.bf16.msra.mxu0 %v488
    %593 = vmatprep.subr.bf16.mxu0 %v493
    %594 = vmatpush1.bf16.msra.mxu0 %v492
    %595 = vmatprep.subr.bf16.mxu0 %v497
    %596 = vmatpush1.bf16.msra.mxu0 %v496
    %597 = vmatprep.subr.bf16.mxu0 %v501
    %598 = vmatpush1.bf16.msra.mxu0 %v500
    %599 = vmatprep.subr.bf16.mxu0 %v505
    %600 = vmatpush1.bf16.msra.mxu0 %v504
    %601 = vmatprep.subr.bf16.mxu0 %v509
    %602 = vmatpush1.bf16.msra.mxu0 %v508
    %603 = vmatprep.subr.bf16.mxu0 %v513
    %604 = vmatpush1.bf16.msra.mxu0 %v512
    %605 = vmatprep.subr.bf16.mxu0 %v517
    %606 = vmatpush1.bf16.msra.mxu0 %v516
    %607 = vmatprep.subr.bf16.mxu0 0
    %608 = vmatpush1.bf16.msra.mxu0 0
    %609 = vmatprep.subr.bf16.mxu0 0
    %610 = vmatpush1.bf16.msra.mxu0 0
    %611 = vmatprep.subr.bf16.mxu0 0
    %612 = vmatpush1.bf16.msra.mxu0 0
    %613 = vmatprep.subr.bf16.mxu0 0
    %614 = vmatpush1.bf16.msra.mxu0 0
    %615 = vmatprep.subr.bf16.mxu0 0
    %616 = vmatpush1.bf16.msra.mxu0 0
    %617 = vmatprep.subr.bf16.mxu0 0
    %618 = vmatpush1.bf16.msra.mxu0 0
    %619 = vmatprep.subr.bf16.mxu0 0
    %620 = vmatpush1.bf16.msra.mxu0 0
    %621 = vmatprep.subr.bf16.mxu0 0
    %622 = vmatpush1.bf16.msra.mxu0 0
    %623 = vmatprep.mubr.bf16.mxu0 0
    %624 = vmatmul.mubr.bf16.gmra.mrb[0].mxu0 %v357
    %v625 = vpop.f32.mrb[0].mxu0
    %v626 = vadd.f32 0.0, %v625
    %v627 = vpop.f32.mrb[0].mxu0
    %v628 = vadd.f32 0.0, %v627
    %v629 = vpop.f32.mrb[0].mxu0
    %v630 = vpop.f32.mrb[0].mxu0
    %631 = vdwg.mxu0
    %v632 = vadd.f32 %v353, %v585
    %v633 = vadd.f32 %v354, %v587
    %v634 = vadd.f32 %v355, %v626
    %v635 = vadd.f32 %v356, %v628
    %v636 = vxor.u32 %v632, 2147483648
    %v637 = vmul.f32 %v636, 1.442695
    %v638 = vpow.pop %v637
    %v639 = vadd.f32 %v638, 1.0
    %v640 = vrcp.pop %v639
    %v641 = vmul.f32 1.0, %v640
    %v642 = vxor.u32 %v633, 2147483648
    %v643 = vmul.f32 %v642, 1.442695
    %v644 = vpow.pop %v643
    %v645 = vadd.f32 %v644, 1.0
    %v646 = vrcp.pop %v645
    %v647 = vmul.f32 1.0, %v646
    %v648 = vtanh.pop %v634
    %v649 = vxor.u32 %v635, 2147483648
    %v650 = vmul.f32 %v649, 1.442695
    %v651 = vpow.pop %v650
    %v652 = vadd.f32 %v651, 1.0
    %v653 = vrcp.pop %v652
    %v654 = vmul.f32 1.0, %v653
    %v655 = vmul.f32 %v647, %v352
    %v656 = vmul.f32 %v641, %v648
    %v657 = vadd.f32 %v655, %v656
    %v658 = vtanh.pop %v657
    %v659 = vmul.f32 %v654, %v658
    %s660 = scalar_lea.vmem [#allocation2], 32
    %v661 = vld [vmem:[%s660] sm:$0xff]
    %v662 = vld [vmem:[%s660 + $0x8] sm:$0xff]
    %v663 = vld [vmem:[%s660 + $0x10] sm:$0xff]
    %v664 = vld [vmem:[%s660 + $0x18] sm:$0xff]
    %v665 = vpack.c.bf16 %v659, %v659
    %666 = vmatprep.subr.bf16.mxu0 %v487
    %667 = vmatpush1.bf16.msra.mxu0 %v486
    %668 = vmatprep.subr.bf16.mxu0 %v491
    %669 = vmatpush1.bf16.msra.mxu0 %v490
    %670 = vmatprep.subr.bf16.mxu0 %v495
    %671 = vmatpush1.bf16.msra.mxu0 %v494
    %672 = vmatprep.subr.bf16.mxu0 %v499
    %673 = vmatpush1.bf16.msra.mxu0 %v498
    %674 = vmatprep.subr.bf16.mxu0 %v503
    %675 = vmatpush1.bf16.msra.mxu0 %v502
    %676 = vmatprep.subr.bf16.mxu0 %v507
    %677 = vmatpush1.bf16.msra.mxu0 %v506
    %678 = vmatprep.subr.bf16.mxu0 %v511
    %679 = vmatpush1.bf16.msra.mxu0 %v510
    %680 = vmatprep.subr.bf16.mxu0 %v515
    %681 = vmatpush1.bf16.msra.mxu0 %v514
    %682 = vmatprep.subr.bf16.mxu0 0
    %683 = vmatpush1.bf16.msra.mxu0 0
    %684 = vmatprep.subr.bf16.mxu0 0
    %685 = vmatpush1.bf16.msra.mxu0 0
    %686 = vmatprep.subr.bf16.mxu0 0
    %687 = vmatpush1.bf16.msra.mxu0 0
    %688 = vmatprep.subr.bf16.mxu0 0
    %689 = vmatpush1.bf16.msra.mxu0 0
    %690 = vmatprep.subr.bf16.mxu0 0
    %691 = vmatpush1.bf16.msra.mxu0 0
    %692 = vmatprep.subr.bf16.mxu0 0
    %693 = vmatpush1.bf16.msra.mxu0 0
    %694 = vmatprep.subr.bf16.mxu0 0
    %695 = vmatpush1.bf16.msra.mxu0 0
    %696 = vmatprep.subr.bf16.mxu0 0
    %697 = vmatpush1.bf16.msra.mxu0 0
    %698 = vmatprep.mubr.bf16.mxu0 0
    %699 = vmatmul.mubr.bf16.gmra.mrb[0].mxu0 %v665
    %v700 = vpop.f32.mrb[0].mxu0
    %v701 = vadd.f32 0.0, %v700
    %v702 = vpop.f32.mrb[0].mxu0
    %v703 = vadd.f32 0.0, %v702
    %v704 = vpop.f32.mrb[0].mxu0
    %v705 = vpop.f32.mrb[0].mxu0
    %706 = vdwg.mxu0
    %707 = vmatprep.subr.bf16.mxu0 %v489
    %708 = vmatpush1.bf16.msra.mxu0 %v488
    %709 = vmatprep.subr.bf16.mxu0 %v493
    %710 = vmatpush1.bf16.msra.mxu0 %v492
    %711 = vmatprep.subr.bf16.mxu0 %v497
    %712 = vmatpush1.bf16.msra.mxu0 %v496
    %713 = vmatprep.subr.bf16.mxu0 %v501
    %714 = vmatpush1.bf16.msra.mxu0 %v500
    %715 = vmatprep.subr.bf16.mxu0 %v505
    %716 = vmatpush1.bf16.msra.mxu0 %v504
    %717 = vmatprep.subr.bf16.mxu0 %v509
    %718 = vmatpush1.bf16.msra.mxu0 %v508
    %719 = vmatprep.subr.bf16.mxu0 %v513
    %720 = vmatpush1.bf16.msra.mxu0 %v512
    %721 = vmatprep.subr.bf16.mxu0 %v517
    %722 = vmatpush1.bf16.msra.mxu0 %v516
    %723 = vmatprep.subr.bf16.mxu0 0
    %724 = vmatpush1.bf16.msra.mxu0 0
    %725 = vmatprep.subr.bf16.mxu0 0
    %726 = vmatpush1.bf16.msra.mxu0 0
    %727 = vmatprep.subr.bf16.mxu0 0
    %728 = vmatpush1.bf16.msra.mxu0 0
    %729 = vmatprep.subr.bf16.mxu0 0
    %730 = vmatpush1.bf16.msra.mxu0 0
    %731 = vmatprep.subr.bf16.mxu0 0
    %732 = vmatpush1.bf16.msra.mxu0 0
    %733 = vmatprep.subr.bf16.mxu0 0
    %734 = vmatpush1.bf16.msra.mxu0 0
    %735 = vmatprep.subr.bf16.mxu0 0
    %736 = vmatpush1.bf16.msra.mxu0 0
    %737 = vmatprep.subr.bf16.mxu0 0
    %738 = vmatpush1.bf16.msra.mxu0 0
    %739 = vmatprep.mubr.bf16.mxu0 0
    %740 = vmatmul.mubr.bf16.gmra.mrb[0].mxu0 %v665
    %v741 = vpop.f32.mrb[0].mxu0
    %v742 = vadd.f32 0.0, %v741
    %v743 = vpop.f32.mrb[0].mxu0
    %v744 = vadd.f32 0.0, %v743
    %v745 = vpop.f32.mrb[0].mxu0
    %v746 = vpop.f32.mrb[0].mxu0
    %747 = vdwg.mxu0
    %v748 = vadd.f32 %v661, %v701
    %v749 = vadd.f32 %v662, %v703
    %v750 = vadd.f32 %v663, %v742
    %v751 = vadd.f32 %v664, %v744
    %v752 = vxor.u32 %v748, 2147483648
    %v753 = vmul.f32 %v752, 1.442695
    %v754 = vpow.pop %v753
    %v755 = vadd.f32 %v754, 1.0
    %v756 = vrcp.pop %v755
    %v757 = vmul.f32 1.0, %v756
    %v758 = vxor.u32 %v749, 2147483648
    %v759 = vmul.f32 %v758, 1.442695
    %v760 = vpow.pop %v759
    %v761 = vadd.f32 %v760, 1.0
    %v762 = vrcp.pop %v761
    %v763 = vmul.f32 1.0, %v762
    %v764 = vtanh.pop %v750
    %v765 = vxor.u32 %v751, 2147483648
    %v766 = vmul.f32 %v765, 1.442695
    %v767 = vpow.pop %v766
    %v768 = vadd.f32 %v767, 1.0
    %v769 = vrcp.pop %v768
    %v770 = vmul.f32 1.0, %v769
    %v771 = vmul.f32 %v763, %v657
    %v772 = vmul.f32 %v757, %v764
    %v773 = vadd.f32 %v771, %v772
    %v774 = vtanh.pop %v773
    %v775 = vmul.f32 %v770, %v774
    %s776 = scalar_lea.vmem [#allocation2], 64
    %v777 = vld [vmem:[%s776] sm:$0xff]
    %v778 = vld [vmem:[%s776 + $0x8] sm:$0xff]
    %v779 = vld [vmem:[%s776 + $0x10] sm:$0xff]
    %v780 = vld [vmem:[%s776 + $0x18] sm:$0xff]
    %v781 = vpack.c.bf16 %v775, %v775
    %782 = vmatprep.subr.bf16.mxu0 %v487
    %783 = vmatpush1.bf16.msra.mxu0 %v486
    %784 = vmatprep.subr.bf16.mxu0 %v491
    %785 = vmatpush1.bf16.msra.mxu0 %v490
    %786 = vmatprep.subr.bf16.mxu0 %v495
    %787 = vmatpush1.bf16.msra.mxu0 %v494
    %788 = vmatprep.subr.bf16.mxu0 %v499
    %789 = vmatpush1.bf16.msra.mxu0 %v498
    %790 = vmatprep.subr.bf16.mxu0 %v503
    %791 = vmatpush1.bf16.msra.mxu0 %v502
    %792 = vmatprep.subr.bf16.mxu0 %v507
    %793 = vmatpush1.bf16.msra.mxu0 %v506
    %794 = vmatprep.subr.bf16.mxu0 %v511
    %795 = vmatpush1.bf16.msra.mxu0 %v510
    %796 = vmatprep.subr.bf16.mxu0 %v515
    %797 = vmatpush1.bf16.msra.mxu0 %v514
    %798 = vmatprep.subr.bf16.mxu0 0
    %799 = vmatpush1.bf16.msra.mxu0 0
    %800 = vmatprep.subr.bf16.mxu0 0
    %801 = vmatpush1.bf16.msra.mxu0 0
    %802 = vmatprep.subr.bf16.mxu0 0
    %803 = vmatpush1.bf16.msra.mxu0 0
    %804 = vmatprep.subr.bf16.mxu0 0
    %805 = vmatpush1.bf16.msra.mxu0 0
    %806 = vmatprep.subr.bf16.mxu0 0
    %807 = vmatpush1.bf16.msra.mxu0 0
    %808 = vmatprep.subr.bf16.mxu0 0
    %809 = vmatpush1.bf16.msra.mxu0 0
    %810 = vmatprep.subr.bf16.mxu0 0
    %811 = vmatpush1.bf16.msra.mxu0 0
    %812 = vmatprep.subr.bf16.mxu0 0
    %813 = vmatpush1.bf16.msra.mxu0 0
    %814 = vmatprep.mubr.bf16.mxu0 0
    %815 = vmatmul.mubr.bf16.gmra.mrb[0].mxu0 %v781
    %v816 = vpop.f32.mrb[0].mxu0
    %v817 = vadd.f32 0.0, %v816
    %v818 = vpop.f32.mrb[0].mxu0
    %v819 = vadd.f32 0.0, %v818
    %v820 = vpop.f32.mrb[0].mxu0
    %v821 = vpop.f32.mrb[0].mxu0
    %822 = vdwg.mxu0
    %823 = vmatprep.subr.bf16.mxu0 %v489
    %824 = vmatpush1.bf16.msra.mxu0 %v488
    %825 = vmatprep.subr.bf16.mxu0 %v493
    %826 = vmatpush1.bf16.msra.mxu0 %v492
    %827 = vmatprep.subr.bf16.mxu0 %v497
    %828 = vmatpush1.bf16.msra.mxu0 %v496
    %829 = vmatprep.subr.bf16.mxu0 %v501
    %830 = vmatpush1.bf16.msra.mxu0 %v500
    %831 = vmatprep.subr.bf16.mxu0 %v505
    %832 = vmatpush1.bf16.msra.mxu0 %v504
    %833 = vmatprep.subr.bf16.mxu0 %v509
    %834 = vmatpush1.bf16.msra.mxu0 %v508
    %835 = vmatprep.subr.bf16.mxu0 %v513
    %836 = vmatpush1.bf16.msra.mxu0 %v512
    %837 = vmatprep.subr.bf16.mxu0 %v517
    %838 = vmatpush1.bf16.msra.mxu0 %v516
    %839 = vmatprep.subr.bf16.mxu0 0
    %840 = vmatpush1.bf16.msra.mxu0 0
    %841 = vmatprep.subr.bf16.mxu0 0
    %842 = vmatpush1.bf16.msra.mxu0 0
    %843 = vmatprep.subr.bf16.mxu0 0
    %844 = vmatpush1.bf16.msra.mxu0 0
    %845 = vmatprep.subr.bf16.mxu0 0
    %846 = vmatpush1.bf16.msra.mxu0 0
    %847 = vmatprep.subr.bf16.mxu0 0
    %848 = vmatpush1.bf16.msra.mxu0 0
    %849 = vmatprep.subr.bf16.mxu0 0
    %850 = vmatpush1.bf16.msra.mxu0 0
    %851 = vmatprep.subr.bf16.mxu0 0
    %852 = vmatpush1.bf16.msra.mxu0 0
    %853 = vmatprep.subr.bf16.mxu0 0
    %854 = vmatpush1.bf16.msra.mxu0 0
    %855 = vmatprep.mubr.bf16.mxu0 0
    %856 = vmatmul.mubr.bf16.gmra.mrb[0].mxu0 %v781
    %v857 = vpop.f32.mrb[0].mxu0
    %v858 = vadd.f32 0.0, %v857
    %v859 = vpop.f32.mrb[0].mxu0
    %v860 = vadd.f32 0.0, %v859
    %v861 = vpop.f32.mrb[0].mxu0
    %v862 = vpop.f32.mrb[0].mxu0
    %863 = vdwg.mxu0
    %v864 = vadd.f32 %v777, %v817
    %v865 = vadd.f32 %v778, %v819
    %v866 = vadd.f32 %v779, %v858
    %v867 = vadd.f32 %v780, %v860
    %v868 = vxor.u32 %v864, 2147483648
    %v869 = vmul.f32 %v868, 1.442695
    %v870 = vpow.pop %v869
    %v871 = vadd.f32 %v870, 1.0
    %v872 = vrcp.pop %v871
    %v873 = vmul.f32 1.0, %v872
    %v874 = vxor.u32 %v865, 2147483648
    %v875 = vmul.f32 %v874, 1.442695
    %v876 = vpow.pop %v875
    %v877 = vadd.f32 %v876, 1.0
    %v878 = vrcp.pop %v877
    %v879 = vmul.f32 1.0, %v878
    %v880 = vtanh.pop %v866
    %v881 = vxor.u32 %v867, 2147483648
    %v882 = vmul.f32 %v881, 1.442695
    %v883 = vpow.pop %v882
    %v884 = vadd.f32 %v883, 1.0
    %v885 = vrcp.pop %v884
    %v886 = vmul.f32 1.0, %v885
    %v887 = vmul.f32 %v879, %v773
    %v888 = vmul.f32 %v873, %v880
    %v889 = vadd.f32 %v887, %v888
    %v890 = vtanh.pop %v889
    %v891 = vmul.f32 %v886, %v890
    %s892 = scalar_lea.vmem [#allocation2], 96
    %v893 = vld [vmem:[%s892] sm:$0xff]
    %v894 = vld [vmem:[%s892 + $0x8] sm:$0xff]
    %v895 = vld [vmem:[%s892 + $0x10] sm:$0xff]
    %v896 = vld [vmem:[%s892 + $0x18] sm:$0xff]
    %v897 = vpack.c.bf16 %v891, %v891
    %898 = vmatprep.subr.bf16.mxu0 %v487
    %899 = vmatpush1.bf16.msra.mxu0 %v486
    %900 = vmatprep.subr.bf16.mxu0 %v491
    %901 = vmatpush1.bf16.msra.mxu0 %v490
    %902 = vmatprep.subr.bf16.mxu0 %v495
    %903 = vmatpush1.bf16.msra.mxu0 %v494
    %904 = vmatprep.subr.bf16.mxu0 %v499
    %905 = vmatpush1.bf16.msra.mxu0 %v498
    %906 = vmatprep.subr.bf16.mxu0 %v503
    %907 = vmatpush1.bf16.msra.mxu0 %v502
    %908 = vmatprep.subr.bf16.mxu0 %v507
    %909 = vmatpush1.bf16.msra.mxu0 %v506
    %910 = vmatprep.subr.bf16.mxu0 %v511
    %911 = vmatpush1.bf16.msra.mxu0 %v510
    %912 = vmatprep.subr.bf16.mxu0 %v515
    %913 = vmatpush1.bf16.msra.mxu0 %v514
    %914 = vmatprep.subr.bf16.mxu0 0
    %915 = vmatpush1.bf16.msra.mxu0 0
    %916 = vmatprep.subr.bf16.mxu0 0
    %917 = vmatpush1.bf16.msra.mxu0 0
    %918 = vmatprep.subr.bf16.mxu0 0
    %919 = vmatpush1.bf16.msra.mxu0 0
    %920 = vmatprep.subr.bf16.mxu0 0
    %921 = vmatpush1.bf16.msra.mxu0 0
    %922 = vmatprep.subr.bf16.mxu0 0
    %923 = vmatpush1.bf16.msra.mxu0 0
    %924 = vmatprep.subr.bf16.mxu0 0
    %925 = vmatpush1.bf16.msra.mxu0 0
    %926 = vmatprep.subr.bf16.mxu0 0
    %927 = vmatpush1.bf16.msra.mxu0 0
    %928 = vmatprep.subr.bf16.mxu0 0
    %929 = vmatpush1.bf16.msra.mxu0 0
    %930 = vmatprep.mubr.bf16.mxu0 0
    %931 = vmatmul.mubr.bf16.gmra.mrb[0].mxu0 %v897
    %v932 = vpop.f32.mrb[0].mxu0
    %v933 = vadd.f32 0.0, %v932
    %v934 = vpop.f32.mrb[0].mxu0
    %v935 = vadd.f32 0.0, %v934
    %v936 = vpop.f32.mrb[0].mxu0
    %v937 = vpop.f32.mrb[0].mxu0
    %938 = vdwg.mxu0
    %939 = vmatprep.subr.bf16.mxu0 %v489
    %940 = vmatpush1.bf16.msra.mxu0 %v488
    %941 = vmatprep.subr.bf16.mxu0 %v493
    %942 = vmatpush1.bf16.msra.mxu0 %v492
    %943 = vmatprep.subr.bf16.mxu0 %v497
    %944 = vmatpush1.bf16.msra.mxu0 %v496
    %945 = vmatprep.subr.bf16.mxu0 %v501
    %946 = vmatpush1.bf16.msra.mxu0 %v500
    %947 = vmatprep.subr.bf16.mxu0 %v505
    %948 = vmatpush1.bf16.msra.mxu0 %v504
    %949 = vmatprep.subr.bf16.mxu0 %v509
    %950 = vmatpush1.bf16.msra.mxu0 %v508
    %951 = vmatprep.subr.bf16.mxu0 %v513
    %952 = vmatpush1.bf16.msra.mxu0 %v512
    %953 = vmatprep.subr.bf16.mxu0 %v517
    %954 = vmatpush1.bf16.msra.mxu0 %v516
    %955 = vmatprep.subr.bf16.mxu0 0
    %956 = vmatpush1.bf16.msra.mxu0 0
    %957 = vmatprep.subr.bf16.mxu0 0
    %958 = vmatpush1.bf16.msra.mxu0 0
    %959 = vmatprep.subr.bf16.mxu0 0
    %960 = vmatpush1.bf16.msra.mxu0 0
    %961 = vmatprep.subr.bf16.mxu0 0
    %962 = vmatpush1.bf16.msra.mxu0 0
    %963 = vmatprep.subr.bf16.mxu0 0
    %964 = vmatpush1.bf16.msra.mxu0 0
    %965 = vmatprep.subr.bf16.mxu0 0
    %966 = vmatpush1.bf16.msra.mxu0 0
    %967 = vmatprep.subr.bf16.mxu0 0
    %968 = vmatpush1.bf16.msra.mxu0 0
    %969 = vmatprep.subr.bf16.mxu0 0
    %970 = vmatpush1.bf16.msra.mxu0 0
    %971 = vmatprep.mubr.bf16.mxu0 0
    %972 = vmatmul.mubr.bf16.gmra.mrb[0].mxu0 %v897
    %v973 = vpop.f32.mrb[0].mxu0
    %v974 = vadd.f32 0.0, %v973
    %v975 = vpop.f32.mrb[0].mxu0
    %v976 = vadd.f32 0.0, %v975
    %v977 = vpop.f32.mrb[0].mxu0
    %v978 = vpop.f32.mrb[0].mxu0
    %979 = vdwg.mxu0
    %v980 = vadd.f32 %v893, %v933
    %v981 = vadd.f32 %v894, %v935
    %v982 = vadd.f32 %v895, %v974
    %v983 = vadd.f32 %v896, %v976
    %v984 = vxor.u32 %v980, 2147483648
    %v985 = vmul.f32 %v984, 1.442695
    %v986 = vpow.pop %v985
    %v987 = vadd.f32 %v986, 1.0
    %v988 = vrcp.pop %v987
    %v989 = vmul.f32 1.0, %v988
    %v990 = vxor.u32 %v981, 2147483648
    %v991 = vmul.f32 %v990, 1.442695
    %v992 = vpow.pop %v991
    %v993 = vadd.f32 %v992, 1.0
    %v994 = vrcp.pop %v993
    %v995 = vmul.f32 1.0, %v994
    %v996 = vtanh.pop %v982
    %v997 = vxor.u32 %v983, 2147483648
    %v998 = vmul.f32 %v997, 1.442695
    %v999 = vpow.pop %v998
    %v1000 = vadd.f32 %v999, 1.0
    %v1001 = vrcp.pop %v1000
    %v1002 = vmul.f32 1.0, %v1001
    %v1003 = vmul.f32 %v995, %v889
    %v1004 = vmul.f32 %v989, %v996
    %v1005 = vadd.f32 %v1003, %v1004
    %v1006 = vtanh.pop %v1005
    %v1007 = vmul.f32 %v1002, %v1006
    %s1008 = scalar_lea.vmem [#allocation2], 128
    %v1009 = vld [vmem:[%s1008] sm:$0xff]
    %v1010 = vld [vmem:[%s1008 + $0x8] sm:$0xff]
    %v1011 = vld [vmem:[%s1008 + $0x10] sm:$0xff]
    %v1012 = vld [vmem:[%s1008 + $0x18] sm:$0xff]
    %v1013 = vpack.c.bf16 %v1007, %v1007
    %1014 = vmatprep.subr.bf16.mxu0 %v487
    %1015 = vmatpush1.bf16.msra.mxu0 %v486
    %1016 = vmatprep.subr.bf16.mxu0 %v491
    %1017 = vmatpush1.bf16.msra.mxu0 %v490
    %1018 = vmatprep.subr.bf16.mxu0 %v495
    %1019 = vmatpush1.bf16.msra.mxu0 %v494
    %1020 = vmatprep.subr.bf16.mxu0 %v499
    %1021 = vmatpush1.bf16.msra.mxu0 %v498
    %1022 = vmatprep.subr.bf16.mxu0 %v503
    %1023 = vmatpush1.bf16.msra.mxu0 %v502
    %1024 = vmatprep.subr.bf16.mxu0 %v507
    %1025 = vmatpush1.bf16.msra.mxu0 %v506
    %1026 = vmatprep.subr.bf16.mxu0 %v511
    %1027 = vmatpush1.bf16.msra.mxu0 %v510
    %1028 = vmatprep.subr.bf16.mxu0 %v515
    %1029 = vmatpush1.bf16.msra.mxu0 %v514
    %1030 = vmatprep.subr.bf16.mxu0 0
    %1031 = vmatpush1.bf16.msra.mxu0 0
    %1032 = vmatprep.subr.bf16.mxu0 0
    %1033 = vmatpush1.bf16.msra.mxu0 0
    %1034 = vmatprep.subr.bf16.mxu0 0
    %1035 = vmatpush1.bf16.msra.mxu0 0
    %1036 = vmatprep.subr.bf16.mxu0 0
    %1037 = vmatpush1.bf16.msra.mxu0 0
    %1038 = vmatprep.subr.bf16.mxu0 0
    %1039 = vmatpush1.bf16.msra.mxu0 0
    %1040 = vmatprep.subr.bf16.mxu0 0
    %1041 = vmatpush1.bf16.msra.mxu0 0
    %1042 = vmatprep.subr.bf16.mxu0 0
    %1043 = vmatpush1.bf16.msra.mxu0 0
    %1044 = vmatprep.subr.bf16.mxu0 0
    %1045 = vmatpush1.bf16.msra.mxu0 0
    %1046 = vmatprep.mubr.bf16.mxu0 0
    %1047 = vmatmul.mubr.bf16.gmra.mrb[0].mxu0 %v1013
    %v1048 = vpop.f32.mrb[0].mxu0
    %v1049 = vadd.f32 0.0, %v1048
    %v1050 = vpop.f32.mrb[0].mxu0
    %v1051 = vadd.f32 0.0, %v1050
    %v1052 = vpop.f32.mrb[0].mxu0
    %v1053 = vpop.f32.mrb[0].mxu0
    %1054 = vdwg.mxu0
    %1055 = vmatprep.subr.bf16.mxu0 %v489
    %1056 = vmatpush1.bf16.msra.mxu0 %v488
    %1057 = vmatprep.subr.bf16.mxu0 %v493
    %1058 = vmatpush1.bf16.msra.mxu0 %v492
    %1059 = vmatprep.subr.bf16.mxu0 %v497
    %1060 = vmatpush1.bf16.msra.mxu0 %v496
    %1061 = vmatprep.subr.bf16.mxu0 %v501
    %1062 = vmatpush1.bf16.msra.mxu0 %v500
    %1063 = vmatprep.subr.bf16.mxu0 %v505
    %1064 = vmatpush1.bf16.msra.mxu0 %v504
    %1065 = vmatprep.subr.bf16.mxu0 %v509
    %1066 = vmatpush1.bf16.msra.mxu0 %v508
    %1067 = vmatprep.subr.bf16.mxu0 %v513
    %1068 = vmatpush1.bf16.msra.mxu0 %v512
    %1069 = vmatprep.subr.bf16.mxu0 %v517
    %1070 = vmatpush1.bf16.msra.mxu0 %v516
    %1071 = vmatprep.subr.bf16.mxu0 0
    %1072 = vmatpush1.bf16.msra.mxu0 0
    %1073 = vmatprep.subr.bf16.mxu0 0
    %1074 = vmatpush1.bf16.msra.mxu0 0
    %1075 = vmatprep.subr.bf16.mxu0 0
    %1076 = vmatpush1.bf16.msra.mxu0 0
    %1077 = vmatprep.subr.bf16.mxu0 0
    %1078 = vmatpush1.bf16.msra.mxu0 0
    %1079 = vmatprep.subr.bf16.mxu0 0
    %1080 = vmatpush1.bf16.msra.mxu0 0
    %1081 = vmatprep.subr.bf16.mxu0 0
    %1082 = vmatpush1.bf16.msra.mxu0 0
    %1083 = vmatprep.subr.bf16.mxu0 0
    %1084 = vmatpush1.bf16.msra.mxu0 0
    %1085 = vmatprep.subr.bf16.mxu0 0
    %1086 = vmatpush1.bf16.msra.mxu0 0
    %1087 = vmatprep.mubr.bf16.mxu0 0
    %1088 = vmatmul.mubr.bf16.gmra.mrb[0].mxu0 %v1013
    %v1089 = vpop.f32.mrb[0].mxu0
    %v1090 = vadd.f32 0.0, %v1089
    %v1091 = vpop.f32.mrb[0].mxu0
    %v1092 = vadd.f32 0.0, %v1091
    %v1093 = vpop.f32.mrb[0].mxu0
    %v1094 = vpop.f32.mrb[0].mxu0
    %1095 = vdwg.mxu0
    %v1096 = vadd.f32 %v1009, %v1049
    %v1097 = vadd.f32 %v1010, %v1051
    %v1098 = vadd.f32 %v1011, %v1090
    %v1099 = vadd.f32 %v1012, %v1092
    %v1100 = vxor.u32 %v1096, 2147483648
    %v1101 = vmul.f32 %v1100, 1.442695
    %v1102 = vpow.pop %v1101
    %v1103 = vadd.f32 %v1102, 1.0
    %v1104 = vrcp.pop %v1103
    %v1105 = vmul.f32 1.0, %v1104
    %v1106 = vxor.u32 %v1097, 2147483648
    %v1107 = vmul.f32 %v1106, 1.442695
    %v1108 = vpow.pop %v1107
    %v1109 = vadd.f32 %v1108, 1.0
    %v1110 = vrcp.pop %v1109
    %v1111 = vmul.f32 1.0, %v1110
    %v1112 = vtanh.pop %v1098
    %v1113 = vxor.u32 %v1099, 2147483648
    %v1114 = vmul.f32 %v1113, 1.442695
    %v1115 = vpow.pop %v1114
    %v1116 = vadd.f32 %v1115, 1.0
    %v1117 = vrcp.pop %v1116
    %v1118 = vmul.f32 1.0, %v1117
    %v1119 = vmul.f32 %v1111, %v1005
    %v1120 = vmul.f32 %v1105, %v1112
    %v1121 = vadd.f32 %v1119, %v1120
    %v1122 = vtanh.pop %v1121
    %v1123 = vmul.f32 %v1118, %v1122
    %s1124 = scalar_lea.vmem [#allocation2], 160
    %v1125 = vld [vmem:[%s1124] sm:$0xff]
    %v1126 = vld [vmem:[%s1124 + $0x8] sm:$0xff]
    %v1127 = vld [vmem:[%s1124 + $0x10] sm:$0xff]
    %v1128 = vld [vmem:[%s1124 + $0x18] sm:$0xff]
    %v1129 = vpack.c.bf16 %v1123, %v1123
    %1130 = vmatprep.subr.bf16.mxu0 %v487
    %1131 = vmatpush1.bf16.msra.mxu0 %v486
    %1132 = vmatprep.subr.bf16.mxu0 %v491
    %1133 = vmatpush1.bf16.msra.mxu0 %v490
    %1134 = vmatprep.subr.bf16.mxu0 %v495
    %1135 = vmatpush1.bf16.msra.mxu0 %v494
    %1136 = vmatprep.subr.bf16.mxu0 %v499
    %1137 = vmatpush1.bf16.msra.mxu0 %v498
    %1138 = vmatprep.subr.bf16.mxu0 %v503
    %1139 = vmatpush1.bf16.msra.mxu0 %v502
    %1140 = vmatprep.subr.bf16.mxu0 %v507
    %1141 = vmatpush1.bf16.msra.mxu0 %v506
    %1142 = vmatprep.subr.bf16.mxu0 %v511
    %1143 = vmatpush1.bf16.msra.mxu0 %v510
    %1144 = vmatprep.subr.bf16.mxu0 %v515
    %1145 = vmatpush1.bf16.msra.mxu0 %v514
    %1146 = vmatprep.subr.bf16.mxu0 0
    %1147 = vmatpush1.bf16.msra.mxu0 0
    %1148 = vmatprep.subr.bf16.mxu0 0
    %1149 = vmatpush1.bf16.msra.mxu0 0
    %1150 = vmatprep.subr.bf16.mxu0 0
    %1151 = vmatpush1.bf16.msra.mxu0 0
    %1152 = vmatprep.subr.bf16.mxu0 0
    %1153 = vmatpush1.bf16.msra.mxu0 0
    %1154 = vmatprep.subr.bf16.mxu0 0
    %1155 = vmatpush1.bf16.msra.mxu0 0
    %1156 = vmatprep.subr.bf16.mxu0 0
    %1157 = vmatpush1.bf16.msra.mxu0 0
    %1158 = vmatprep.subr.bf16.mxu0 0
    %1159 = vmatpush1.bf16.msra.mxu0 0
    %1160 = vmatprep.subr.bf16.mxu0 0
    %1161 = vmatpush1.bf16.msra.mxu0 0
    %1162 = vmatprep.mubr.bf16.mxu0 0
    %1163 = vmatmul.mubr.bf16.gmra.mrb[0].mxu0 %v1129
    %v1164 = vpop.f32.mrb[0].mxu0
    %v1165 = vadd.f32 0.0, %v1164
    %v1166 = vpop.f32.mrb[0].mxu0
    %v1167 = vadd.f32 0.0, %v1166
    %v1168 = vpop.f32.mrb[0].mxu0
    %v1169 = vpop.f32.mrb[0].mxu0
    %1170 = vdwg.mxu0
    %1171 = vmatprep.subr.bf16.mxu0 %v489
    %1172 = vmatpush1.bf16.msra.mxu0 %v488
    %1173 = vmatprep.subr.bf16.mxu0 %v493
    %1174 = vmatpush1.bf16.msra.mxu0 %v492
    %1175 = vmatprep.subr.bf16.mxu0 %v497
    %1176 = vmatpush1.bf16.msra.mxu0 %v496
    %1177 = vmatprep.subr.bf16.mxu0 %v501
    %1178 = vmatpush1.bf16.msra.mxu0 %v500
    %1179 = vmatprep.subr.bf16.mxu0 %v505
    %1180 = vmatpush1.bf16.msra.mxu0 %v504
    %1181 = vmatprep.subr.bf16.mxu0 %v509
    %1182 = vmatpush1.bf16.msra.mxu0 %v508
    %1183 = vmatprep.subr.bf16.mxu0 %v513
    %1184 = vmatpush1.bf16.msra.mxu0 %v512
    %1185 = vmatprep.subr.bf16.mxu0 %v517
    %1186 = vmatpush1.bf16.msra.mxu0 %v516
    %1187 = vmatprep.subr.bf16.mxu0 0
    %1188 = vmatpush1.bf16.msra.mxu0 0
    %1189 = vmatprep.subr.bf16.mxu0 0
    %1190 = vmatpush1.bf16.msra.mxu0 0
    %1191 = vmatprep.subr.bf16.mxu0 0
    %1192 = vmatpush1.bf16.msra.mxu0 0
    %1193 = vmatprep.subr.bf16.mxu0 0
    %1194 = vmatpush1.bf16.msra.mxu0 0
    %1195 = vmatprep.subr.bf16.mxu0 0
    %1196 = vmatpush1.bf16.msra.mxu0 0
    %1197 = vmatprep.subr.bf16.mxu0 0
    %1198 = vmatpush1.bf16.msra.mxu0 0
    %1199 = vmatprep.subr.bf16.mxu0 0
    %1200 = vmatpush1.bf16.msra.mxu0 0
    %1201 = vmatprep.subr.bf16.mxu0 0
    %1202 = vmatpush1.bf16.msra.mxu0 0
    %1203 = vmatprep.mubr.bf16.mxu0 0
    %1204 = vmatmul.mubr.bf16.gmra.mrb[0].mxu0 %v1129
    %v1205 = vpop.f32.mrb[0].mxu0
    %v1206 = vadd.f32 0.0, %v1205
    %v1207 = vpop.f32.mrb[0].mxu0
    %v1208 = vadd.f32 0.0, %v1207
    %v1209 = vpop.f32.mrb[0].mxu0
    %v1210 = vpop.f32.mrb[0].mxu0
    %1211 = vdwg.mxu0
    %v1212 = vadd.f32 %v1125, %v1165
    %v1213 = vadd.f32 %v1126, %v1167
    %v1214 = vadd.f32 %v1127, %v1206
    %v1215 = vadd.f32 %v1128, %v1208
    %v1216 = vxor.u32 %v1212, 2147483648
    %v1217 = vmul.f32 %v1216, 1.442695
    %v1218 = vpow.pop %v1217
    %v1219 = vadd.f32 %v1218, 1.0
    %v1220 = vrcp.pop %v1219
    %v1221 = vmul.f32 1.0, %v1220
    %v1222 = vxor.u32 %v1213, 2147483648
    %v1223 = vmul.f32 %v1222, 1.442695
    %v1224 = vpow.pop %v1223
    %v1225 = vadd.f32 %v1224, 1.0
    %v1226 = vrcp.pop %v1225
    %v1227 = vmul.f32 1.0, %v1226
    %v1228 = vtanh.pop %v1214
    %v1229 = vxor.u32 %v1215, 2147483648
    %v1230 = vmul.f32 %v1229, 1.442695
    %v1231 = vpow.pop %v1230
    %v1232 = vadd.f32 %v1231, 1.0
    %v1233 = vrcp.pop %v1232
    %v1234 = vmul.f32 1.0, %v1233
    %v1235 = vmul.f32 %v1227, %v1121
    %v1236 = vmul.f32 %v1221, %v1228
    %v1237 = vadd.f32 %v1235, %v1236
    %v1238 = vtanh.pop %v1237
    %v1239 = vmul.f32 %v1234, %v1238
    %s1240 = scalar_lea.vmem [#allocation2], 192
    %v1241 = vld [vmem:[%s1240] sm:$0xff]
    %v1242 = vld [vmem:[%s1240 + $0x8] sm:$0xff]
    %v1243 = vld [vmem:[%s1240 + $0x10] sm:$0xff]
    %v1244 = vld [vmem:[%s1240 + $0x18] sm:$0xff]
    %v1245 = vpack.c.bf16 %v1239, %v1239
    %1246 = vmatprep.subr.bf16.mxu0 %v487
    %1247 = vmatpush1.bf16.msra.mxu0 %v486
    %1248 = vmatprep.subr.bf16.mxu0 %v491
    %1249 = vmatpush1.bf16.msra.mxu0 %v490
    %1250 = vmatprep.subr.bf16.mxu0 %v495
    %1251 = vmatpush1.bf16.msra.mxu0 %v494
    %1252 = vmatprep.subr.bf16.mxu0 %v499
    %1253 = vmatpush1.bf16.msra.mxu0 %v498
    %1254 = vmatprep.subr.bf16.mxu0 %v503
    %1255 = vmatpush1.bf16.msra.mxu0 %v502
    %1256 = vmatprep.subr.bf16.mxu0 %v507
    %1257 = vmatpush1.bf16.msra.mxu0 %v506
    %1258 = vmatprep.subr.bf16.mxu0 %v511
    %1259 = vmatpush1.bf16.msra.mxu0 %v510
    %1260 = vmatprep.subr.bf16.mxu0 %v515
    %1261 = vmatpush1.bf16.msra.mxu0 %v514
    %1262 = vmatprep.subr.bf16.mxu0 0
    %1263 = vmatpush1.bf16.msra.mxu0 0
    %1264 = vmatprep.subr.bf16.mxu0 0
    %1265 = vmatpush1.bf16.msra.mxu0 0
    %1266 = vmatprep.subr.bf16.mxu0 0
    %1267 = vmatpush1.bf16.msra.mxu0 0
    %1268 = vmatprep.subr.bf16.mxu0 0
    %1269 = vmatpush1.bf16.msra.mxu0 0
    %1270 = vmatprep.subr.bf16.mxu0 0
    %1271 = vmatpush1.bf16.msra.mxu0 0
    %1272 = vmatprep.subr.bf16.mxu0 0
    %1273 = vmatpush1.bf16.msra.mxu0 0
    %1274 = vmatprep.subr.bf16.mxu0 0
    %1275 = vmatpush1.bf16.msra.mxu0 0
    %1276 = vmatprep.subr.bf16.mxu0 0
    %1277 = vmatpush1.bf16.msra.mxu0 0
    %1278 = vmatprep.mubr.bf16.mxu0 0
    %1279 = vmatmul.mubr.bf16.gmra.mrb[0].mxu0 %v1245
    %v1280 = vpop.f32.mrb[0].mxu0
    %v1281 = vadd.f32 0.0, %v1280
    %v1282 = vpop.f32.mrb[0].mxu0
    %v1283 = vadd.f32 0.0, %v1282
    %v1284 = vpop.f32.mrb[0].mxu0
    %v1285 = vpop.f32.mrb[0].mxu0
    %1286 = vdwg.mxu0
    %1287 = vmatprep.subr.bf16.mxu0 %v489
    %1288 = vmatpush1.bf16.msra.mxu0 %v488
    %1289 = vmatprep.subr.bf16.mxu0 %v493
    %1290 = vmatpush1.bf16.msra.mxu0 %v492
    %1291 = vmatprep.subr.bf16.mxu0 %v497
    %1292 = vmatpush1.bf16.msra.mxu0 %v496
    %1293 = vmatprep.subr.bf16.mxu0 %v501
    %1294 = vmatpush1.bf16.msra.mxu0 %v500
    %1295 = vmatprep.subr.bf16.mxu0 %v505
    %1296 = vmatpush1.bf16.msra.mxu0 %v504
    %1297 = vmatprep.subr.bf16.mxu0 %v509
    %1298 = vmatpush1.bf16.msra.mxu0 %v508
    %1299 = vmatprep.subr.bf16.mxu0 %v513
    %1300 = vmatpush1.bf16.msra.mxu0 %v512
    %1301 = vmatprep.subr.bf16.mxu0 %v517
    %1302 = vmatpush1.bf16.msra.mxu0 %v516
    %1303 = vmatprep.subr.bf16.mxu0 0
    %1304 = vmatpush1.bf16.msra.mxu0 0
    %1305 = vmatprep.subr.bf16.mxu0 0
    %1306 = vmatpush1.bf16.msra.mxu0 0
    %1307 = vmatprep.subr.bf16.mxu0 0
    %1308 = vmatpush1.bf16.msra.mxu0 0
    %1309 = vmatprep.subr.bf16.mxu0 0
    %1310 = vmatpush1.bf16.msra.mxu0 0
    %1311 = vmatprep.subr.bf16.mxu0 0
    %1312 = vmatpush1.bf16.msra.mxu0 0
    %1313 = vmatprep.subr.bf16.mxu0 0
    %1314 = vmatpush1.bf16.msra.mxu0 0
    %1315 = vmatprep.subr.bf16.mxu0 0
    %1316 = vmatpush1.bf16.msra.mxu0 0
    %1317 = vmatprep.subr.bf16.mxu0 0
    %1318 = vmatpush1.bf16.msra.mxu0 0
    %1319 = vmatprep.mubr.bf16.mxu0 0
    %1320 = vmatmul.mubr.bf16.gmra.mrb[0].mxu0 %v1245
    %v1321 = vpop.f32.mrb[0].mxu0
    %v1322 = vadd.f32 0.0, %v1321
    %v1323 = vpop.f32.mrb[0].mxu0
    %v1324 = vadd.f32 0.0, %v1323
    %v1325 = vpop.f32.mrb[0].mxu0
    %v1326 = vpop.f32.mrb[0].mxu0
    %1327 = vdwg.mxu0
    %v1328 = vadd.f32 %v1241, %v1281
    %v1329 = vadd.f32 %v1242, %v1283
    %v1330 = vadd.f32 %v1243, %v1322
    %v1331 = vadd.f32 %v1244, %v1324
    %v1332 = vxor.u32 %v1328, 2147483648
    %v1333 = vmul.f32 %v1332, 1.442695
    %v1334 = vpow.pop %v1333
    %v1335 = vadd.f32 %v1334, 1.0
    %v1336 = vrcp.pop %v1335
    %v1337 = vmul.f32 1.0, %v1336
    %v1338 = vxor.u32 %v1329, 2147483648
    %v1339 = vmul.f32 %v1338, 1.442695
    %v1340 = vpow.pop %v1339
    %v1341 = vadd.f32 %v1340, 1.0
    %v1342 = vrcp.pop %v1341
    %v1343 = vmul.f32 1.0, %v1342
    %v1344 = vtanh.pop %v1330
    %v1345 = vxor.u32 %v1331, 2147483648
    %v1346 = vmul.f32 %v1345, 1.442695
    %v1347 = vpow.pop %v1346
    %v1348 = vadd.f32 %v1347, 1.0
    %v1349 = vrcp.pop %v1348
    %v1350 = vmul.f32 1.0, %v1349
    %v1351 = vmul.f32 %v1343, %v1237
    %v1352 = vmul.f32 %v1337, %v1344
    %v1353 = vadd.f32 %v1351, %v1352
    %v1354 = vtanh.pop %v1353
    %v1355 = vmul.f32 %v1350, %v1354
    %s1356 = scalar_lea.vmem [#allocation2], 224
    %v1357 = vld [vmem:[%s1356] sm:$0xff]
    %v1358 = vld [vmem:[%s1356 + $0x8] sm:$0xff]
    %v1359 = vld [vmem:[%s1356 + $0x10] sm:$0xff]
    %v1360 = vld [vmem:[%s1356 + $0x18] sm:$0xff]
    %v1361 = vpack.c.bf16 %v1355, %v1355
    %1362 = vmatprep.subr.bf16.mxu0 %v487
    %1363 = vmatpush1.bf16.msra.mxu0 %v486
    %1364 = vmatprep.subr.bf16.mxu0 %v491
    %1365 = vmatpush1.bf16.msra.mxu0 %v490
    %1366 = vmatprep.subr.bf16.mxu0 %v495
    %1367 = vmatpush1.bf16.msra.mxu0 %v494
    %1368 = vmatprep.subr.bf16.mxu0 %v499
    %1369 = vmatpush1.bf16.msra.mxu0 %v498
    %1370 = vmatprep.subr.bf16.mxu0 %v503
    %1371 = vmatpush1.bf16.msra.mxu0 %v502
    %1372 = vmatprep.subr.bf16.mxu0 %v507
    %1373 = vmatpush1.bf16.msra.mxu0 %v506
    %1374 = vmatprep.subr.bf16.mxu0 %v511
    %1375 = vmatpush1.bf16.msra.mxu0 %v510
    %1376 = vmatprep.subr.bf16.mxu0 %v515
    %1377 = vmatpush1.bf16.msra.mxu0 %v514
    %1378 = vmatprep.subr.bf16.mxu0 0
    %1379 = vmatpush1.bf16.msra.mxu0 0
    %1380 = vmatprep.subr.bf16.mxu0 0
    %1381 = vmatpush1.bf16.msra.mxu0 0
    %1382 = vmatprep.subr.bf16.mxu0 0
    %1383 = vmatpush1.bf16.msra.mxu0 0
    %1384 = vmatprep.subr.bf16.mxu0 0
    %1385 = vmatpush1.bf16.msra.mxu0 0
    %1386 = vmatprep.subr.bf16.mxu0 0
    %1387 = vmatpush1.bf16.msra.mxu0 0
    %1388 = vmatprep.subr.bf16.mxu0 0
    %1389 = vmatpush1.bf16.msra.mxu0 0
    %1390 = vmatprep.subr.bf16.mxu0 0
    %1391 = vmatpush1.bf16.msra.mxu0 0
    %1392 = vmatprep.subr.bf16.mxu0 0
    %1393 = vmatpush1.bf16.msra.mxu0 0
    %1394 = vmatprep.mubr.bf16.mxu0 0
    %1395 = vmatmul.mubr.bf16.gmra.mrb[0].mxu0 %v1361
    %v1396 = vpop.f32.mrb[0].mxu0
    %v1397 = vadd.f32 0.0, %v1396
    %v1398 = vpop.f32.mrb[0].mxu0
    %v1399 = vadd.f32 0.0, %v1398
    %v1400 = vpop.f32.mrb[0].mxu0
    %v1401 = vpop.f32.mrb[0].mxu0
    %1402 = vdwg.mxu0
    %1403 = vmatprep.subr.bf16.mxu0 %v489
    %1404 = vmatpush1.bf16.msra.mxu0 %v488
    %1405 = vmatprep.subr.bf16.mxu0 %v493
    %1406 = vmatpush1.bf16.msra.mxu0 %v492
    %1407 = vmatprep.subr.bf16.mxu0 %v497
    %1408 = vmatpush1.bf16.msra.mxu0 %v496
    %1409 = vmatprep.subr.bf16.mxu0 %v501
    %1410 = vmatpush1.bf16.msra.mxu0 %v500
    %1411 = vmatprep.subr.bf16.mxu0 %v505
    %1412 = vmatpush1.bf16.msra.mxu0 %v504
    %1413 = vmatprep.subr.bf16.mxu0 %v509
    %1414 = vmatpush1.bf16.msra.mxu0 %v508
    %1415 = vmatprep.subr.bf16.mxu0 %v513
    %1416 = vmatpush1.bf16.msra.mxu0 %v512
    %1417 = vmatprep.subr.bf16.mxu0 %v517
    %1418 = vmatpush1.bf16.msra.mxu0 %v516
    %1419 = vmatprep.subr.bf16.mxu0 0
    %1420 = vmatpush1.bf16.msra.mxu0 0
    %1421 = vmatprep.subr.bf16.mxu0 0
    %1422 = vmatpush1.bf16.msra.mxu0 0
    %1423 = vmatprep.subr.bf16.mxu0 0
    %1424 = vmatpush1.bf16.msra.mxu0 0
    %1425 = vmatprep.subr.bf16.mxu0 0
    %1426 = vmatpush1.bf16.msra.mxu0 0
    %1427 = vmatprep.subr.bf16.mxu0 0
    %1428 = vmatpush1.bf16.msra.mxu0 0
    %1429 = vmatprep.subr.bf16.mxu0 0
    %1430 = vmatpush1.bf16.msra.mxu0 0
    %1431 = vmatprep.subr.bf16.mxu0 0
    %1432 = vmatpush1.bf16.msra.mxu0 0
    %1433 = vmatprep.subr.bf16.mxu0 0
    %1434 = vmatpush1.bf16.msra.mxu0 0
    %1435 = vmatprep.mubr.bf16.mxu0 0
    %1436 = vmatmul.mubr.bf16.gmra.mrb[0].mxu0 %v1361
    %v1437 = vpop.f32.mrb[0].mxu0
    %v1438 = vadd.f32 0.0, %v1437
    %v1439 = vpop.f32.mrb[0].mxu0
    %v1440 = vadd.f32 0.0, %v1439
    %v1441 = vpop.f32.mrb[0].mxu0
    %v1442 = vpop.f32.mrb[0].mxu0
    %1443 = vdwg.mxu0
    %v1444 = vadd.f32 %v1357, %v1397
    %v1445 = vadd.f32 %v1358, %v1399
    %v1446 = vadd.f32 %v1359, %v1438
    %v1447 = vadd.f32 %v1360, %v1440
    %v1448 = vxor.u32 %v1444, 2147483648
    %v1449 = vmul.f32 %v1448, 1.442695
    %v1450 = vpow.pop %v1449
    %v1451 = vadd.f32 %v1450, 1.0
    %v1452 = vrcp.pop %v1451
    %v1453 = vmul.f32 1.0, %v1452
    %v1454 = vxor.u32 %v1445, 2147483648
    %v1455 = vmul.f32 %v1454, 1.442695
    %v1456 = vpow.pop %v1455
    %v1457 = vadd.f32 %v1456, 1.0
    %v1458 = vrcp.pop %v1457
    %v1459 = vmul.f32 1.0, %v1458
    %v1460 = vtanh.pop %v1446
    %v1461 = vxor.u32 %v1447, 2147483648
    %v1462 = vmul.f32 %v1461, 1.442695
    %v1463 = vpow.pop %v1462
    %v1464 = vadd.f32 %v1463, 1.0
    %v1465 = vrcp.pop %v1464
    %v1466 = vmul.f32 1.0, %v1465
    %v1467 = vmul.f32 %v1459, %v1353
    %v1468 = vmul.f32 %v1453, %v1460
    %v1469 = vadd.f32 %v1467, %v1468
    %v1470 = vtanh.pop %v1469
    %v1471 = vmul.f32 %v1466, %v1470
    %1472 = vst [vmem:[#allocation3] sm:$0xff] %v1471
    %1473 = vst [vmem:[#allocation4] sm:$0xff] %v1469
    // Predicated region
    $region46: #{tpu_custom_call.1} parent=1 // pred_check
      %p1474 = pneg %p80
    $region47: #{tpu_custom_call.1} parent=1 // pred_check_branch
      %1476 = sbr.rel (%p1474) target = $region49
    $region48: #{tpu_custom_call.1} parent=1 // pred_region
      %v1477 = vld [vmem:[#allocation11] sm:$0xff]
      %v1478 = vld [vmem:[#allocation11 + $0x8] sm:$0xff]
      %v1479 = vld [vmem:[#allocation11 + $0x10] sm:$0xff]
      %v1480 = vld [vmem:[#allocation11 + $0x18] sm:$0xff]
      %v1481 = vld [vmem:[#allocation11 + $0x20] sm:$0xff]
      %v1482 = vld [vmem:[#allocation11 + $0x28] sm:$0xff]
      %v1483 = vld [vmem:[#allocation11 + $0x30] sm:$0xff]
      %v1484 = vld [vmem:[#allocation11 + $0x38] sm:$0xff]
      %v1485 = vld [vmem:[#allocation11 + $0x40] sm:$0xff]
      %v1486 = vld [vmem:[#allocation11 + $0x48] sm:$0xff]
      %v1487 = vld [vmem:[#allocation11 + $0x50] sm:$0xff]
      %v1488 = vld [vmem:[#allocation11 + $0x58] sm:$0xff]
      %v1489 = vld [vmem:[#allocation11 + $0x60] sm:$0xff]
      %v1490 = vld [vmem:[#allocation11 + $0x68] sm:$0xff]
      %v1491 = vld [vmem:[#allocation11 + $0x70] sm:$0xff]
      %v1492 = vld [vmem:[#allocation11 + $0x78] sm:$0xff]
      %v1493 = vld [vmem:[%s5] sm:$0x1]
      %v1495 = vlaneseq
      %v1496 = vshrl.u32 %v1495, 7
      %v1497 = vsub.s32 0, %v1496
      %v1498 = vrot.slane %v1493, %v1497
      %1500 = vmatprep.subr.mxu0 0.0
      %1501 = vmatpush1.msra.mxu0 %v1477
      %1502 = vmatprep.subr.mxu0 0.0
      %1503 = vmatpush1.msra.mxu0 %v1478
      %1504 = vmatprep.subr.mxu0 0.0
      %1505 = vmatpush1.msra.mxu0 %v1479
      %1506 = vmatprep.subr.mxu0 0.0
      %1507 = vmatpush1.msra.mxu0 %v1480
      %1508 = vmatprep.subr.mxu0 0.0
      %1509 = vmatpush1.msra.mxu0 %v1481
      %1510 = vmatprep.subr.mxu0 0.0
      %1511 = vmatpush1.msra.mxu0 %v1482
      %1512 = vmatprep.subr.mxu0 0.0
      %1513 = vmatpush1.msra.mxu0 %v1483
      %1514 = vmatprep.subr.mxu0 0.0
      %1515 = vmatpush1.msra.mxu0 %v1484
      %1516 = vmatprep.subr.mxu0 0.0
      %1517 = vmatpush1.msra.mxu0 %v1485
      %1518 = vmatprep.subr.mxu0 0.0
      %1519 = vmatpush1.msra.mxu0 %v1486
      %1520 = vmatprep.subr.mxu0 0.0
      %1521 = vmatpush1.msra.mxu0 %v1487
      %1522 = vmatprep.subr.mxu0 0.0
      %1523 = vmatpush1.msra.mxu0 %v1488
      %1524 = vmatprep.subr.mxu0 0.0
      %1525 = vmatpush1.msra.mxu0 %v1489
      %1526 = vmatprep.subr.mxu0 0.0
      %1527 = vmatpush1.msra.mxu0 %v1490
      %1528 = vmatprep.subr.mxu0 0.0
      %1529 = vmatpush1.msra.mxu0 %v1491
      %1530 = vmatprep.subr.mxu0 0.0
      %1531 = vmatpush1.msra.mxu0 %v1492
      %1532 = vmatprep.subr.mxu0 0.0
      %1533 = vmatpush1.msra.mxu0 0.0
      %1534 = vmatprep.subr.mxu0 0.0
      %1535 = vmatpush1.msra.mxu0 0.0
      %1536 = vmatprep.subr.mxu0 0.0
      %1537 = vmatpush1.msra.mxu0 0.0
      %1538 = vmatprep.subr.mxu0 0.0
      %1539 = vmatpush1.msra.mxu0 0.0
      %1540 = vmatprep.subr.mxu0 0.0
      %1541 = vmatpush1.msra.mxu0 0.0
      %1542 = vmatprep.subr.mxu0 0.0
      %1543 = vmatpush1.msra.mxu0 0.0
      %1544 = vmatprep.subr.mxu0 0.0
      %1545 = vmatpush1.msra.mxu0 0.0
      %1546 = vmatprep.subr.mxu0 0.0
      %1547 = vmatpush1.msra.mxu0 0.0
      %1548 = vmatprep.subr.mxu0 0.0
      %1549 = vmatpush1.msra.mxu0 0.0
      %1550 = vmatprep.subr.mxu0 0.0
      %1551 = vmatpush1.msra.mxu0 0.0
      %1552 = vmatprep.subr.mxu0 0.0
      %1553 = vmatpush1.msra.mxu0 0.0
      %1554 = vmatprep.subr.mxu0 0.0
      %1555 = vmatpush1.msra.mxu0 0.0
      %1556 = vmatprep.subr.mxu0 0.0
      %1557 = vmatpush1.msra.mxu0 0.0
      %1558 = vmatprep.subr.mxu0 0.0
      %1559 = vmatpush1.msra.mxu0 0.0
      %1560 = vmatprep.subr.mxu0 0.0
      %1561 = vmatpush1.msra.mxu0 0.0
      %1562 = vmatprep.subr.mxu0 0.0
      %1563 = vmatpush1.msra.mxu0 0.0
      %1564 = vmatprep.mubr.f32.mxu0 0.0
      %1565 = vmatmul.mubr.f32.gmra.mrb[0].mxu0 %v1471
      %v1566 = vpop.f32.mrb[0].mxu0
      %v1567 = vadd.f32 %v1498, %v1566
      %v1568 = vpop.f32.mrb[0].mxu0
      %1569 = vdwg.mxu0
      %v1570 = vxor.u32 %v1567, 2147483648
      %v1571 = vmul.f32 %v1570, 1.442695
      %v1572 = vpow.pop %v1571
      %v1573 = vadd.f32 %v1572, 1.0
      %v1574 = vrcp.pop %v1573
      %v1575 = vmul.f32 1.0, %v1574
      %1576 = vst [vmem:[#allocation13] sm:$0xff] %v1575
    $region49: #{tpu_custom_call.1} parent=1 // pred_fallthru
      _
    // Predicated region
    $region50: #{tpu_custom_call.1} parent=1 // pred_check
      _
    $region51: #{tpu_custom_call.1} parent=1 // pred_check_branch
      %1578 = sbr.rel (0) target = $region53
    $region52: #{tpu_custom_call.1} parent=1 // pred_region
      %s1580 = ssub.s32 128, 128
      %1581 = vsyncadd [#allocation7], %s1580
      %s1583 = sshll.u32 [#allocation13], 4
      %s1584 = int_to_ptr.vmem [resolvable:$true] %s1583
      %1586 = dma.vmem_to_hbm [thread:$0]  %s1584, 128, %s6, [#allocation7]
    $region53: #{tpu_custom_call.1} parent=1 // pred_fallthru
      _
    // Predicated region
    $region54: #{tpu_custom_call.1} parent=1 // pred_check
      _
    $region55: #{tpu_custom_call.1} parent=1 // pred_check_branch
      %1588 = sbr.rel (0) target = $region57
    $region56: #{tpu_custom_call.1} parent=1 // pred_region
      %1589 = dma.done [#allocation7], 128
    $region57: #{tpu_custom_call.1} parent=1 // pred_fallthru
      _
    %1590 = vsyncpa [#allocation6], 1
    %1591 = vsyncpa [#allocation9], 1
    %1592 = vsyncpa [#allocation12], 1
    %1593 = vsyncpa [#allocation7], 1

</llo_original>
